<compile_context>
chip_gen: v7x
topology: tpu7x:2x2x1
jax: 0.10.0
libtpu: 0.0.40
codegen_flags: <defaults>
</compile_context>

<pallas_src>
import functools

import jax
import jax.numpy as jnp
from jax.experimental import pallas as pl
from jax.experimental.pallas import tpu as pltpu


def _round_up(x, m):
    return ((x + m - 1) // m) * m


def _decoder_kernel(tok_ref,                        # SMEM (Bp,) int32 (scalar prefetch)
                    emb_hbm,                        # HBM  (vocab, H) f32 (pl.ANY)
                    h_ref, enc_ref,                 # VMEM (Bp,H) f32, (Bp,L,H) bf16
                    wir_ref, wiz_ref, win_ref,      # (H,H) bf16  GRU input->gate
                    whr_ref, whz_ref, whn_ref,      # (H,H) bf16  GRU hidden->gate
                    br_ref, bz_ref, bin_ref, bhn_ref,   # (1,H) f32
                    wattn_ref, battn_ref,           # (H,H) bf16, (1,H) f32
                    wch_ref, wcc_ref, bcat_ref,     # (H,H) bf16 x2, (1,H) f32
                    wout_ref, bout_ref,             # (H,TN) bf16, (1,TN) f32 (streamed)
                    logits_ref, m_out_ref, l_out_ref, hid_ref,   # outputs
                    emb_buf, emb_sem, cat_sc, m_sc, l_sc,        # scratch
                    *, batch):                      # static: real (unpadded) batch
    j = pl.program_id(0)
    f32, bf16 = jnp.float32, jnp.bfloat16

    @pl.when(j == 0)
    def _prologue():
        Bp, H = emb_buf.shape
        # ---- fused embedding gather: one small row DMA per *real* batch row ----
        if batch < Bp:   # keep padded rows deterministic (zeros), no wasted DMAs
            emb_buf[pl.ds(batch, Bp - batch), :] = jnp.zeros((Bp - batch, H), f32)
        for b in range(batch):
            pltpu.make_async_copy(emb_hbm.at[pl.ds(tok_ref[b], 1)],
                                  emb_buf.at[pl.ds(b, 1)], emb_sem.at[b]).start()
        for b in range(batch):
            pltpu.make_async_copy(emb_hbm.at[pl.ds(tok_ref[b], 1)],
                                  emb_buf.at[pl.ds(b, 1)], emb_sem.at[b]).wait()
        # TODO(synk): embedding_dropout is eval-mode identity (no train-time RNG mask).

        dot = lambda a, w_ref: jnp.dot(a, w_ref[...], preferred_element_type=f32)
        x = emb_buf[...].astype(bf16)                  # (Bp, H)
        h = h_ref[...]                                 # (Bp, H) f32
        h_b = h.astype(bf16)

        # ---- single GRU step (n_layers=1, seq_len=1), PyTorch gate order [r,z,n] ----
        # TODO(synk): when H % 128 == 0 the six gate matmuls can be fused into two
        # (Bp,H)x(H,3H) dots with lane-aligned gate slices (and wch/wcc into one
        # (Bp,2H)x(2H,H)); split path kept for lane-safety at arbitrary H.
        r = jax.nn.sigmoid(dot(x, wir_ref) + dot(h_b, whr_ref) + br_ref[...])
        z = jax.nn.sigmoid(dot(x, wiz_ref) + dot(h_b, whz_ref) + bz_ref[...])
        n = jnp.tanh(dot(x, win_ref) + bin_ref[...]
                     + r * (dot(h_b, whn_ref) + bhn_ref[...]))
        h_new = (1.0 - z) * n + z * h                  # (Bp, H) f32
        hid_ref[...] = h_new

        # ---- Luong "general" attention, q-form (no L x H x H matmul) ----
        enc = enc_ref[...]                             # (Bp, L, H) bf16, no f32 copy
        q = dot(h_new.astype(bf16), wattn_ref)         # (Bp, H) = h_new @ W_attn^T
        c = jnp.sum(h_new * battn_ref[...], axis=1, keepdims=True)   # exact bias term
        scores = jnp.sum(enc * q[:, None, :], axis=2) + c            # (Bp, L) f32
        smax = jnp.max(scores, axis=1, keepdims=True)
        e = jnp.exp(scores - smax)
        attn_w = e * pl.reciprocal(jnp.sum(e, axis=1, keepdims=True), approx=True)
        context = jnp.sum(attn_w[:, :, None] * enc, axis=1)          # (Bp, H) f32

        # ---- concat(rnn_output, context) -> Linear(2H,H) -> tanh (split weight) ----
        cat = jnp.tanh(dot(h_new.astype(bf16), wch_ref)
                       + dot(context.astype(bf16), wcc_ref) + bcat_ref[...])
        cat_sc[...] = cat.astype(bf16)

        m_sc[...] = jnp.full_like(m_sc, -jnp.inf)
        l_sc[...] = jnp.zeros_like(l_sc)

    # ---- streamed output-projection tile + online softmax statistics ----
    logits = jnp.dot(cat_sc[...], wout_ref[...],
                     preferred_element_type=f32) + bout_ref[...]     # (Bp, TN)
    logits_ref[...] = logits
    m_old = m_sc[...]
    m_new = jnp.maximum(m_old, jnp.max(logits, axis=1, keepdims=True))
    l_sc[...] = (l_sc[...] * jnp.exp(m_old - m_new)
                 + jnp.sum(jnp.exp(logits - m_new), axis=1, keepdims=True))
    m_sc[...] = m_new

    @pl.when(j == pl.num_programs(0) - 1)
    def _epilogue():   # lane-dense (Bp,128) stats written once, not per tile
        m_out_ref[...] = jnp.broadcast_to(m_sc[...], m_out_ref.shape)
        l_out_ref[...] = jnp.broadcast_to(l_sc[...], l_out_ref.shape)


def _pick_vocab_tile(H, V):
    """Largest lane-dense vocab tile whose streamed buffers fit a ~28 MiB budget."""
    stream_budget = 28 * 1024 * 1024
    # 3 buffers of (H,TN) bf16 w_out + (1,TN) f32 b_out, 2 buffers of (<=64,TN) f32 logits
    per_col = 3 * (H * 2 + 4) + 2 * 64 * 4
    tn = (stream_budget // per_col) // 128 * 128
    return max(128, min(tn, 4096, _round_up(V, 128)))


def prepare_decoder_params(params):
    """Per-MODEL parameter prep: run once, reuse across every decode step."""
    f32, bf16 = jnp.float32, jnp.bfloat16
    H = params["w_attn"].shape[0]
    V = params["w_out"].shape[1]
    TN = _pick_vocab_tile(H, V)
    Vp = _round_up(V, TN)

    w_ih, w_hh, b_ih, b_hh = (params[k] for k in ("w_ih", "w_hh", "b_ih", "b_hh"))
    w_out = jnp.zeros((H, Vp), bf16).at[:, :V].set(params["w_out"].astype(bf16))
    # padded vocab columns get a huge negative bias -> exp() == 0 in the online stats
    b_out = jnp.full((1, Vp), -1e30, f32).at[:, :V].set(params["b_out"].astype(f32))
    return dict(
        H=H, V=V, TN=TN, Vp=Vp,
        emb=params["embedding"].astype(f32),
        wir=w_ih[:, 0:H].astype(bf16), wiz=w_ih[:, H:2 * H].astype(bf16),
        win=w_ih[:, 2 * H:3 * H].astype(bf16),
        whr=w_hh[:, 0:H].astype(bf16), whz=w_hh[:, H:2 * H].astype(bf16),
        whn=w_hh[:, 2 * H:3 * H].astype(bf16),
        br=(b_ih[:, 0:H] + b_hh[:, 0:H]).astype(f32),
        bz=(b_ih[:, H:2 * H] + b_hh[:, H:2 * H]).astype(f32),
        bin=b_ih[:, 2 * H:3 * H].astype(f32), bhn=b_hh[:, 2 * H:3 * H].astype(f32),
        wattn=params["w_attn"].T.astype(bf16),          # so q = h_new @ W_attn^T
        battn=params["b_attn"].astype(f32),
        wch=params["w_cat_h"].astype(bf16), wcc=params["w_cat_c"].astype(bf16),
        bcat=params["b_cat"].astype(f32),
        wout=w_out, bout=b_out,
    )


def luong_attn_decoder_step(prep, input_step, last_hidden, encoder_outputs):
    """input_step: (1,B) int32; last_hidden: (1,B,H); encoder_outputs: (L,B,H)."""
    f32, bf16 = jnp.float32, jnp.bfloat16
    H, V, TN, Vp = prep["H"], prep["V"], prep["TN"], prep["Vp"]
    L, B, _ = encoder_outputs.shape
    Bp = _round_up(B, 8)                               # pad batch to 8 sublanes
    n_tiles = Vp // TN

    # ---- per-step activations: batch-padded, hidden on the lane axis ----
    tokens = jnp.zeros((Bp,), jnp.int32).at[:B].set(input_step[0].astype(jnp.int32))
    h0 = jnp.zeros((Bp, H), f32).at[:B].set(last_hidden[0].astype(f32))
    enc = jnp.zeros((Bp, L, H), bf16).at[:B].set(
        jnp.transpose(encoder_outputs, (1, 0, 2)).astype(bf16))      # (B, L, H)

    # explicit VMEM budget: fits v7x's 64 MiB even if the single-buffer hint is ignored
    est_vmem = (3 * (H * TN * 2 + TN * 4) + 2 * Bp * TN * 4
                + 2 * (9 * H * H * 2 + 6 * H * 4 + Bp * H * 4 + Bp * L * H * 2)
                + Bp * H * 4 + 2 * Bp * 128 * 4 + Bp * H * (4 + 2) + 4 * Bp * 4)
    vmem_limit = int(min(56 << 20, max(32 << 20, int(1.25 * est_vmem) + (1 << 20))))

    cost = pl.CostEstimate(
        flops=2 * Bp * (9 * H * H + 2 * L * H + H * Vp),
        transcendentals=Bp * (4 * H + 2 * L + Vp),
        bytes_accessed=2 * (9 * H * H + H * Vp + Bp * (L + 2) * H)
        + 4 * (6 * H + Vp + Bp * (2 * H + Vp + 2 * 128)))

    const2 = lambda j, tok: (0, 0)
    const3 = lambda j, tok: (0, 0, 0)
    vtile = lambda j, tok: (0, j)
    stream_bufs = 3 if n_tiles >= 3 else None          # deeper buffering hides prologue

    def call(use_pipeline_mode):
        def spec(shape, imap, bufs=None):
            if bufs is None or not use_pipeline_mode:
                return pl.BlockSpec(shape, imap)
            # constants: Buffered(1) (no double-buffer waste); streamed: Buffered(3)
            return pl.BlockSpec(shape, imap, pipeline_mode=pl.Buffered(bufs))

        return pl.pallas_call(
            functools.partial(_decoder_kernel, batch=B),
            out_shape=(jax.ShapeDtypeStruct((Bp, Vp), f32),    # raw logits (streamed)
                       jax.ShapeDtypeStruct((Bp, 128), f32),   # row max (lane-dense)
                       jax.ShapeDtypeStruct((Bp, 128), f32),   # row sum-exp
                       jax.ShapeDtypeStruct((Bp, H), f32)),    # new hidden state
            grid_spec=pltpu.PrefetchScalarGridSpec(
                num_scalar_prefetch=1,
                grid=(n_tiles,),
                in_specs=[
                    pl.BlockSpec(memory_space=pl.ANY),         # embedding table (HBM)
                    spec((Bp, H), const2, 1),                  # previous hidden
                    spec((Bp, L, H), const3, 1),               # encoder outputs (B,L,H)
                    spec((H, H), const2, 1),                   # w_ir
                    spec((H, H), const2, 1),                   # w_iz
                    spec((H, H), const2, 1),                   # w_in
                    spec((H, H), const2, 1),                   # w_hr
                    spec((H, H), const2, 1),                   # w_hz
                    spec((H, H), const2, 1),                   # w_hn
                    spec((1, H), const2, 1),                   # b_r
                    spec((1, H), const2, 1),                   # b_z
                    spec((1, H), const2, 1),                   # b_in
                    spec((1, H), const2, 1),                   # b_hn
                    spec((H, H), const2, 1),                   # W_attn^T
                    spec((1, H), const2, 1),                   # b_attn
                    spec((H, H), const2, 1),                   # w_cat (rnn half)
                    spec((H, H), const2, 1),                   # w_cat (context half)
                    spec((1, H), const2, 1),                   # b_cat
                    spec((H, TN), vtile, stream_bufs),         # w_out (streamed over V)
                    spec((1, TN), vtile, stream_bufs),         # b_out
                ],
                out_specs=(
                    pl.BlockSpec((Bp, TN), vtile),
                    pl.BlockSpec((Bp, 128), const2),
                    pl.BlockSpec((Bp, 128), const2),
                    pl.BlockSpec((Bp, H), const2),
                ),
                scratch_shapes=[
                    pltpu.VMEM((Bp, H), f32),                  # gathered embedding rows
                    pltpu.SemaphoreType.DMA((max(B, 1),)),     # one DMA sem per real row
                    pltpu.VMEM((Bp, H), bf16),                 # tanh(concat) activations
                    pltpu.VMEM((Bp, 1), f32),                  # online softmax max
                    pltpu.VMEM((Bp, 1), f32),                  # online softmax sum-exp
                ],
            ),
            # TODO(synk): on v7x, split the j==0 prologue into its own tiny call and mark
            # this axis "parallel" with per-tile (m,l) partials merged in the wrapper so
            # both TensorCores stream w_out; single-core path kept for v5e/v6e.
            compiler_params=pltpu.CompilerParams(
                dimension_semantics=("arbitrary",),
                vmem_limit_bytes=vmem_limit),
            cost_estimate=cost,
        )(tokens, prep["emb"], h0, enc,
          prep["wir"], prep["wiz"], prep["win"], prep["whr"], prep["whz"], prep["whn"],
          prep["br"], prep["bz"], prep["bin"], prep["bhn"],
          prep["wattn"], prep["battn"], prep["wch"], prep["wcc"], prep["bcat"],
          prep["wout"], prep["bout"])

    try:
        logits, m, l, h_new = call(use_pipeline_mode=hasattr(pl, "Buffered"))
    except Exception:   # jax build without BlockSpec(pipeline_mode=...) support
        logits, m, l, h_new = call(use_pipeline_mode=False)
    # TODO(synk): in an autoregressive decode loop, alias h0 -> h_new via
    # input_output_aliases to avoid an extra (Bp,H) HBM round-trip per step.

    # final softmax: one elementwise pass using the in-kernel (max, sum-exp) stats;
    # padded vocab columns were driven to -1e30 so they contribute 0 to l.
    probs = jnp.exp(logits[:B, :V] - m[:B, :1]) / l[:B, :1]
    return probs, h_new[:B][None, :, :]


def reference_step(params, input_step, last_hidden, encoder_outputs):
    """Pure-JAX f32 mirror of the PyTorch forward, for validation."""
    emb = params["embedding"][input_step[0]]
    h = last_hidden[0]
    H = h.shape[1]
    gi = emb @ params["w_ih"] + params["b_ih"]
    gh = h @ params["w_hh"] + params["b_hh"]
    r = jax.nn.sigmoid(gi[:, :H] + gh[:, :H])
    z = jax.nn.sigmoid(gi[:, H:2 * H] + gh[:, H:2 * H])
    n = jnp.tanh(gi[:, 2 * H:] + r * gh[:, 2 * H:])
    h_new = (1.0 - z) * n + z * h
    energy = encoder_outputs @ params["w_attn"] + params["b_attn"]       # (L, B, H)
    scores = jnp.sum(h_new[None] * energy, axis=2).T                     # (B, L)
    attn_w = jax.nn.softmax(scores, axis=1)                              # (B, L)
    context = jnp.einsum("bl,lbh->bh", attn_w, encoder_outputs)          # (B, H)
    cat = jnp.tanh(h_new @ params["w_cat_h"] + context @ params["w_cat_c"] + params["b_cat"])
    logits = cat @ params["w_out"] + params["b_out"]
    return jax.nn.softmax(logits, axis=1), h_new[None]


def init_params(key, vocab, hidden):
    ks = jax.random.split(key, 10)
    k = 1.0 / jnp.sqrt(hidden)
    u = lambda kk, shape, s: jax.random.uniform(kk, shape, jnp.float32, -s, s)
    return {
        "embedding": u(ks[0], (vocab, hidden), 1.0),
        "w_ih": u(ks[1], (hidden, 3 * hidden), k),
        "b_ih": u(ks[2], (1, 3 * hidden), k),
        "w_hh": u(ks[3], (hidden, 3 * hidden), k),
        "b_hh": u(ks[4], (1, 3 * hidden), k),
        "w_attn": u(ks[5], (hidden, hidden), k),
        "b_attn": u(ks[6], (1, hidden), k),
        "w_cat_h": u(ks[7], (hidden, hidden), k),
        "w_cat_c": u(ks[8], (hidden, hidden), k),
        "b_cat": u(ks[9], (1, hidden), k),
        "w_out": u(jax.random.fold_in(key, 100), (hidden, vocab), k),
        "b_out": u(jax.random.fold_in(key, 101), (1, vocab), k),
    }


if __name__ == "__main__":
    B, H, L, V = 2, 32, 8, 64   # batch, hidden, encoder seq len, vocab/output_size

    key = jax.random.PRNGKey(0)
    params = init_params(key, V, H)
    prep = prepare_decoder_params(params)      # per-model prep, hoisted out of the step

    k1, k2, k3 = jax.random.split(jax.random.PRNGKey(1), 3)
    input_step = jax.random.randint(k1, (1, B), 0, V, dtype=jnp.int32)      # (1, B)
    last_hidden = jax.random.normal(k2, (1, B, H), jnp.float32)             # (1, B, H)
    encoder_outputs = jax.random.normal(k3, (L, B, H), jnp.float32)         # (L, B, H)

    out, hidden = luong_attn_decoder_step(prep, input_step, last_hidden, encoder_outputs)
    out = jax.block_until_ready(out)
    hidden = jax.block_until_ready(hidden)

    ref_out, ref_hidden = reference_step(params, input_step, last_hidden, encoder_outputs)

    assert out.shape == (B, V) and hidden.shape == (1, B, H)
    assert bool(jnp.all(jnp.isfinite(out))) and bool(jnp.all(jnp.isfinite(hidden)))
    assert bool(jnp.allclose(jnp.sum(out, axis=1), 1.0, atol=1e-3))
    # bf16 MXU operands in the kernel vs. an all-f32 reference -> slightly looser tol
    assert bool(jnp.allclose(out, ref_out, atol=2e-2, rtol=2e-2))
    assert bool(jnp.allclose(hidden, ref_hidden, atol=2e-2, rtol=2e-2))

    print("KERNEL_OK")
</pallas_src>

<mosaic_0001>
module attributes {stable_mosaic.version = 11 : i64} {
  func.func @_decoder_kernel(%arg0: i32, %arg1: memref<8xi32, #tpu.memory_space<smem>>, %arg2: memref<64x32xf32, #tpu.memory_space<any>>, %arg3: memref<8x32xf32, #tpu.memory_space<vmem>>, %arg4: memref<8x8x32xbf16, #tpu.memory_space<vmem>>, %arg5: memref<32x32xbf16, #tpu.memory_space<vmem>>, %arg6: memref<32x32xbf16, #tpu.memory_space<vmem>>, %arg7: memref<32x32xbf16, #tpu.memory_space<vmem>>, %arg8: memref<32x32xbf16, #tpu.memory_space<vmem>>, %arg9: memref<32x32xbf16, #tpu.memory_space<vmem>>, %arg10: memref<32x32xbf16, #tpu.memory_space<vmem>>, %arg11: memref<1x32xf32, #tpu.memory_space<vmem>>, %arg12: memref<1x32xf32, #tpu.memory_space<vmem>>, %arg13: memref<1x32xf32, #tpu.memory_space<vmem>>, %arg14: memref<1x32xf32, #tpu.memory_space<vmem>>, %arg15: memref<32x32xbf16, #tpu.memory_space<vmem>>, %arg16: memref<1x32xf32, #tpu.memory_space<vmem>>, %arg17: memref<32x32xbf16, #tpu.memory_space<vmem>>, %arg18: memref<32x32xbf16, #tpu.memory_space<vmem>>, %arg19: memref<1x32xf32, #tpu.memory_space<vmem>>, %arg20: memref<32x128xbf16, #tpu.memory_space<vmem>>, %arg21: memref<1x128xf32, #tpu.memory_space<vmem>>, %arg22: memref<8x128xf32, #tpu.memory_space<vmem>>, %arg23: memref<8x128xf32, #tpu.memory_space<vmem>>, %arg24: memref<8x128xf32, #tpu.memory_space<vmem>>, %arg25: memref<8x32xf32, #tpu.memory_space<vmem>>, %arg26: memref<8x32xf32, #tpu.memory_space<vmem>>, %arg27: memref<2x!tpu.dma_semaphore, #tpu.memory_space<semaphore_mem>>, %arg28: memref<8x32xbf16, #tpu.memory_space<vmem>>, %arg29: memref<8x1xf32, #tpu.memory_space<vmem>>, %arg30: memref<8x1xf32, #tpu.memory_space<vmem>>) attributes {dimension_semantics = [#tpu.dimension_semantics<arbitrary>], iteration_bounds = array<i64: 1>, scalar_prefetch = 1 : i64, scratch_operands = 5 : i64, tpu.core_type = #tpu.core_type<tc>, window_params = [{}, {pipeline_mode = #tpu.pipeline_mode<synchronous>, transform_indices = @transform_1, window_bounds = array<i64: 8, 32>}, {pipeline_mode = #tpu.pipeline_mode<synchronous>, transform_indices = @transform_2, window_bounds = array<i64: 8, 8, 32>}, {pipeline_mode = #tpu.pipeline_mode<synchronous>, transform_indices = @transform_3, window_bounds = array<i64: 32, 32>}, {pipeline_mode = #tpu.pipeline_mode<synchronous>, transform_indices = @transform_4, window_bounds = array<i64: 32, 32>}, {pipeline_mode = #tpu.pipeline_mode<synchronous>, transform_indices = @transform_5, window_bounds = array<i64: 32, 32>}, {pipeline_mode = #tpu.pipeline_mode<synchronous>, transform_indices = @transform_6, window_bounds = array<i64: 32, 32>}, {pipeline_mode = #tpu.pipeline_mode<synchronous>, transform_indices = @transform_7, window_bounds = array<i64: 32, 32>}, {pipeline_mode = #tpu.pipeline_mode<synchronous>, transform_indices = @transform_8, window_bounds = array<i64: 32, 32>}, {pipeline_mode = #tpu.pipeline_mode<synchronous>, transform_indices = @transform_9, window_bounds = array<i64: 1, 32>}, {pipeline_mode = #tpu.pipeline_mode<synchronous>, transform_indices = @transform_10, window_bounds = array<i64: 1, 32>}, {pipeline_mode = #tpu.pipeline_mode<synchronous>, transform_indices = @transform_11, window_bounds = array<i64: 1, 32>}, {pipeline_mode = #tpu.pipeline_mode<synchronous>, transform_indices = @transform_12, window_bounds = array<i64: 1, 32>}, {pipeline_mode = #tpu.pipeline_mode<synchronous>, transform_indices = @transform_13, window_bounds = array<i64: 32, 32>}, {pipeline_mode = #tpu.pipeline_mode<synchronous>, transform_indices = @transform_14, window_bounds = array<i64: 1, 32>}, {pipeline_mode = #tpu.pipeline_mode<synchronous>, transform_indices = @transform_15, window_bounds = array<i64: 32, 32>}, {pipeline_mode = #tpu.pipeline_mode<synchronous>, transform_indices = @transform_16, window_bounds = array<i64: 32, 32>}, {pipeline_mode = #tpu.pipeline_mode<synchronous>, transform_indices = @transform_17, window_bounds = array<i64: 1, 32>}, {transform_indices = @transform_18, window_bounds = array<i64: 32, 128>}, {transform_indices = @transform_19, window_bounds = array<i64: 1, 128>}, {transform_indices = @transform_20, window_bounds = array<i64: 8, 128>}, {pipeline_mode = #tpu.pipeline_mode<synchronous>, transform_indices = @transform_21, window_bounds = array<i64: 8, 128>}, {pipeline_mode = #tpu.pipeline_mode<synchronous>, transform_indices = @transform_22, window_bounds = array<i64: 8, 128>}, {pipeline_mode = #tpu.pipeline_mode<synchronous>, transform_indices = @transform_23, window_bounds = array<i64: 8, 32>}]} {
    %c0_i32 = arith.constant 0 : i32
    %0 = arith.cmpi eq, %arg0, %c0_i32 : i32
    %1 = arith.extui %0 : i1 to i32
    %c0_i32_0 = arith.constant 0 : i32
    %2 = arith.cmpi ne, %1, %c0_i32_0 : i32
    scf.if %2 {
      %cst_20 = arith.constant 0.000000e+00 : f32
      %29 = vector.broadcast %cst_20 : f32 to vector<6x32xf32>
      %c2 = arith.constant 2 : index
      %c0_21 = arith.constant 0 : index
      %30 = vector.load %arg26[%c2, %c0_21] : memref<8x32xf32, #tpu.memory_space<vmem>>, vector<6x32xf32>
      tpu.vector_store %arg26[%c2, %c0_21], %29 {strides = array<i32>} : memref<8x32xf32, #tpu.memory_space<vmem>>, vector<6x32xf32>,
      %c0_22 = arith.constant 0 : index
      %31 = memref.load %arg1[%c0_22] : memref<8xi32, #tpu.memory_space<smem>>
      %c0_i32_23 = arith.constant 0 : i32
      %c0_i32_24 = arith.constant 0 : i32
      %32 = tpu.memref_slice %arg2[%31, %c0_i32_24] : memref<64x32xf32, #tpu.memory_space<any>> -> memref<1x32xf32, #tpu.memory_space<any>>
      %c0_i32_25 = arith.constant 0 : i32
      %c0_i32_26 = arith.constant 0 : i32
      %33 = tpu.memref_slice %arg26[%c0_i32_25, %c0_i32_26] : memref<8x32xf32, #tpu.memory_space<vmem>> -> memref<1x32xf32, #tpu.memory_space<vmem>>
      %34 = tpu.memref_slice %arg27[%c0_i32_23] : memref<2x!tpu.dma_semaphore, #tpu.memory_space<semaphore_mem>> -> memref<1x!tpu.dma_semaphore, #tpu.memory_space<semaphore_mem>>
      %35 = tpu.memref_squeeze %34 : memref<1x!tpu.dma_semaphore, #tpu.memory_space<semaphore_mem>> -> memref<!tpu.dma_semaphore, #tpu.memory_space<semaphore_mem>>
      tpu.enqueue_dma source(%32 : memref<1x32xf32, #tpu.memory_space<any>>) target(%33 : memref<1x32xf32, #tpu.memory_space<vmem>>) target_semaphore(%35 : memref<!tpu.dma_semaphore, #tpu.memory_space<semaphore_mem>>)
      %c1 = arith.constant 1 : index
      %36 = memref.load %arg1[%c1] : memref<8xi32, #tpu.memory_space<smem>>
      %c1_i32 = arith.constant 1 : i32
      %c0_i32_27 = arith.constant 0 : i32
      %37 = tpu.memref_slice %arg2[%36, %c0_i32_27] : memref<64x32xf32, #tpu.memory_space<any>> -> memref<1x32xf32, #tpu.memory_space<any>>
      %c1_i32_28 = arith.constant 1 : i32
      %c0_i32_29 = arith.constant 0 : i32
      %38 = tpu.memref_slice %arg26[%c1_i32_28, %c0_i32_29] : memref<8x32xf32, #tpu.memory_space<vmem>> -> memref<1x32xf32, #tpu.memory_space<vmem>>
      %39 = tpu.memref_slice %arg27[%c1_i32] : memref<2x!tpu.dma_semaphore, #tpu.memory_space<semaphore_mem>> -> memref<1x!tpu.dma_semaphore, #tpu.memory_space<semaphore_mem>>
      %40 = tpu.memref_squeeze %39 : memref<1x!tpu.dma_semaphore, #tpu.memory_space<semaphore_mem>> -> memref<!tpu.dma_semaphore, #tpu.memory_space<semaphore_mem>>
      tpu.enqueue_dma source(%37 : memref<1x32xf32, #tpu.memory_space<any>>) target(%38 : memref<1x32xf32, #tpu.memory_space<vmem>>) target_semaphore(%40 : memref<!tpu.dma_semaphore, #tpu.memory_space<semaphore_mem>>)
      %c0_30 = arith.constant 0 : index
      %41 = memref.load %arg1[%c0_30] : memref<8xi32, #tpu.memory_space<smem>>
      %c0_i32_31 = arith.constant 0 : i32
      %c0_i32_32 = arith.constant 0 : i32
      %42 = tpu.memref_slice %arg2[%41, %c0_i32_32] : memref<64x32xf32, #tpu.memory_space<any>> -> memref<1x32xf32, #tpu.memory_space<any>>
      %c0_i32_33 = arith.constant 0 : i32
      %c0_i32_34 = arith.constant 0 : i32
      %43 = tpu.memref_slice %arg26[%c0_i32_33, %c0_i32_34] : memref<8x32xf32, #tpu.memory_space<vmem>> -> memref<1x32xf32, #tpu.memory_space<vmem>>
      %44 = tpu.memref_slice %arg27[%c0_i32_31] : memref<2x!tpu.dma_semaphore, #tpu.memory_space<semaphore_mem>> -> memref<1x!tpu.dma_semaphore, #tpu.memory_space<semaphore_mem>>
      %45 = tpu.memref_squeeze %44 : memref<1x!tpu.dma_semaphore, #tpu.memory_space<semaphore_mem>> -> memref<!tpu.dma_semaphore, #tpu.memory_space<semaphore_mem>>
      tpu.wait_dma2 semaphore(%45 : memref<!tpu.dma_semaphore, #tpu.memory_space<semaphore_mem>>) src(%42 : memref<1x32xf32, #tpu.memory_space<any>>) dst(%43 : memref<1x32xf32, #tpu.memory_space<vmem>>)
      %c1_35 = arith.constant 1 : index
      %46 = memref.load %arg1[%c1_35] : memref<8xi32, #tpu.memory_space<smem>>
      %c1_i32_36 = arith.constant 1 : i32
      %c0_i32_37 = arith.constant 0 : i32
      %47 = tpu.memref_slice %arg2[%46, %c0_i32_37] : memref<64x32xf32, #tpu.memory_space<any>> -> memref<1x32xf32, #tpu.memory_space<any>>
      %c1_i32_38 = arith.constant 1 : i32
      %c0_i32_39 = arith.constant 0 : i32
      %48 = tpu.memref_slice %arg26[%c1_i32_38, %c0_i32_39] : memref<8x32xf32, #tpu.memory_space<vmem>> -> memref<1x32xf32, #tpu.memory_space<vmem>>
      %49 = tpu.memref_slice %arg27[%c1_i32_36] : memref<2x!tpu.dma_semaphore, #tpu.memory_space<semaphore_mem>> -> memref<1x!tpu.dma_semaphore, #tpu.memory_space<semaphore_mem>>
      %50 = tpu.memref_squeeze %49 : memref<1x!tpu.dma_semaphore, #tpu.memory_space<semaphore_mem>> -> memref<!tpu.dma_semaphore, #tpu.memory_space<semaphore_mem>>
      tpu.wait_dma2 semaphore(%50 : memref<!tpu.dma_semaphore, #tpu.memory_space<semaphore_mem>>) src(%47 : memref<1x32xf32, #tpu.memory_space<any>>) dst(%48 : memref<1x32xf32, #tpu.memory_space<vmem>>)
      %c0_40 = arith.constant 0 : index
      %c0_41 = arith.constant 0 : index
      %51 = vector.load %arg26[%c0_40, %c0_41] : memref<8x32xf32, #tpu.memory_space<vmem>>, vector<8x32xf32>
      %52 = arith.truncf %51 : vector<8x32xf32> to vector<8x32xbf16>
      %c0_42 = arith.constant 0 : index
      %c0_43 = arith.constant 0 : index
      %53 = vector.load %arg3[%c0_42, %c0_43] : memref<8x32xf32, #tpu.memory_space<vmem>>, vector<8x32xf32>
      %54 = arith.truncf %53 : vector<8x32xf32> to vector<8x32xbf16>
      %c0_44 = arith.constant 0 : index
      %c0_45 = arith.constant 0 : index
      %55 = vector.load %arg5[%c0_44, %c0_45] : memref<32x32xbf16, #tpu.memory_space<vmem>>, vector<32x32xbf16>
      %cst_46 = arith.constant dense<0.000000e+00> : vector<8x32xf32>
      %56 = tpu.matmul %52, %55, %cst_46 {dimension_numbers = #tpu.dot_dimension_numbers<[1], [0], [0], [1], [0, 0, 1, 1], [], []>} : vector<8x32xbf16>, vector<32x32xbf16>, vector<8x32xf32> -> vector<8x32xf32>
      %c0_47 = arith.constant 0 : index
      %c0_48 = arith.constant 0 : index
      %57 = vector.load %arg8[%c0_47, %c0_48] : memref<32x32xbf16, #tpu.memory_space<vmem>>, vector<32x32xbf16>
      %cst_49 = arith.constant dense<0.000000e+00> : vector<8x32xf32>
      %58 = tpu.matmul %54, %57, %cst_49 {dimension_numbers = #tpu.dot_dimension_numbers<[1], [0], [0], [1], [0, 0, 1, 1], [], []>} : vector<8x32xbf16>, vector<32x32xbf16>, vector<8x32xf32> -> vector<8x32xf32>
      %59 = arith.addf %56, %58 : vector<8x32xf32>
      %c0_50 = arith.constant 0 : index
      %c0_51 = arith.constant 0 : index
      %60 = vector.load %arg11[%c0_50, %c0_51] : memref<1x32xf32, #tpu.memory_space<vmem>>, vector<1x32xf32>
      %61 = vector.broadcast %60 : vector<1x32xf32> to vector<8x32xf32>
      %62 = arith.addf %59, %61 : vector<8x32xf32>
      %63 = arith.negf %62 : vector<8x32xf32>
      %64 = math.exp %63 : vector<8x32xf32>
      %cst_52 = arith.constant 1.000000e+00 : f32
      %65 = vector.broadcast %cst_52 : f32 to vector<8x32xf32>
      %66 = arith.addf %65, %64 : vector<8x32xf32>
      %67 = arith.divf %65, %66 : vector<8x32xf32>
      %c0_53 = arith.constant 0 : index
      %c0_54 = arith.constant 0 : index
      %68 = vector.load %arg6[%c0_53, %c0_54] : memref<32x32xbf16, #tpu.memory_space<vmem>>, vector<32x32xbf16>
      %cst_55 = arith.constant dense<0.000000e+00> : vector<8x32xf32>
      %69 = tpu.matmul %52, %68, %cst_55 {dimension_numbers = #tpu.dot_dimension_numbers<[1], [0], [0], [1], [0, 0, 1, 1], [], []>} : vector<8x32xbf16>, vector<32x32xbf16>, vector<8x32xf32> -> vector<8x32xf32>
      %c0_56 = arith.constant 0 : index
      %c0_57 = arith.constant 0 : index
      %70 = vector.load %arg9[%c0_56, %c0_57] : memref<32x32xbf16, #tpu.memory_space<vmem>>, vector<32x32xbf16>
      %cst_58 = arith.constant dense<0.000000e+00> : vector<8x32xf32>
      %71 = tpu.matmul %54, %70, %cst_58 {dimension_numbers = #tpu.dot_dimension_numbers<[1], [0], [0], [1], [0, 0, 1, 1], [], []>} : vector<8x32xbf16>, vector<32x32xbf16>, vector<8x32xf32> -> vector<8x32xf32>
      %72 = arith.addf %69, %71 : vector<8x32xf32>
      %c0_59 = arith.constant 0 : index
      %c0_60 = arith.constant 0 : index
      %73 = vector.load %arg12[%c0_59, %c0_60] : memref<1x32xf32, #tpu.memory_space<vmem>>, vector<1x32xf32>
      %74 = vector.broadcast %73 : vector<1x32xf32> to vector<8x32xf32>
      %75 = arith.addf %72, %74 : vector<8x32xf32>
      %76 = arith.negf %75 : vector<8x32xf32>
      %77 = math.exp %76 : vector<8x32xf32>
      %cst_61 = arith.constant 1.000000e+00 : f32
      %78 = vector.broadcast %cst_61 : f32 to vector<8x32xf32>
      %79 = arith.addf %78, %77 : vector<8x32xf32>
      %80 = arith.divf %78, %79 : vector<8x32xf32>
      %c0_62 = arith.constant 0 : index
      %c0_63 = arith.constant 0 : index
      %81 = vector.load %arg7[%c0_62, %c0_63] : memref<32x32xbf16, #tpu.memory_space<vmem>>, vector<32x32xbf16>
      %cst_64 = arith.constant dense<0.000000e+00> : vector<8x32xf32>
      %82 = tpu.matmul %52, %81, %cst_64 {dimension_numbers = #tpu.dot_dimension_numbers<[1], [0], [0], [1], [0, 0, 1, 1], [], []>} : vector<8x32xbf16>, vector<32x32xbf16>, vector<8x32xf32> -> vector<8x32xf32>
      %c0_65 = arith.constant 0 : index
      %c0_66 = arith.constant 0 : index
      %83 = vector.load %arg13[%c0_65, %c0_66] : memref<1x32xf32, #tpu.memory_space<vmem>>, vector<1x32xf32>
      %84 = vector.broadcast %83 : vector<1x32xf32> to vector<8x32xf32>
      %85 = arith.addf %82, %84 : vector<8x32xf32>
      %c0_67 = arith.constant 0 : index
      %c0_68 = arith.constant 0 : index
      %86 = vector.load %arg10[%c0_67, %c0_68] : memref<32x32xbf16, #tpu.memory_space<vmem>>, vector<32x32xbf16>
      %cst_69 = arith.constant dense<0.000000e+00> : vector<8x32xf32>
      %87 = tpu.matmul %54, %86, %cst_69 {dimension_numbers = #tpu.dot_dimension_numbers<[1], [0], [0], [1], [0, 0, 1, 1], [], []>} : vector<8x32xbf16>, vector<32x32xbf16>, vector<8x32xf32> -> vector<8x32xf32>
      %c0_70 = arith.constant 0 : index
      %c0_71 = arith.constant 0 : index
      %88 = vector.load %arg14[%c0_70, %c0_71] : memref<1x32xf32, #tpu.memory_space<vmem>>, vector<1x32xf32>
      %89 = vector.broadcast %88 : vector<1x32xf32> to vector<8x32xf32>
      %90 = arith.addf %87, %89 : vector<8x32xf32>
      %91 = arith.mulf %67, %90 : vector<8x32xf32>
      %92 = arith.addf %85, %91 : vector<8x32xf32>
      %93 = math.tanh %92 : vector<8x32xf32>
      %cst_72 = arith.constant 1.000000e+00 : f32
      %94 = vector.broadcast %cst_72 : f32 to vector<8x32xf32>
      %95 = arith.subf %94, %80 : vector<8x32xf32>
      %96 = arith.mulf %95, %93 : vector<8x32xf32>
      %97 = arith.mulf %80, %53 : vector<8x32xf32>
      %98 = arith.addf %96, %97 : vector<8x32xf32>
      %c0_73 = arith.constant 0 : index
      %c0_74 = arith.constant 0 : index
      %99 = vector.load %arg25[%c0_73, %c0_74] : memref<8x32xf32, #tpu.memory_space<vmem>>, vector<8x32xf32>
      tpu.vector_store %arg25[%c0_73, %c0_74], %98 {strides = array<i32>} : memref<8x32xf32, #tpu.memory_space<vmem>>, vector<8x32xf32>,
      %c0_75 = arith.constant 0 : index
      %c0_76 = arith.constant 0 : index
      %c0_77 = arith.constant 0 : index
      %100 = vector.load %arg4[%c0_75, %c0_76, %c0_77] : memref<8x8x32xbf16, #tpu.memory_space<vmem>>, vector<8x8x32xbf16>
      %101 = arith.truncf %98 : vector<8x32xf32> to vector<8x32xbf16>
      %c0_78 = arith.constant 0 : index
      %c0_79 = arith.constant 0 : index
      %102 = vector.load %arg15[%c0_78, %c0_79] : memref<32x32xbf16, #tpu.memory_space<vmem>>, vector<32x32xbf16>
      %cst_80 = arith.constant dense<0.000000e+00> : vector<8x32xf32>
      %103 = tpu.matmul %101, %102, %cst_80 {dimension_numbers = #tpu.dot_dimension_numbers<[1], [0], [0], [1], [0, 0, 1, 1], [], []>} : vector<8x32xbf16>, vector<32x32xbf16>, vector<8x32xf32> -> vector<8x32xf32>
      %c0_81 = arith.constant 0 : index
      %c0_82 = arith.constant 0 : index
      %104 = vector.load %arg16[%c0_81, %c0_82] : memref<1x32xf32, #tpu.memory_space<vmem>>, vector<1x32xf32>
      %105 = vector.broadcast %104 : vector<1x32xf32> to vector<8x32xf32>
      %106 = arith.mulf %98, %105 : vector<8x32xf32>
      %cst_83 = arith.constant dense<0.000000e+00> : vector<8xf32>
      %107 = vector.multi_reduction <add>, %106, %cst_83 [1] : vector<8x32xf32> to vector<8xf32>
      %108 = vector.shape_cast %107 : vector<8xf32> to vector<8x1xf32>
      %109 = vector.shape_cast %103 : vector<8x32xf32> to vector<8x1x32xf32>
      %110 = arith.extf %100 : vector<8x8x32xbf16> to vector<8x8x32xf32>
      %111 = vector.broadcast %109 : vector<8x1x32xf32> to vector<8x8x32xf32>
      %112 = arith.mulf %110, %111 : vector<8x8x32xf32>
      %cst_84 = arith.constant dense<0.000000e+00> : vector<8x8xf32>
      %113 = vector.multi_reduction <add>, %112, %cst_84 [2] : vector<8x8x32xf32> to vector<8x8xf32>
      %114 = vector.broadcast %108 : vector<8x1xf32> to vector<8x8xf32>
      %115 = arith.addf %113, %114 : vector<8x8xf32>
      %cst_85 = arith.constant dense<0xFF800000> : vector<8xf32>
      %116 = vector.multi_reduction <maximumf>, %115, %cst_85 [1] : vector<8x8xf32> to vector<8xf32>
      %117 = vector.shape_cast %116 : vector<8xf32> to vector<8x1xf32>
      %118 = vector.broadcast %117 : vector<8x1xf32> to vector<8x8xf32>
      %119 = arith.subf %115, %118 : vector<8x8xf32>
      %120 = math.exp %119 : vector<8x8xf32>
      %cst_86 = arith.constant dense<0.000000e+00> : vector<8xf32>
      %121 = vector.multi_reduction <add>, %120, %cst_86 [1] : vector<8x8xf32> to vector<8xf32>
      %122 = vector.shape_cast %121 : vector<8xf32> to vector<8x1xf32>
      %123 = tpu.reciprocal %122 {approx = true} : vector<8x1xf32> -> vector<8x1xf32>
      %124 = vector.broadcast %123 : vector<8x1xf32> to vector<8x8xf32>
      %125 = arith.mulf %120, %124 : vector<8x8xf32>
      %126 = vector.shape_cast %125 : vector<8x8xf32> to vector<8x8x1xf32>
      %127 = arith.extf %100 : vector<8x8x32xbf16> to vector<8x8x32xf32>
      %128 = vector.broadcast %126 : vector<8x8x1xf32> to vector<8x8x32xf32>
      %129 = arith.mulf %128, %127 : vector<8x8x32xf32>
      %cst_87 = arith.constant dense<0.000000e+00> : vector<8x32xf32>
      %130 = vector.multi_reduction <add>, %129, %cst_87 [1] : vector<8x8x32xf32> to vector<8x32xf32>
      %131 = arith.truncf %98 : vector<8x32xf32> to vector<8x32xbf16>
      %c0_88 = arith.constant 0 : index
      %c0_89 = arith.constant 0 : index
      %132 = vector.load %arg17[%c0_88, %c0_89] : memref<32x32xbf16, #tpu.memory_space<vmem>>, vector<32x32xbf16>
      %cst_90 = arith.constant dense<0.000000e+00> : vector<8x32xf32>
      %133 = tpu.matmul %131, %132, %cst_90 {dimension_numbers = #tpu.dot_dimension_numbers<[1], [0], [0], [1], [0, 0, 1, 1], [], []>} : vector<8x32xbf16>, vector<32x32xbf16>, vector<8x32xf32> -> vector<8x32xf32>
      %134 = arith.truncf %130 : vector<8x32xf32> to vector<8x32xbf16>
      %c0_91 = arith.constant 0 : index
      %c0_92 = arith.constant 0 : index
      %135 = vector.load %arg18[%c0_91, %c0_92] : memref<32x32xbf16, #tpu.memory_space<vmem>>, vector<32x32xbf16>
      %cst_93 = arith.constant dense<0.000000e+00> : vector<8x32xf32>
      %136 = tpu.matmul %134, %135, %cst_93 {dimension_numbers = #tpu.dot_dimension_numbers<[1], [0], [0], [1], [0, 0, 1, 1], [], []>} : vector<8x32xbf16>, vector<32x32xbf16>, vector<8x32xf32> -> vector<8x32xf32>
      %137 = arith.addf %133, %136 : vector<8x32xf32>
      %c0_94 = arith.constant 0 : index
      %c0_95 = arith.constant 0 : index
      %138 = vector.load %arg19[%c0_94, %c0_95] : memref<1x32xf32, #tpu.memory_space<vmem>>, vector<1x32xf32>
      %139 = vector.broadcast %138 : vector<1x32xf32> to vector<8x32xf32>
      %140 = arith.addf %137, %139 : vector<8x32xf32>
      %141 = math.tanh %140 : vector<8x32xf32>
      %142 = arith.truncf %141 : vector<8x32xf32> to vector<8x32xbf16>
      %c0_96 = arith.constant 0 : index
      %c0_97 = arith.constant 0 : index
      %143 = vector.load %arg28[%c0_96, %c0_97] : memref<8x32xbf16, #tpu.memory_space<vmem>>, vector<8x32xbf16>
      tpu.vector_store %arg28[%c0_96, %c0_97], %142 {strides = array<i32>} : memref<8x32xbf16, #tpu.memory_space<vmem>>, vector<8x32xbf16>,
      %cst_98 = arith.constant 0xFF800000 : f32
      %144 = vector.broadcast %cst_98 : f32 to vector<8x1xf32>
      %c0_99 = arith.constant 0 : index
      %c0_100 = arith.constant 0 : index
      %145 = vector.load %arg29[%c0_99, %c0_100] : memref<8x1xf32, #tpu.memory_space<vmem>>, vector<8x1xf32>
      tpu.vector_store %arg29[%c0_99, %c0_100], %144 {strides = array<i32>} : memref<8x1xf32, #tpu.memory_space<vmem>>, vector<8x1xf32>,
      %cst_101 = arith.constant 0.000000e+00 : f32
      %146 = vector.broadcast %cst_101 : f32 to vector<8x1xf32>
      %c0_102 = arith.constant 0 : index
      %c0_103 = arith.constant 0 : index
      %147 = vector.load %arg30[%c0_102, %c0_103] : memref<8x1xf32, #tpu.memory_space<vmem>>, vector<8x1xf32>
      tpu.vector_store %arg30[%c0_102, %c0_103], %146 {strides = array<i32>} : memref<8x1xf32, #tpu.memory_space<vmem>>, vector<8x1xf32>,
    } else {
    }
    %c0 = arith.constant 0 : index
    %c0_1 = arith.constant 0 : index
    %3 = vector.load %arg28[%c0, %c0_1] : memref<8x32xbf16, #tpu.memory_space<vmem>>, vector<8x32xbf16>
    %c0_2 = arith.constant 0 : index
    %c0_3 = arith.constant 0 : index
    %4 = vector.load %arg20[%c0_2, %c0_3] : memref<32x128xbf16, #tpu.memory_space<vmem>>, vector<32x128xbf16>
    %cst = arith.constant dense<0.000000e+00> : vector<8x128xf32>
    %5 = tpu.matmul %3, %4, %cst {dimension_numbers = #tpu.dot_dimension_numbers<[1], [0], [0], [1], [0, 0, 1, 1], [], []>} : vector<8x32xbf16>, vector<32x128xbf16>, vector<8x128xf32> -> vector<8x128xf32>
    %c0_4 = arith.constant 0 : index
    %c0_5 = arith.constant 0 : index
    %6 = vector.load %arg21[%c0_4, %c0_5] : memref<1x128xf32, #tpu.memory_space<vmem>>, vector<1x128xf32>
    %7 = vector.broadcast %6 : vector<1x128xf32> to vector<8x128xf32>
    %8 = arith.addf %5, %7 : vector<8x128xf32>
    %c0_6 = arith.constant 0 : index
    %c0_7 = arith.constant 0 : index
    %9 = vector.load %arg22[%c0_6, %c0_7] : memref<8x128xf32, #tpu.memory_space<vmem>>, vector<8x128xf32>
    tpu.vector_store %arg22[%c0_6, %c0_7], %8 {strides = array<i32>} : memref<8x128xf32, #tpu.memory_space<vmem>>, vector<8x128xf32>,
    %c0_8 = arith.constant 0 : index
    %c0_9 = arith.constant 0 : index
    %10 = vector.load %arg29[%c0_8, %c0_9] : memref<8x1xf32, #tpu.memory_space<vmem>>, vector<8x1xf32>
    %cst_10 = arith.constant dense<0xFF800000> : vector<8xf32>
    %11 = vector.multi_reduction <maximumf>, %8, %cst_10 [1] : vector<8x128xf32> to vector<8xf32>
    %12 = vector.shape_cast %11 : vector<8xf32> to vector<8x1xf32>
    %13 = arith.maximumf %10, %12 : vector<8x1xf32>
    %c0_11 = arith.constant 0 : index
    %c0_12 = arith.constant 0 : index
    %14 = vector.load %arg30[%c0_11, %c0_12] : memref<8x1xf32, #tpu.memory_space<vmem>>, vector<8x1xf32>
    %15 = arith.subf %10, %13 : vector<8x1xf32>
    %16 = math.exp %15 : vector<8x1xf32>
    %17 = arith.mulf %14, %16 : vector<8x1xf32>
    %18 = vector.broadcast %13 : vector<8x1xf32> to vector<8x128xf32>
    %19 = arith.subf %8, %18 : vector<8x128xf32>
    %20 = math.exp %19 : vector<8x128xf32>
    %cst_13 = arith.constant dense<0.000000e+00> : vector<8xf32>
    %21 = vector.multi_reduction <add>, %20, %cst_13 [1] : vector<8x128xf32> to vector<8xf32>
    %22 = vector.shape_cast %21 : vector<8xf32> to vector<8x1xf32>
    %23 = arith.addf %17, %22 : vector<8x1xf32>
    %c0_14 = arith.constant 0 : index
    %c0_15 = arith.constant 0 : index
    %24 = vector.load %arg30[%c0_14, %c0_15] : memref<8x1xf32, #tpu.memory_space<vmem>>, vector<8x1xf32>
    tpu.vector_store %arg30[%c0_14, %c0_15], %23 {strides = array<i32>} : memref<8x1xf32, #tpu.memory_space<vmem>>, vector<8x1xf32>,
    %c0_16 = arith.constant 0 : index
    %c0_17 = arith.constant 0 : index
    %25 = vector.load %arg29[%c0_16, %c0_17] : memref<8x1xf32, #tpu.memory_space<vmem>>, vector<8x1xf32>
    tpu.vector_store %arg29[%c0_16, %c0_17], %13 {strides = array<i32>} : memref<8x1xf32, #tpu.memory_space<vmem>>, vector<8x1xf32>,
    %c0_i32_18 = arith.constant 0 : i32
    %26 = arith.cmpi eq, %arg0, %c0_i32_18 : i32
    %27 = arith.extui %26 : i1 to i32
    %c0_i32_19 = arith.constant 0 : i32
    %28 = arith.cmpi ne, %27, %c0_i32_19 : i32
    scf.if %28 {
      %c0_20 = arith.constant 0 : index
      %c0_21 = arith.constant 0 : index
      %29 = vector.load %arg29[%c0_20, %c0_21] : memref<8x1xf32, #tpu.memory_space<vmem>>, vector<8x1xf32>
      %30 = vector.shape_cast %29 : vector<8x1xf32> to vector<8x1xf32>
      %31 = vector.broadcast %30 : vector<8x1xf32> to vector<8x128xf32>
      %c0_22 = arith.constant 0 : index
      %c0_23 = arith.constant 0 : index
      %32 = vector.load %arg23[%c0_22, %c0_23] : memref<8x128xf32, #tpu.memory_space<vmem>>, vector<8x128xf32>
      tpu.vector_store %arg23[%c0_22, %c0_23], %31 {strides = array<i32>} : memref<8x128xf32, #tpu.memory_space<vmem>>, vector<8x128xf32>,
      %c0_24 = arith.constant 0 : index
      %c0_25 = arith.constant 0 : index
      %33 = vector.load %arg30[%c0_24, %c0_25] : memref<8x1xf32, #tpu.memory_space<vmem>>, vector<8x1xf32>
      %34 = vector.shape_cast %33 : vector<8x1xf32> to vector<8x1xf32>
      %35 = vector.broadcast %34 : vector<8x1xf32> to vector<8x128xf32>
      %c0_26 = arith.constant 0 : index
      %c0_27 = arith.constant 0 : index
      %36 = vector.load %arg24[%c0_26, %c0_27] : memref<8x128xf32, #tpu.memory_space<vmem>>, vector<8x128xf32>
      tpu.vector_store %arg24[%c0_26, %c0_27], %35 {strides = array<i32>} : memref<8x128xf32, #tpu.memory_space<vmem>>, vector<8x128xf32>,
    } else {
    }
    return
  }
  func.func @transform_1(%arg0: i32, %arg1: memref<8xi32, #tpu.memory_space<smem>>) -> (i32, i32) {
    %c0_i32 = arith.constant 0 : i32
    %c0_i32_0 = arith.constant 0 : i32
    %c0_i32_1 = arith.constant 0 : i32
    return %c0_i32, %c0_i32_0 : i32, i32
  }
  func.func @transform_2(%arg0: i32, %arg1: memref<8xi32, #tpu.memory_space<smem>>) -> (i32, i32, i32) {
    %c0_i32 = arith.constant 0 : i32
    %c0_i32_0 = arith.constant 0 : i32
    %c0_i32_1 = arith.constant 0 : i32
    %c0_i32_2 = arith.constant 0 : i32
    return %c0_i32, %c0_i32_0, %c0_i32_1 : i32, i32, i32
  }
  func.func @transform_3(%arg0: i32, %arg1: memref<8xi32, #tpu.memory_space<smem>>) -> (i32, i32) {
    %c0_i32 = arith.constant 0 : i32
    %c0_i32_0 = arith.constant 0 : i32
    %c0_i32_1 = arith.constant 0 : i32
    return %c0_i32, %c0_i32_0 : i32, i32
  }
  func.func @transform_4(%arg0: i32, %arg1: memref<8xi32, #tpu.memory_space<smem>>) -> (i32, i32) {
    %c0_i32 = arith.constant 0 : i32
    %c0_i32_0 = arith.constant 0 : i32
    %c0_i32_1 = arith.constant 0 : i32
    return %c0_i32, %c0_i32_0 : i32, i32
  }
  func.func @transform_5(%arg0: i32, %arg1: memref<8xi32, #tpu.memory_space<smem>>) -> (i32, i32) {
    %c0_i32 = arith.constant 0 : i32
    %c0_i32_0 = arith.constant 0 : i32
    %c0_i32_1 = arith.constant 0 : i32
    return %c0_i32, %c0_i32_0 : i32, i32
  }
  func.func @transform_6(%arg0: i32, %arg1: memref<8xi32, #tpu.memory_space<smem>>) -> (i32, i32) {
    %c0_i32 = arith.constant 0 : i32
    %c0_i32_0 = arith.constant 0 : i32
    %c0_i32_1 = arith.constant 0 : i32
    return %c0_i32, %c0_i32_0 : i32, i32
  }
  func.func @transform_7(%arg0: i32, %arg1: memref<8xi32, #tpu.memory_space<smem>>) -> (i32, i32) {
    %c0_i32 = arith.constant 0 : i32
    %c0_i32_0 = arith.constant 0 : i32
    %c0_i32_1 = arith.constant 0 : i32
    return %c0_i32, %c0_i32_0 : i32, i32
  }
  func.func @transform_8(%arg0: i32, %arg1: memref<8xi32, #tpu.memory_space<smem>>) -> (i32, i32) {
    %c0_i32 = arith.constant 0 : i32
    %c0_i32_0 = arith.constant 0 : i32
    %c0_i32_1 = arith.constant 0 : i32
    return %c0_i32, %c0_i32_0 : i32, i32
  }
  func.func @transform_9(%arg0: i32, %arg1: memref<8xi32, #tpu.memory_space<smem>>) -> (i32, i32) {
    %c0_i32 = arith.constant 0 : i32
    %c0_i32_0 = arith.constant 0 : i32
    %c0_i32_1 = arith.constant 0 : i32
    return %c0_i32, %c0_i32_0 : i32, i32
  }
  func.func @transform_10(%arg0: i32, %arg1: memref<8xi32, #tpu.memory_space<smem>>) -> (i32, i32) {
    %c0_i32 = arith.constant 0 : i32
    %c0_i32_0 = arith.constant 0 : i32
    %c0_i32_1 = arith.constant 0 : i32
    return %c0_i32, %c0_i32_0 : i32, i32
  }
  func.func @transform_11(%arg0: i32, %arg1: memref<8xi32, #tpu.memory_space<smem>>) -> (i32, i32) {
    %c0_i32 = arith.constant 0 : i32
    %c0_i32_0 = arith.constant 0 : i32
    %c0_i32_1 = arith.constant 0 : i32
    return %c0_i32, %c0_i32_0 : i32, i32
  }
  func.func @transform_12(%arg0: i32, %arg1: memref<8xi32, #tpu.memory_space<smem>>) -> (i32, i32) {
    %c0_i32 = arith.constant 0 : i32
    %c0_i32_0 = arith.constant 0 : i32
    %c0_i32_1 = arith.constant 0 : i32
    return %c0_i32, %c0_i32_0 : i32, i32
  }
  func.func @transform_13(%arg0: i32, %arg1: memref<8xi32, #tpu.memory_space<smem>>) -> (i32, i32) {
    %c0_i32 = arith.constant 0 : i32
    %c0_i32_0 = arith.constant 0 : i32
    %c0_i32_1 = arith.constant 0 : i32
    return %c0_i32, %c0_i32_0 : i32, i32
  }
  func.func @transform_14(%arg0: i32, %arg1: memref<8xi32, #tpu.memory_space<smem>>) -> (i32, i32) {
    %c0_i32 = arith.constant 0 : i32
    %c0_i32_0 = arith.constant 0 : i32
    %c0_i32_1 = arith.constant 0 : i32
    return %c0_i32, %c0_i32_0 : i32, i32
  }
  func.func @transform_15(%arg0: i32, %arg1: memref<8xi32, #tpu.memory_space<smem>>) -> (i32, i32) {
    %c0_i32 = arith.constant 0 : i32
    %c0_i32_0 = arith.constant 0 : i32
    %c0_i32_1 = arith.constant 0 : i32
    return %c0_i32, %c0_i32_0 : i32, i32
  }
  func.func @transform_16(%arg0: i32, %arg1: memref<8xi32, #tpu.memory_space<smem>>) -> (i32, i32) {
    %c0_i32 = arith.constant 0 : i32
    %c0_i32_0 = arith.constant 0 : i32
    %c0_i32_1 = arith.constant 0 : i32
    return %c0_i32, %c0_i32_0 : i32, i32
  }
  func.func @transform_17(%arg0: i32, %arg1: memref<8xi32, #tpu.memory_space<smem>>) -> (i32, i32) {
    %c0_i32 = arith.constant 0 : i32
    %c0_i32_0 = arith.constant 0 : i32
    %c0_i32_1 = arith.constant 0 : i32
    return %c0_i32, %c0_i32_0 : i32, i32
  }
  func.func @transform_18(%arg0: i32, %arg1: memref<8xi32, #tpu.memory_space<smem>>) -> (i32, i32) {
    %c0_i32 = arith.constant 0 : i32
    %c0_i32_0 = arith.constant 0 : i32
    return %c0_i32, %arg0 : i32, i32
  }
  func.func @transform_19(%arg0: i32, %arg1: memref<8xi32, #tpu.memory_space<smem>>) -> (i32, i32) {
    %c0_i32 = arith.constant 0 : i32
    %c0_i32_0 = arith.constant 0 : i32
    return %c0_i32, %arg0 : i32, i32
  }
  func.func @transform_20(%arg0: i32, %arg1: memref<8xi32, #tpu.memory_space<smem>>) -> (i32, i32) {
    %c0_i32 = arith.constant 0 : i32
    %c0_i32_0 = arith.constant 0 : i32
    return %c0_i32, %arg0 : i32, i32
  }
  func.func @transform_21(%arg0: i32, %arg1: memref<8xi32, #tpu.memory_space<smem>>) -> (i32, i32) {
    %c0_i32 = arith.constant 0 : i32
    %c0_i32_0 = arith.constant 0 : i32
    %c0_i32_1 = arith.constant 0 : i32
    return %c0_i32, %c0_i32_0 : i32, i32
  }
  func.func @transform_22(%arg0: i32, %arg1: memref<8xi32, #tpu.memory_space<smem>>) -> (i32, i32) {
    %c0_i32 = arith.constant 0 : i32
    %c0_i32_0 = arith.constant 0 : i32
    %c0_i32_1 = arith.constant 0 : i32
    return %c0_i32, %c0_i32_0 : i32, i32
  }
  func.func @transform_23(%arg0: i32, %arg1: memref<8xi32, #tpu.memory_space<smem>>) -> (i32, i32) {
    %c0_i32 = arith.constant 0 : i32
    %c0_i32_0 = arith.constant 0 : i32
    %c0_i32_1 = arith.constant 0 : i32
    return %c0_i32, %c0_i32_0 : i32, i32
  }
}

module attributes {stable_mosaic.version = 11 : i64} {
  func.func @_decoder_kernel(%arg0: i32, %arg1: memref<8xi32, #tpu.memory_space<smem>>, %arg2: memref<64x32xf32, #tpu.memory_space<any>>, %arg3: memref<8x32xf32, #tpu.memory_space<vmem>>, %arg4: memref<8x8x32xbf16, #tpu.memory_space<vmem>>, %arg5: memref<32x32xbf16, #tpu.memory_space<vmem>>, %arg6: memref<32x32xbf16, #tpu.memory_space<vmem>>, %arg7: memref<32x32xbf16, #tpu.memory_space<vmem>>, %arg8: memref<32x32xbf16, #tpu.memory_space<vmem>>, %arg9: memref<32x32xbf16, #tpu.memory_space<vmem>>, %arg10: memref<32x32xbf16, #tpu.memory_space<vmem>>, %arg11: memref<1x32xf32, #tpu.memory_space<vmem>>, %arg12: memref<1x32xf32, #tpu.memory_space<vmem>>, %arg13: memref<1x32xf32, #tpu.memory_space<vmem>>, %arg14: memref<1x32xf32, #tpu.memory_space<vmem>>, %arg15: memref<32x32xbf16, #tpu.memory_space<vmem>>, %arg16: memref<1x32xf32, #tpu.memory_space<vmem>>, %arg17: memref<32x32xbf16, #tpu.memory_space<vmem>>, %arg18: memref<32x32xbf16, #tpu.memory_space<vmem>>, %arg19: memref<1x32xf32, #tpu.memory_space<vmem>>, %arg20: memref<32x128xbf16, #tpu.memory_space<vmem>>, %arg21: memref<1x128xf32, #tpu.memory_space<vmem>>, %arg22: memref<8x128xf32, #tpu.memory_space<vmem>>, %arg23: memref<8x128xf32, #tpu.memory_space<vmem>>, %arg24: memref<8x128xf32, #tpu.memory_space<vmem>>, %arg25: memref<8x32xf32, #tpu.memory_space<vmem>>, %arg26: memref<8x32xf32, #tpu.memory_space<vmem>>, %arg27: memref<2x!tpu.dma_semaphore, #tpu.memory_space<semaphore_mem>>, %arg28: memref<8x32xbf16, #tpu.memory_space<vmem>>, %arg29: memref<8x1xf32, #tpu.memory_space<vmem>>, %arg30: memref<8x1xf32, #tpu.memory_space<vmem>>) attributes {dimension_semantics = [#tpu.dimension_semantics<arbitrary>], iteration_bounds = array<i64: 1>, scalar_prefetch = 1 : i64, scratch_operands = 5 : i64, tpu.core_type = #tpu.core_type<tc>, window_params = [{}, {pipeline_mode = #tpu.pipeline_mode<synchronous>, transform_indices = @transform_1, window_bounds = array<i64: 8, 32>}, {pipeline_mode = #tpu.pipeline_mode<synchronous>, transform_indices = @transform_2, window_bounds = array<i64: 8, 8, 32>}, {pipeline_mode = #tpu.pipeline_mode<synchronous>, transform_indices = @transform_3, window_bounds = array<i64: 32, 32>}, {pipeline_mode = #tpu.pipeline_mode<synchronous>, transform_indices = @transform_4, window_bounds = array<i64: 32, 32>}, {pipeline_mode = #tpu.pipeline_mode<synchronous>, transform_indices = @transform_5, window_bounds = array<i64: 32, 32>}, {pipeline_mode = #tpu.pipeline_mode<synchronous>, transform_indices = @transform_6, window_bounds = array<i64: 32, 32>}, {pipeline_mode = #tpu.pipeline_mode<synchronous>, transform_indices = @transform_7, window_bounds = array<i64: 32, 32>}, {pipeline_mode = #tpu.pipeline_mode<synchronous>, transform_indices = @transform_8, window_bounds = array<i64: 32, 32>}, {pipeline_mode = #tpu.pipeline_mode<synchronous>, transform_indices = @transform_9, window_bounds = array<i64: 1, 32>}, {pipeline_mode = #tpu.pipeline_mode<synchronous>, transform_indices = @transform_10, window_bounds = array<i64: 1, 32>}, {pipeline_mode = #tpu.pipeline_mode<synchronous>, transform_indices = @transform_11, window_bounds = array<i64: 1, 32>}, {pipeline_mode = #tpu.pipeline_mode<synchronous>, transform_indices = @transform_12, window_bounds = array<i64: 1, 32>}, {pipeline_mode = #tpu.pipeline_mode<synchronous>, transform_indices = @transform_13, window_bounds = array<i64: 32, 32>}, {pipeline_mode = #tpu.pipeline_mode<synchronous>, transform_indices = @transform_14, window_bounds = array<i64: 1, 32>}, {pipeline_mode = #tpu.pipeline_mode<synchronous>, transform_indices = @transform_15, window_bounds = array<i64: 32, 32>}, {pipeline_mode = #tpu.pipeline_mode<synchronous>, transform_indices = @transform_16, window_bounds = array<i64: 32, 32>}, {pipeline_mode = #tpu.pipeline_mode<synchronous>, transform_indices = @transform_17, window_bounds = array<i64: 1, 32>}, {transform_indices = @transform_18, window_bounds = array<i64: 32, 128>}, {transform_indices = @transform_19, window_bounds = array<i64: 1, 128>}, {transform_indices = @transform_20, window_bounds = array<i64: 8, 128>}, {pipeline_mode = #tpu.pipeline_mode<synchronous>, transform_indices = @transform_21, window_bounds = array<i64: 8, 128>}, {pipeline_mode = #tpu.pipeline_mode<synchronous>, transform_indices = @transform_22, window_bounds = array<i64: 8, 128>}, {pipeline_mode = #tpu.pipeline_mode<synchronous>, transform_indices = @transform_23, window_bounds = array<i64: 8, 32>}]} {
    %c0_i32 = arith.constant 0 : i32
    %0 = arith.cmpi eq, %arg0, %c0_i32 : i32
    %1 = arith.extui %0 : i1 to i32
    %c0_i32_0 = arith.constant 0 : i32
    %2 = arith.cmpi ne, %1, %c0_i32_0 : i32
    scf.if %2 {
      %cst_20 = arith.constant 0.000000e+00 : f32
      %29 = vector.broadcast %cst_20 : f32 to vector<6x32xf32>
      %c2 = arith.constant 2 : index
      %c0_21 = arith.constant 0 : index
      %30 = vector.load %arg26[%c2, %c0_21] : memref<8x32xf32, #tpu.memory_space<vmem>>, vector<6x32xf32>
      tpu.vector_store %arg26[%c2, %c0_21], %29 {strides = array<i32>} : memref<8x32xf32, #tpu.memory_space<vmem>>, vector<6x32xf32>,
      %c0_22 = arith.constant 0 : index
      %31 = memref.load %arg1[%c0_22] : memref<8xi32, #tpu.memory_space<smem>>
      %c0_i32_23 = arith.constant 0 : i32
      %c0_i32_24 = arith.constant 0 : i32
      %32 = tpu.memref_slice %arg2[%31, %c0_i32_24] : memref<64x32xf32, #tpu.memory_space<any>> -> memref<1x32xf32, #tpu.memory_space<any>>
      %c0_i32_25 = arith.constant 0 : i32
      %c0_i32_26 = arith.constant 0 : i32
      %33 = tpu.memref_slice %arg26[%c0_i32_25, %c0_i32_26] : memref<8x32xf32, #tpu.memory_space<vmem>> -> memref<1x32xf32, #tpu.memory_space<vmem>>
      %34 = tpu.memref_slice %arg27[%c0_i32_23] : memref<2x!tpu.dma_semaphore, #tpu.memory_space<semaphore_mem>> -> memref<1x!tpu.dma_semaphore, #tpu.memory_space<semaphore_mem>>
      %35 = tpu.memref_squeeze %34 : memref<1x!tpu.dma_semaphore, #tpu.memory_space<semaphore_mem>> -> memref<!tpu.dma_semaphore, #tpu.memory_space<semaphore_mem>>
      tpu.enqueue_dma source(%32 : memref<1x32xf32, #tpu.memory_space<any>>) target(%33 : memref<1x32xf32, #tpu.memory_space<vmem>>) target_semaphore(%35 : memref<!tpu.dma_semaphore, #tpu.memory_space<semaphore_mem>>)
      %c1 = arith.constant 1 : index
      %36 = memref.load %arg1[%c1] : memref<8xi32, #tpu.memory_space<smem>>
      %c1_i32 = arith.constant 1 : i32
      %c0_i32_27 = arith.constant 0 : i32
      %37 = tpu.memref_slice %arg2[%36, %c0_i32_27] : memref<64x32xf32, #tpu.memory_space<any>> -> memref<1x32xf32, #tpu.memory_space<any>>
      %c1_i32_28 = arith.constant 1 : i32
      %c0_i32_29 = arith.constant 0 : i32
      %38 = tpu.memref_slice %arg26[%c1_i32_28, %c0_i32_29] : memref<8x32xf32, #tpu.memory_space<vmem>> -> memref<1x32xf32, #tpu.memory_space<vmem>>
      %39 = tpu.memref_slice %arg27[%c1_i32] : memref<2x!tpu.dma_semaphore, #tpu.memory_space<semaphore_mem>> -> memref<1x!tpu.dma_semaphore, #tpu.memory_space<semaphore_mem>>
      %40 = tpu.memref_squeeze %39 : memref<1x!tpu.dma_semaphore, #tpu.memory_space<semaphore_mem>> -> memref<!tpu.dma_semaphore, #tpu.memory_space<semaphore_mem>>
      tpu.enqueue_dma source(%37 : memref<1x32xf32, #tpu.memory_space<any>>) target(%38 : memref<1x32xf32, #tpu.memory_space<vmem>>) target_semaphore(%40 : memref<!tpu.dma_semaphore, #tpu.memory_space<semaphore_mem>>)
      %c0_30 = arith.constant 0 : index
      %41 = memref.load %arg1[%c0_30] : memref<8xi32, #tpu.memory_space<smem>>
      %c0_i32_31 = arith.constant 0 : i32
      %c0_i32_32 = arith.constant 0 : i32
      %42 = tpu.memref_slice %arg2[%41, %c0_i32_32] : memref<64x32xf32, #tpu.memory_space<any>> -> memref<1x32xf32, #tpu.memory_space<any>>
      %c0_i32_33 = arith.constant 0 : i32
      %c0_i32_34 = arith.constant 0 : i32
      %43 = tpu.memref_slice %arg26[%c0_i32_33, %c0_i32_34] : memref<8x32xf32, #tpu.memory_space<vmem>> -> memref<1x32xf32, #tpu.memory_space<vmem>>
      %44 = tpu.memref_slice %arg27[%c0_i32_31] : memref<2x!tpu.dma_semaphore, #tpu.memory_space<semaphore_mem>> -> memref<1x!tpu.dma_semaphore, #tpu.memory_space<semaphore_mem>>
      %45 = tpu.memref_squeeze %44 : memref<1x!tpu.dma_semaphore, #tpu.memory_space<semaphore_mem>> -> memref<!tpu.dma_semaphore, #tpu.memory_space<semaphore_mem>>
      tpu.wait_dma2 semaphore(%45 : memref<!tpu.dma_semaphore, #tpu.memory_space<semaphore_mem>>) src(%42 : memref<1x32xf32, #tpu.memory_space<any>>) dst(%43 : memref<1x32xf32, #tpu.memory_space<vmem>>)
      %c1_35 = arith.constant 1 : index
      %46 = memref.load %arg1[%c1_35] : memref<8xi32, #tpu.memory_space<smem>>
      %c1_i32_36 = arith.constant 1 : i32
      %c0_i32_37 = arith.constant 0 : i32
      %47 = tpu.memref_slice %arg2[%46, %c0_i32_37] : memref<64x32xf32, #tpu.memory_space<any>> -> memref<1x32xf32, #tpu.memory_space<any>>
      %c1_i32_38 = arith.constant 1 : i32
      %c0_i32_39 = arith.constant 0 : i32
      %48 = tpu.memref_slice %arg26[%c1_i32_38, %c0_i32_39] : memref<8x32xf32, #tpu.memory_space<vmem>> -> memref<1x32xf32, #tpu.memory_space<vmem>>
      %49 = tpu.memref_slice %arg27[%c1_i32_36] : memref<2x!tpu.dma_semaphore, #tpu.memory_space<semaphore_mem>> -> memref<1x!tpu.dma_semaphore, #tpu.memory_space<semaphore_mem>>
      %50 = tpu.memref_squeeze %49 : memref<1x!tpu.dma_semaphore, #tpu.memory_space<semaphore_mem>> -> memref<!tpu.dma_semaphore, #tpu.memory_space<semaphore_mem>>
      tpu.wait_dma2 semaphore(%50 : memref<!tpu.dma_semaphore, #tpu.memory_space<semaphore_mem>>) src(%47 : memref<1x32xf32, #tpu.memory_space<any>>) dst(%48 : memref<1x32xf32, #tpu.memory_space<vmem>>)
      %c0_40 = arith.constant 0 : index
      %c0_41 = arith.constant 0 : index
      %51 = vector.load %arg26[%c0_40, %c0_41] : memref<8x32xf32, #tpu.memory_space<vmem>>, vector<8x32xf32>
      %52 = arith.truncf %51 : vector<8x32xf32> to vector<8x32xbf16>
      %c0_42 = arith.constant 0 : index
      %c0_43 = arith.constant 0 : index
      %53 = vector.load %arg3[%c0_42, %c0_43] : memref<8x32xf32, #tpu.memory_space<vmem>>, vector<8x32xf32>
      %54 = arith.truncf %53 : vector<8x32xf32> to vector<8x32xbf16>
      %c0_44 = arith.constant 0 : index
      %c0_45 = arith.constant 0 : index
      %55 = vector.load %arg5[%c0_44, %c0_45] : memref<32x32xbf16, #tpu.memory_space<vmem>>, vector<32x32xbf16>
      %cst_46 = arith.constant dense<0.000000e+00> : vector<8x32xf32>
      %56 = tpu.matmul %52, %55, %cst_46 {dimension_numbers = #tpu.dot_dimension_numbers<[1], [0], [0], [1], [0, 0, 1, 1], [], []>} : vector<8x32xbf16>, vector<32x32xbf16>, vector<8x32xf32> -> vector<8x32xf32>
      %c0_47 = arith.constant 0 : index
      %c0_48 = arith.constant 0 : index
      %57 = vector.load %arg8[%c0_47, %c0_48] : memref<32x32xbf16, #tpu.memory_space<vmem>>, vector<32x32xbf16>
      %cst_49 = arith.constant dense<0.000000e+00> : vector<8x32xf32>
      %58 = tpu.matmul %54, %57, %cst_49 {dimension_numbers = #tpu.dot_dimension_numbers<[1], [0], [0], [1], [0, 0, 1, 1], [], []>} : vector<8x32xbf16>, vector<32x32xbf16>, vector<8x32xf32> -> vector<8x32xf32>
      %59 = arith.addf %56, %58 : vector<8x32xf32>
      %c0_50 = arith.constant 0 : index
      %c0_51 = arith.constant 0 : index
      %60 = vector.load %arg11[%c0_50, %c0_51] : memref<1x32xf32, #tpu.memory_space<vmem>>, vector<1x32xf32>
      %61 = vector.broadcast %60 : vector<1x32xf32> to vector<8x32xf32>
      %62 = arith.addf %59, %61 : vector<8x32xf32>
      %63 = arith.negf %62 : vector<8x32xf32>
      %64 = math.exp %63 : vector<8x32xf32>
      %cst_52 = arith.constant 1.000000e+00 : f32
      %65 = vector.broadcast %cst_52 : f32 to vector<8x32xf32>
      %66 = arith.addf %65, %64 : vector<8x32xf32>
      %67 = arith.divf %65, %66 : vector<8x32xf32>
      %c0_53 = arith.constant 0 : index
      %c0_54 = arith.constant 0 : index
      %68 = vector.load %arg6[%c0_53, %c0_54] : memref<32x32xbf16, #tpu.memory_space<vmem>>, vector<32x32xbf16>
      %cst_55 = arith.constant dense<0.000000e+00> : vector<8x32xf32>
      %69 = tpu.matmul %52, %68, %cst_55 {dimension_numbers = #tpu.dot_dimension_numbers<[1], [0], [0], [1], [0, 0, 1, 1], [], []>} : vector<8x32xbf16>, vector<32x32xbf16>, vector<8x32xf32> -> vector<8x32xf32>
      %c0_56 = arith.constant 0 : index
      %c0_57 = arith.constant 0 : index
      %70 = vector.load %arg9[%c0_56, %c0_57] : memref<32x32xbf16, #tpu.memory_space<vmem>>, vector<32x32xbf16>
      %cst_58 = arith.constant dense<0.000000e+00> : vector<8x32xf32>
      %71 = tpu.matmul %54, %70, %cst_58 {dimension_numbers = #tpu.dot_dimension_numbers<[1], [0], [0], [1], [0, 0, 1, 1], [], []>} : vector<8x32xbf16>, vector<32x32xbf16>, vector<8x32xf32> -> vector<8x32xf32>
      %72 = arith.addf %69, %71 : vector<8x32xf32>
      %c0_59 = arith.constant 0 : index
      %c0_60 = arith.constant 0 : index
      %73 = vector.load %arg12[%c0_59, %c0_60] : memref<1x32xf32, #tpu.memory_space<vmem>>, vector<1x32xf32>
      %74 = vector.broadcast %73 : vector<1x32xf32> to vector<8x32xf32>
      %75 = arith.addf %72, %74 : vector<8x32xf32>
      %76 = arith.negf %75 : vector<8x32xf32>
      %77 = math.exp %76 : vector<8x32xf32>
      %cst_61 = arith.constant 1.000000e+00 : f32
      %78 = vector.broadcast %cst_61 : f32 to vector<8x32xf32>
      %79 = arith.addf %78, %77 : vector<8x32xf32>
      %80 = arith.divf %78, %79 : vector<8x32xf32>
      %c0_62 = arith.constant 0 : index
      %c0_63 = arith.constant 0 : index
      %81 = vector.load %arg7[%c0_62, %c0_63] : memref<32x32xbf16, #tpu.memory_space<vmem>>, vector<32x32xbf16>
      %cst_64 = arith.constant dense<0.000000e+00> : vector<8x32xf32>
      %82 = tpu.matmul %52, %81, %cst_64 {dimension_numbers = #tpu.dot_dimension_numbers<[1], [0], [0], [1], [0, 0, 1, 1], [], []>} : vector<8x32xbf16>, vector<32x32xbf16>, vector<8x32xf32> -> vector<8x32xf32>
      %c0_65 = arith.constant 0 : index
      %c0_66 = arith.constant 0 : index
      %83 = vector.load %arg13[%c0_65, %c0_66] : memref<1x32xf32, #tpu.memory_space<vmem>>, vector<1x32xf32>
      %84 = vector.broadcast %83 : vector<1x32xf32> to vector<8x32xf32>
      %85 = arith.addf %82, %84 : vector<8x32xf32>
      %c0_67 = arith.constant 0 : index
      %c0_68 = arith.constant 0 : index
      %86 = vector.load %arg10[%c0_67, %c0_68] : memref<32x32xbf16, #tpu.memory_space<vmem>>, vector<32x32xbf16>
      %cst_69 = arith.constant dense<0.000000e+00> : vector<8x32xf32>
      %87 = tpu.matmul %54, %86, %cst_69 {dimension_numbers = #tpu.dot_dimension_numbers<[1], [0], [0], [1], [0, 0, 1, 1], [], []>} : vector<8x32xbf16>, vector<32x32xbf16>, vector<8x32xf32> -> vector<8x32xf32>
      %c0_70 = arith.constant 0 : index
      %c0_71 = arith.constant 0 : index
      %88 = vector.load %arg14[%c0_70, %c0_71] : memref<1x32xf32, #tpu.memory_space<vmem>>, vector<1x32xf32>
      %89 = vector.broadcast %88 : vector<1x32xf32> to vector<8x32xf32>
      %90 = arith.addf %87, %89 : vector<8x32xf32>
      %91 = arith.mulf %67, %90 : vector<8x32xf32>
      %92 = arith.addf %85, %91 : vector<8x32xf32>
      %93 = math.tanh %92 : vector<8x32xf32>
      %cst_72 = arith.constant 1.000000e+00 : f32
      %94 = vector.broadcast %cst_72 : f32 to vector<8x32xf32>
      %95 = arith.subf %94, %80 : vector<8x32xf32>
      %96 = arith.mulf %95, %93 : vector<8x32xf32>
      %97 = arith.mulf %80, %53 : vector<8x32xf32>
      %98 = arith.addf %96, %97 : vector<8x32xf32>
      %c0_73 = arith.constant 0 : index
      %c0_74 = arith.constant 0 : index
      %99 = vector.load %arg25[%c0_73, %c0_74] : memref<8x32xf32, #tpu.memory_space<vmem>>, vector<8x32xf32>
      tpu.vector_store %arg25[%c0_73, %c0_74], %98 {strides = array<i32>} : memref<8x32xf32, #tpu.memory_space<vmem>>, vector<8x32xf32>,
      %c0_75 = arith.constant 0 : index
      %c0_76 = arith.constant 0 : index
      %c0_77 = arith.constant 0 : index
      %100 = vector.load %arg4[%c0_75, %c0_76, %c0_77] : memref<8x8x32xbf16, #tpu.memory_space<vmem>>, vector<8x8x32xbf16>
      %101 = arith.truncf %98 : vector<8x32xf32> to vector<8x32xbf16>
      %c0_78 = arith.constant 0 : index
      %c0_79 = arith.constant 0 : index
      %102 = vector.load %arg15[%c0_78, %c0_79] : memref<32x32xbf16, #tpu.memory_space<vmem>>, vector<32x32xbf16>
      %cst_80 = arith.constant dense<0.000000e+00> : vector<8x32xf32>
      %103 = tpu.matmul %101, %102, %cst_80 {dimension_numbers = #tpu.dot_dimension_numbers<[1], [0], [0], [1], [0, 0, 1, 1], [], []>} : vector<8x32xbf16>, vector<32x32xbf16>, vector<8x32xf32> -> vector<8x32xf32>
      %c0_81 = arith.constant 0 : index
      %c0_82 = arith.constant 0 : index
      %104 = vector.load %arg16[%c0_81, %c0_82] : memref<1x32xf32, #tpu.memory_space<vmem>>, vector<1x32xf32>
      %105 = vector.broadcast %104 : vector<1x32xf32> to vector<8x32xf32>
      %106 = arith.mulf %98, %105 : vector<8x32xf32>
      %cst_83 = arith.constant dense<0.000000e+00> : vector<8xf32>
      %107 = vector.multi_reduction <add>, %106, %cst_83 [1] : vector<8x32xf32> to vector<8xf32>
      %108 = vector.shape_cast %107 : vector<8xf32> to vector<8x1xf32>
      %109 = vector.shape_cast %103 : vector<8x32xf32> to vector<8x1x32xf32>
      %110 = arith.extf %100 : vector<8x8x32xbf16> to vector<8x8x32xf32>
      %111 = vector.broadcast %109 : vector<8x1x32xf32> to vector<8x8x32xf32>
      %112 = arith.mulf %110, %111 : vector<8x8x32xf32>
      %cst_84 = arith.constant dense<0.000000e+00> : vector<8x8xf32>
      %113 = vector.multi_reduction <add>, %112, %cst_84 [2] : vector<8x8x32xf32> to vector<8x8xf32>
      %114 = vector.broadcast %108 : vector<8x1xf32> to vector<8x8xf32>
      %115 = arith.addf %113, %114 : vector<8x8xf32>
      %cst_85 = arith.constant dense<0xFF800000> : vector<8xf32>
      %116 = vector.multi_reduction <maximumf>, %115, %cst_85 [1] : vector<8x8xf32> to vector<8xf32>
      %117 = vector.shape_cast %116 : vector<8xf32> to vector<8x1xf32>
      %118 = vector.broadcast %117 : vector<8x1xf32> to vector<8x8xf32>
      %119 = arith.subf %115, %118 : vector<8x8xf32>
      %120 = math.exp %119 : vector<8x8xf32>
      %cst_86 = arith.constant dense<0.000000e+00> : vector<8xf32>
      %121 = vector.multi_reduction <add>, %120, %cst_86 [1] : vector<8x8xf32> to vector<8xf32>
      %122 = vector.shape_cast %121 : vector<8xf32> to vector<8x1xf32>
      %123 = tpu.reciprocal %122 {approx = true} : vector<8x1xf32> -> vector<8x1xf32>
      %124 = vector.broadcast %123 : vector<8x1xf32> to vector<8x8xf32>
      %125 = arith.mulf %120, %124 : vector<8x8xf32>
      %126 = vector.shape_cast %125 : vector<8x8xf32> to vector<8x8x1xf32>
      %127 = arith.extf %100 : vector<8x8x32xbf16> to vector<8x8x32xf32>
      %128 = vector.broadcast %126 : vector<8x8x1xf32> to vector<8x8x32xf32>
      %129 = arith.mulf %128, %127 : vector<8x8x32xf32>
      %cst_87 = arith.constant dense<0.000000e+00> : vector<8x32xf32>
      %130 = vector.multi_reduction <add>, %129, %cst_87 [1] : vector<8x8x32xf32> to vector<8x32xf32>
      %131 = arith.truncf %98 : vector<8x32xf32> to vector<8x32xbf16>
      %c0_88 = arith.constant 0 : index
      %c0_89 = arith.constant 0 : index
      %132 = vector.load %arg17[%c0_88, %c0_89] : memref<32x32xbf16, #tpu.memory_space<vmem>>, vector<32x32xbf16>
      %cst_90 = arith.constant dense<0.000000e+00> : vector<8x32xf32>
      %133 = tpu.matmul %131, %132, %cst_90 {dimension_numbers = #tpu.dot_dimension_numbers<[1], [0], [0], [1], [0, 0, 1, 1], [], []>} : vector<8x32xbf16>, vector<32x32xbf16>, vector<8x32xf32> -> vector<8x32xf32>
      %134 = arith.truncf %130 : vector<8x32xf32> to vector<8x32xbf16>
      %c0_91 = arith.constant 0 : index
      %c0_92 = arith.constant 0 : index
      %135 = vector.load %arg18[%c0_91, %c0_92] : memref<32x32xbf16, #tpu.memory_space<vmem>>, vector<32x32xbf16>
      %cst_93 = arith.constant dense<0.000000e+00> : vector<8x32xf32>
      %136 = tpu.matmul %134, %135, %cst_93 {dimension_numbers = #tpu.dot_dimension_numbers<[1], [0], [0], [1], [0, 0, 1, 1], [], []>} : vector<8x32xbf16>, vector<32x32xbf16>, vector<8x32xf32> -> vector<8x32xf32>
      %137 = arith.addf %133, %136 : vector<8x32xf32>
      %c0_94 = arith.constant 0 : index
      %c0_95 = arith.constant 0 : index
      %138 = vector.load %arg19[%c0_94, %c0_95] : memref<1x32xf32, #tpu.memory_space<vmem>>, vector<1x32xf32>
      %139 = vector.broadcast %138 : vector<1x32xf32> to vector<8x32xf32>
      %140 = arith.addf %137, %139 : vector<8x32xf32>
      %141 = math.tanh %140 : vector<8x32xf32>
      %142 = arith.truncf %141 : vector<8x32xf32> to vector<8x32xbf16>
      %c0_96 = arith.constant 0 : index
      %c0_97 = arith.constant 0 : index
      %143 = vector.load %arg28[%c0_96, %c0_97] : memref<8x32xbf16, #tpu.memory_space<vmem>>, vector<8x32xbf16>
      tpu.vector_store %arg28[%c0_96, %c0_97], %142 {strides = array<i32>} : memref<8x32xbf16, #tpu.memory_space<vmem>>, vector<8x32xbf16>,
      %cst_98 = arith.constant 0xFF800000 : f32
      %144 = vector.broadcast %cst_98 : f32 to vector<8x1xf32>
      %c0_99 = arith.constant 0 : index
      %c0_100 = arith.constant 0 : index
      %145 = vector.load %arg29[%c0_99, %c0_100] : memref<8x1xf32, #tpu.memory_space<vmem>>, vector<8x1xf32>
      tpu.vector_store %arg29[%c0_99, %c0_100], %144 {strides = array<i32>} : memref<8x1xf32, #tpu.memory_space<vmem>>, vector<8x1xf32>,
      %cst_101 = arith.constant 0.000000e+00 : f32
      %146 = vector.broadcast %cst_101 : f32 to vector<8x1xf32>
      %c0_102 = arith.constant 0 : index
      %c0_103 = arith.constant 0 : index
      %147 = vector.load %arg30[%c0_102, %c0_103] : memref<8x1xf32, #tpu.memory_space<vmem>>, vector<8x1xf32>
      tpu.vector_store %arg30[%c0_102, %c0_103], %146 {strides = array<i32>} : memref<8x1xf32, #tpu.memory_space<vmem>>, vector<8x1xf32>,
    } else {
    }
    %c0 = arith.constant 0 : index
    %c0_1 = arith.constant 0 : index
    %3 = vector.load %arg28[%c0, %c0_1] : memref<8x32xbf16, #tpu.memory_space<vmem>>, vector<8x32xbf16>
    %c0_2 = arith.constant 0 : index
    %c0_3 = arith.constant 0 : index
    %4 = vector.load %arg20[%c0_2, %c0_3] : memref<32x128xbf16, #tpu.memory_space<vmem>>, vector<32x128xbf16>
    %cst = arith.constant dense<0.000000e+00> : vector<8x128xf32>
    %5 = tpu.matmul %3, %4, %cst {dimension_numbers = #tpu.dot_dimension_numbers<[1], [0], [0], [1], [0, 0, 1, 1], [], []>} : vector<8x32xbf16>, vector<32x128xbf16>, vector<8x128xf32> -> vector<8x128xf32>
    %c0_4 = arith.constant 0 : index
    %c0_5 = arith.constant 0 : index
    %6 = vector.load %arg21[%c0_4, %c0_5] : memref<1x128xf32, #tpu.memory_space<vmem>>, vector<1x128xf32>
    %7 = vector.broadcast %6 : vector<1x128xf32> to vector<8x128xf32>
    %8 = arith.addf %5, %7 : vector<8x128xf32>
    %c0_6 = arith.constant 0 : index
    %c0_7 = arith.constant 0 : index
    %9 = vector.load %arg22[%c0_6, %c0_7] : memref<8x128xf32, #tpu.memory_space<vmem>>, vector<8x128xf32>
    tpu.vector_store %arg22[%c0_6, %c0_7], %8 {strides = array<i32>} : memref<8x128xf32, #tpu.memory_space<vmem>>, vector<8x128xf32>,
    %c0_8 = arith.constant 0 : index
    %c0_9 = arith.constant 0 : index
    %10 = vector.load %arg29[%c0_8, %c0_9] : memref<8x1xf32, #tpu.memory_space<vmem>>, vector<8x1xf32>
    %cst_10 = arith.constant dense<0xFF800000> : vector<8xf32>
    %11 = vector.multi_reduction <maximumf>, %8, %cst_10 [1] : vector<8x128xf32> to vector<8xf32>
    %12 = vector.shape_cast %11 : vector<8xf32> to vector<8x1xf32>
    %13 = arith.maximumf %10, %12 : vector<8x1xf32>
    %c0_11 = arith.constant 0 : index
    %c0_12 = arith.constant 0 : index
    %14 = vector.load %arg30[%c0_11, %c0_12] : memref<8x1xf32, #tpu.memory_space<vmem>>, vector<8x1xf32>
    %15 = arith.subf %10, %13 : vector<8x1xf32>
    %16 = math.exp %15 : vector<8x1xf32>
    %17 = arith.mulf %14, %16 : vector<8x1xf32>
    %18 = vector.broadcast %13 : vector<8x1xf32> to vector<8x128xf32>
    %19 = arith.subf %8, %18 : vector<8x128xf32>
    %20 = math.exp %19 : vector<8x128xf32>
    %cst_13 = arith.constant dense<0.000000e+00> : vector<8xf32>
    %21 = vector.multi_reduction <add>, %20, %cst_13 [1] : vector<8x128xf32> to vector<8xf32>
    %22 = vector.shape_cast %21 : vector<8xf32> to vector<8x1xf32>
    %23 = arith.addf %17, %22 : vector<8x1xf32>
    %c0_14 = arith.constant 0 : index
    %c0_15 = arith.constant 0 : index
    %24 = vector.load %arg30[%c0_14, %c0_15] : memref<8x1xf32, #tpu.memory_space<vmem>>, vector<8x1xf32>
    tpu.vector_store %arg30[%c0_14, %c0_15], %23 {strides = array<i32>} : memref<8x1xf32, #tpu.memory_space<vmem>>, vector<8x1xf32>,
    %c0_16 = arith.constant 0 : index
    %c0_17 = arith.constant 0 : index
    %25 = vector.load %arg29[%c0_16, %c0_17] : memref<8x1xf32, #tpu.memory_space<vmem>>, vector<8x1xf32>
    tpu.vector_store %arg29[%c0_16, %c0_17], %13 {strides = array<i32>} : memref<8x1xf32, #tpu.memory_space<vmem>>, vector<8x1xf32>,
    %c0_i32_18 = arith.constant 0 : i32
    %26 = arith.cmpi eq, %arg0, %c0_i32_18 : i32
    %27 = arith.extui %26 : i1 to i32
    %c0_i32_19 = arith.constant 0 : i32
    %28 = arith.cmpi ne, %27, %c0_i32_19 : i32
    scf.if %28 {
      %c0_20 = arith.constant 0 : index
      %c0_21 = arith.constant 0 : index
      %29 = vector.load %arg29[%c0_20, %c0_21] : memref<8x1xf32, #tpu.memory_space<vmem>>, vector<8x1xf32>
      %30 = vector.shape_cast %29 : vector<8x1xf32> to vector<8x1xf32>
      %31 = vector.broadcast %30 : vector<8x1xf32> to vector<8x128xf32>
      %c0_22 = arith.constant 0 : index
      %c0_23 = arith.constant 0 : index
      %32 = vector.load %arg23[%c0_22, %c0_23] : memref<8x128xf32, #tpu.memory_space<vmem>>, vector<8x128xf32>
      tpu.vector_store %arg23[%c0_22, %c0_23], %31 {strides = array<i32>} : memref<8x128xf32, #tpu.memory_space<vmem>>, vector<8x128xf32>,
      %c0_24 = arith.constant 0 : index
      %c0_25 = arith.constant 0 : index
      %33 = vector.load %arg30[%c0_24, %c0_25] : memref<8x1xf32, #tpu.memory_space<vmem>>, vector<8x1xf32>
      %34 = vector.shape_cast %33 : vector<8x1xf32> to vector<8x1xf32>
      %35 = vector.broadcast %34 : vector<8x1xf32> to vector<8x128xf32>
      %c0_26 = arith.constant 0 : index
      %c0_27 = arith.constant 0 : index
      %36 = vector.load %arg24[%c0_26, %c0_27] : memref<8x128xf32, #tpu.memory_space<vmem>>, vector<8x128xf32>
      tpu.vector_store %arg24[%c0_26, %c0_27], %35 {strides = array<i32>} : memref<8x128xf32, #tpu.memory_space<vmem>>, vector<8x128xf32>,
    } else {
    }
    return
  }
  func.func @transform_1(%arg0: i32, %arg1: memref<8xi32, #tpu.memory_space<smem>>) -> (i32, i32) {
    %c0_i32 = arith.constant 0 : i32
    %c0_i32_0 = arith.constant 0 : i32
    %c0_i32_1 = arith.constant 0 : i32
    return %c0_i32, %c0_i32_0 : i32, i32
  }
  func.func @transform_2(%arg0: i32, %arg1: memref<8xi32, #tpu.memory_space<smem>>) -> (i32, i32, i32) {
    %c0_i32 = arith.constant 0 : i32
    %c0_i32_0 = arith.constant 0 : i32
    %c0_i32_1 = arith.constant 0 : i32
    %c0_i32_2 = arith.constant 0 : i32
    return %c0_i32, %c0_i32_0, %c0_i32_1 : i32, i32, i32
  }
  func.func @transform_3(%arg0: i32, %arg1: memref<8xi32, #tpu.memory_space<smem>>) -> (i32, i32) {
    %c0_i32 = arith.constant 0 : i32
    %c0_i32_0 = arith.constant 0 : i32
    %c0_i32_1 = arith.constant 0 : i32
    return %c0_i32, %c0_i32_0 : i32, i32
  }
  func.func @transform_4(%arg0: i32, %arg1: memref<8xi32, #tpu.memory_space<smem>>) -> (i32, i32) {
    %c0_i32 = arith.constant 0 : i32
    %c0_i32_0 = arith.constant 0 : i32
    %c0_i32_1 = arith.constant 0 : i32
    return %c0_i32, %c0_i32_0 : i32, i32
  }
  func.func @transform_5(%arg0: i32, %arg1: memref<8xi32, #tpu.memory_space<smem>>) -> (i32, i32) {
    %c0_i32 = arith.constant 0 : i32
    %c0_i32_0 = arith.constant 0 : i32
    %c0_i32_1 = arith.constant 0 : i32
    return %c0_i32, %c0_i32_0 : i32, i32
  }
  func.func @transform_6(%arg0: i32, %arg1: memref<8xi32, #tpu.memory_space<smem>>) -> (i32, i32) {
    %c0_i32 = arith.constant 0 : i32
    %c0_i32_0 = arith.constant 0 : i32
    %c0_i32_1 = arith.constant 0 : i32
    return %c0_i32, %c0_i32_0 : i32, i32
  }
  func.func @transform_7(%arg0: i32, %arg1: memref<8xi32, #tpu.memory_space<smem>>) -> (i32, i32) {
    %c0_i32 = arith.constant 0 : i32
    %c0_i32_0 = arith.constant 0 : i32
    %c0_i32_1 = arith.constant 0 : i32
    return %c0_i32, %c0_i32_0 : i32, i32
  }
  func.func @transform_8(%arg0: i32, %arg1: memref<8xi32, #tpu.memory_space<smem>>) -> (i32, i32) {
    %c0_i32 = arith.constant 0 : i32
    %c0_i32_0 = arith.constant 0 : i32
    %c0_i32_1 = arith.constant 0 : i32
    return %c0_i32, %c0_i32_0 : i32, i32
  }
  func.func @transform_9(%arg0: i32, %arg1: memref<8xi32, #tpu.memory_space<smem>>) -> (i32, i32) {
    %c0_i32 = arith.constant 0 : i32
    %c0_i32_0 = arith.constant 0 : i32
    %c0_i32_1 = arith.constant 0 : i32
    return %c0_i32, %c0_i32_0 : i32, i32
  }
  func.func @transform_10(%arg0: i32, %arg1: memref<8xi32, #tpu.memory_space<smem>>) -> (i32, i32) {
    %c0_i32 = arith.constant 0 : i32
    %c0_i32_0 = arith.constant 0 : i32
    %c0_i32_1 = arith.constant 0 : i32
    return %c0_i32, %c0_i32_0 : i32, i32
  }
  func.func @transform_11(%arg0: i32, %arg1: memref<8xi32, #tpu.memory_space<smem>>) -> (i32, i32) {
    %c0_i32 = arith.constant 0 : i32
    %c0_i32_0 = arith.constant 0 : i32
    %c0_i32_1 = arith.constant 0 : i32
    return %c0_i32, %c0_i32_0 : i32, i32
  }
  func.func @transform_12(%arg0: i32, %arg1: memref<8xi32, #tpu.memory_space<smem>>) -> (i32, i32) {
    %c0_i32 = arith.constant 0 : i32
    %c0_i32_0 = arith.constant 0 : i32
    %c0_i32_1 = arith.constant 0 : i32
    return %c0_i32, %c0_i32_0 : i32, i32
  }
  func.func @transform_13(%arg0: i32, %arg1: memref<8xi32, #tpu.memory_space<smem>>) -> (i32, i32) {
    %c0_i32 = arith.constant 0 : i32
    %c0_i32_0 = arith.constant 0 : i32
    %c0_i32_1 = arith.constant 0 : i32
    return %c0_i32, %c0_i32_0 : i32, i32
  }
  func.func @transform_14(%arg0: i32, %arg1: memref<8xi32, #tpu.memory_space<smem>>) -> (i32, i32) {
    %c0_i32 = arith.constant 0 : i32
    %c0_i32_0 = arith.constant 0 : i32
    %c0_i32_1 = arith.constant 0 : i32
    return %c0_i32, %c0_i32_0 : i32, i32
  }
  func.func @transform_15(%arg0: i32, %arg1: memref<8xi32, #tpu.memory_space<smem>>) -> (i32, i32) {
    %c0_i32 = arith.constant 0 : i32
    %c0_i32_0 = arith.constant 0 : i32
    %c0_i32_1 = arith.constant 0 : i32
    return %c0_i32, %c0_i32_0 : i32, i32
  }
  func.func @transform_16(%arg0: i32, %arg1: memref<8xi32, #tpu.memory_space<smem>>) -> (i32, i32) {
    %c0_i32 = arith.constant 0 : i32
    %c0_i32_0 = arith.constant 0 : i32
    %c0_i32_1 = arith.constant 0 : i32
    return %c0_i32, %c0_i32_0 : i32, i32
  }
  func.func @transform_17(%arg0: i32, %arg1: memref<8xi32, #tpu.memory_space<smem>>) -> (i32, i32) {
    %c0_i32 = arith.constant 0 : i32
    %c0_i32_0 = arith.constant 0 : i32
    %c0_i32_1 = arith.constant 0 : i32
    return %c0_i32, %c0_i32_0 : i32, i32
  }
  func.func @transform_18(%arg0: i32, %arg1: memref<8xi32, #tpu.memory_space<smem>>) -> (i32, i32) {
    %c0_i32 = arith.constant 0 : i32
    %c0_i32_0 = arith.constant 0 : i32
    return %c0_i32, %arg0 : i32, i32
  }
  func.func @transform_19(%arg0: i32, %arg1: memref<8xi32, #tpu.memory_space<smem>>) -> (i32, i32) {
    %c0_i32 = arith.constant 0 : i32
    %c0_i32_0 = arith.constant 0 : i32
    return %c0_i32, %arg0 : i32, i32
  }
  func.func @transform_20(%arg0: i32, %arg1: memref<8xi32, #tpu.memory_space<smem>>) -> (i32, i32) {
    %c0_i32 = arith.constant 0 : i32
    %c0_i32_0 = arith.constant 0 : i32
    return %c0_i32, %arg0 : i32, i32
  }
  func.func @transform_21(%arg0: i32, %arg1: memref<8xi32, #tpu.memory_space<smem>>) -> (i32, i32) {
    %c0_i32 = arith.constant 0 : i32
    %c0_i32_0 = arith.constant 0 : i32
    %c0_i32_1 = arith.constant 0 : i32
    return %c0_i32, %c0_i32_0 : i32, i32
  }
  func.func @transform_22(%arg0: i32, %arg1: memref<8xi32, #tpu.memory_space<smem>>) -> (i32, i32) {
    %c0_i32 = arith.constant 0 : i32
    %c0_i32_0 = arith.constant 0 : i32
    %c0_i32_1 = arith.constant 0 : i32
    return %c0_i32, %c0_i32_0 : i32, i32
  }
  func.func @transform_23(%arg0: i32, %arg1: memref<8xi32, #tpu.memory_space<smem>>) -> (i32, i32) {
    %c0_i32 = arith.constant 0 : i32
    %c0_i32_0 = arith.constant 0 : i32
    %c0_i32_1 = arith.constant 0 : i32
    return %c0_i32, %c0_i32_0 : i32, i32
  }
}

</mosaic_0001>

<llo_original>
// kernel: tpu_custom_call.1
$region0: #{tpu_custom_call.1}
  #allocation0 [shape = 'u32[]', space=smem, size = 0x4, offset = 0x4, fixed_abs, tag = 'smem constant byte address 0x4 - core index']
  #allocation1 [shape = 'u32[144,128]{1,0:T(1,128)}', space=vmem, size = 0x12000, scoped, tag = 'internal scratch']
  #allocation2 [shape = 'f32[8,32]{1,0:T(8,128)}', space=vmem, size = 0x1000, scoped, tag = 'scratch operand']
  #allocation3 [shape = 's32[2]{0}', space=sflag, size = 0x8, scoped, tag = 'scratch operand']
  #allocation4 [shape = 'bf16[8,32]{1,0:T(8,128)(2,1)}', space=vmem, size = 0x800, scoped, tag = 'scratch operand']
  #allocation5 [shape = 'f32[8,1]{1,0:T(8,128)}', space=vmem, size = 0x1000, scoped, tag = 'scratch operand']
  #allocation6 [shape = 'f32[8,1]{1,0:T(8,128)}', space=vmem, size = 0x1000, scoped, tag = 'scratch operand']
  #allocation7 [shape = 's32[1]{0}', space=sflag, size = 0x4, scoped, tag = 'scoped memory for tpu_custom_call.1']
  #allocation8 [shape = 'u8[512]{0}', space=smem, size = 0x200, scoped, tag = 'prefetched SMEM operand 0']
  #allocation29 [shape = 's32[]', space=sflag, size = 0x4, offset = 0, fixed_abs, tag = 'sflag constant byte address 0x0 - dummy sync flag']
  #allocation30 [shape = 's32[]', space=sflag, size = 0x4, offset = 0, fixed_abs, tag = 'sflag constant byte address 0x0 - dummy sync flag']
  %s0 = inlined_call_operand.hbm [shape: s32[8], index: 0, kind: input, shape index: {}]
  %s1 = inlined_call_operand.vmem [shape: f32[64,32], index: 1, kind: input, shape index: {}]
  %s2 = inlined_call_operand.hbm [shape: f32[8,32], index: 2, kind: input, shape index: {}]
  %s3 = inlined_call_operand.vmem [shape: bf16[8,8,32], index: 3, kind: input, shape index: {}]
  %s4 = inlined_call_operand.vmem [shape: bf16[32,32], index: 4, kind: input, shape index: {}]
  %s5 = inlined_call_operand.vmem [shape: bf16[32,32], index: 5, kind: input, shape index: {}]
  %s6 = inlined_call_operand.vmem [shape: bf16[32,32], index: 6, kind: input, shape index: {}]
  %s7 = inlined_call_operand.vmem [shape: bf16[32,32], index: 7, kind: input, shape index: {}]
  %s8 = inlined_call_operand.vmem [shape: bf16[32,32], index: 8, kind: input, shape index: {}]
  %s9 = inlined_call_operand.vmem [shape: bf16[32,32], index: 9, kind: input, shape index: {}]
  %s10 = inlined_call_operand.hbm [shape: f32[1,32], index: 10, kind: input, shape index: {}]
  %s11 = inlined_call_operand.hbm [shape: f32[1,32], index: 11, kind: input, shape index: {}]
  %s12 = inlined_call_operand.hbm [shape: f32[1,32], index: 12, kind: input, shape index: {}]
  %s13 = inlined_call_operand.hbm [shape: f32[1,32], index: 13, kind: input, shape index: {}]
  %s14 = inlined_call_operand.vmem [shape: bf16[32,32], index: 14, kind: input, shape index: {}]
  %s15 = inlined_call_operand.hbm [shape: f32[1,32], index: 15, kind: input, shape index: {}]
  %s16 = inlined_call_operand.hbm [shape: bf16[32,32], index: 16, kind: input, shape index: {}]
  %s17 = inlined_call_operand.vmem [shape: bf16[32,32], index: 17, kind: input, shape index: {}]
  %s18 = inlined_call_operand.vmem [shape: f32[1,32], index: 18, kind: input, shape index: {}]
  %s19 = inlined_call_operand.hbm [shape: bf16[32,128], index: 19, kind: input, shape index: {}]
  %s20 = inlined_call_operand.vmem [shape: f32[1,128], index: 20, kind: input, shape index: {}]
  %s21 = inlined_call_operand.hbm [shape: f32[8,128], index: 21, kind: output, shape index: {0}]
  %s22 = inlined_call_operand.hbm [shape: f32[8,128], index: 22, kind: output, shape index: {1}]
  %s23 = inlined_call_operand.hbm [shape: f32[8,128], index: 23, kind: output, shape index: {2}]
  %s24 = inlined_call_operand.hbm [shape: f32[8,32], index: 24, kind: output, shape index: {3}]
  %25 = xla_tuple %s21, %s22, %s23, %s24
  %s26 = sld [smem:[#allocation0]]
  $region210: #{tpu_custom_call.1} parent=0
    _
  %s28 = ssub.s32 1, %s26
  %s29 = scalar_select 0, %s28, %s26
  %31 = dma.hbm_to_smem %s0, 16, [#allocation8], [#allocation7]
  %32 = dma.done [#allocation7], 16
  %33 = sfence
  $region1: #{tpu_custom_call.1} parent=0
    #allocation9 [shape = 'u8[4096]{0}', space=vmem, size = 0x1000, scoped, tag = 'input window, operand 2, single buffered']
    #allocation10 [shape = 's32[1]{0}', space=sflag, size = 0x4, scoped, tag = 'scoped memory for tpu_custom_call.1']
    #allocation11 [shape = 's32[1]{0}', space=sflag, size = 0x4, scoped, tag = 'scoped memory for tpu_custom_call.1']
    #allocation12 [shape = 'u8[512]{0}', space=vmem, size = 0x400, scoped, tag = 'input window, operand 10, single buffered']
    #allocation13 [shape = 's32[1]{0}', space=sflag, size = 0x4, scoped, tag = 'scoped memory for tpu_custom_call.1']
    #allocation14 [shape = 'u8[512]{0}', space=vmem, size = 0x400, scoped, tag = 'input window, operand 11, single buffered']
    #allocation15 [shape = 'u8[512]{0}', space=vmem, size = 0x400, scoped, tag = 'input window, operand 12, single buffered']
    #allocation16 [shape = 's32[1]{0}', space=sflag, size = 0x4, scoped, tag = 'scoped memory for tpu_custom_call.1']
    #allocation17 [shape = 'u8[512]{0}', space=vmem, size = 0x400, scoped, tag = 'input window, operand 13, single buffered']
    #allocation18 [shape = 'u8[512]{0}', space=vmem, size = 0x400, scoped, tag = 'input window, operand 15, single buffered']
    #allocation19 [shape = 's32[1]{0}', space=sflag, size = 0x4, scoped, tag = 'scoped memory for tpu_custom_call.1']
    #allocation20 [shape = 'u8[8192]{0}', space=vmem, size = 0x2000, scoped, tag = 'input window, operand 16, single buffered']
    #allocation21 [shape = 'u8[8192]{0}', space=vmem, size = 0x2000, scoped, tag = 'input window, operand 19, single buffered']
    #allocation22 [shape = 's32[1]{0}', space=sflag, size = 0x4, scoped, tag = 'scoped memory for tpu_custom_call.1']
    #allocation23 [shape = 'u8[4096]{0}', space=vmem, size = 0x1000, scoped, tag = 'output window, operand 0, single buffered']
    #allocation24 [shape = 'u8[4096]{0}', space=vmem, size = 0x1000, scoped, tag = 'output window, operand 1, single buffered']
    #allocation25 [shape = 's32[1]{0}', space=sflag, size = 0x4, scoped, tag = 'scoped memory for tpu_custom_call.1']
    #allocation26 [shape = 'u8[4096]{0}', space=vmem, size = 0x1000, scoped, tag = 'output window, operand 2, single buffered']
    #allocation27 [shape = 'u8[4096]{0}', space=vmem, size = 0x1000, scoped, tag = 'output window, operand 3, single buffered']
    #allocation28 [shape = 's32[1]{0}', space=sflag, size = 0x4, scoped, tag = 'scoped memory for tpu_custom_call.1']
    %34 = vsyncpa [#allocation10], 0
    %35 = vsyncpa [#allocation13], 0
    %36 = vsyncpa [#allocation16], 0
    %37 = vsyncpa [#allocation19], 0
    %38 = vsyncpa [#allocation22], 0
    %39 = vsyncpa [#allocation11], 0
    %40 = vsyncpa [#allocation25], 0
    %41 = vsyncpa [#allocation28], 0
    // Predicated region
    $region2: #{tpu_custom_call.1} parent=1 // pred_check
      _
    $region3: #{tpu_custom_call.1} parent=1 // pred_check_branch
      %43 = sbr.rel (0) target = $region5
    $region4: #{tpu_custom_call.1} parent=1 // pred_region
      %s45 = ssub.s32 128, 128
      %46 = vsyncadd [#allocation10], %s45
      %s48 = sshll.u32 [#allocation9], 4
      %s49 = int_to_ptr.vmem [resolvable:$true] %s48
      %51 = dma.hbm_to_vmem [thread:$0]  %s2, 128, %s49, [#allocation10]
    $region5: #{tpu_custom_call.1} parent=1 // pred_fallthru
      _
    // Predicated region
    $region6: #{tpu_custom_call.1} parent=1 // pred_check
      _
    $region7: #{tpu_custom_call.1} parent=1 // pred_check_branch
      %53 = sbr.rel (0) target = $region9
    $region8: #{tpu_custom_call.1} parent=1 // pred_region
      _
    $region9: #{tpu_custom_call.1} parent=1 // pred_fallthru
      _
    // Predicated region
    $region10: #{tpu_custom_call.1} parent=1 // pred_check
      _
    $region11: #{tpu_custom_call.1} parent=1 // pred_check_branch
      %55 = sbr.rel (0) target = $region13
    $region12: #{tpu_custom_call.1} parent=1 // pred_region
      _
    $region13: #{tpu_custom_call.1} parent=1 // pred_fallthru
      _
    // Predicated region
    $region14: #{tpu_custom_call.1} parent=1 // pred_check
      _
    $region15: #{tpu_custom_call.1} parent=1 // pred_check_branch
      %57 = sbr.rel (0) target = $region17
    $region16: #{tpu_custom_call.1} parent=1 // pred_region
      _
    $region17: #{tpu_custom_call.1} parent=1 // pred_fallthru
      _
    // Predicated region
    $region18: #{tpu_custom_call.1} parent=1 // pred_check
      _
    $region19: #{tpu_custom_call.1} parent=1 // pred_check_branch
      %59 = sbr.rel (0) target = $region21
    $region20: #{tpu_custom_call.1} parent=1 // pred_region
      _
    $region21: #{tpu_custom_call.1} parent=1 // pred_fallthru
      _
    // Predicated region
    $region22: #{tpu_custom_call.1} parent=1 // pred_check
      _
    $region23: #{tpu_custom_call.1} parent=1 // pred_check_branch
      %61 = sbr.rel (0) target = $region25
    $region24: #{tpu_custom_call.1} parent=1 // pred_region
      _
    $region25: #{tpu_custom_call.1} parent=1 // pred_fallthru
      _
    // Predicated region
    $region26: #{tpu_custom_call.1} parent=1 // pred_check
      _
    $region27: #{tpu_custom_call.1} parent=1 // pred_check_branch
      %63 = sbr.rel (0) target = $region29
    $region28: #{tpu_custom_call.1} parent=1 // pred_region
      _
    $region29: #{tpu_custom_call.1} parent=1 // pred_fallthru
      _
    // Predicated region
    $region30: #{tpu_custom_call.1} parent=1 // pred_check
      _
    $region31: #{tpu_custom_call.1} parent=1 // pred_check_branch
      %65 = sbr.rel (0) target = $region33
    $region32: #{tpu_custom_call.1} parent=1 // pred_region
      _
    $region33: #{tpu_custom_call.1} parent=1 // pred_fallthru
      _
    // Predicated region
    $region34: #{tpu_custom_call.1} parent=1 // pred_check
      _
    $region35: #{tpu_custom_call.1} parent=1 // pred_check_branch
      %67 = sbr.rel (0) target = $region37
    $region36: #{tpu_custom_call.1} parent=1 // pred_region
      %s69 = ssub.s32 16, 16
      %70 = vsyncadd [#allocation13], %s69
      %s72 = sshll.u32 [#allocation12], 4
      %s73 = int_to_ptr.vmem [resolvable:$true] %s72
      %75 = dma.hbm_to_vmem [thread:$0]  %s10, 16, %s73, [#allocation13]
    $region37: #{tpu_custom_call.1} parent=1 // pred_fallthru
      _
    // Predicated region
    $region38: #{tpu_custom_call.1} parent=1 // pred_check
      _
    $region39: #{tpu_custom_call.1} parent=1 // pred_check_branch
      %77 = sbr.rel (0) target = $region41
    $region40: #{tpu_custom_call.1} parent=1 // pred_region
      %s79 = ssub.s32 16, 16
      %80 = vsyncadd [#allocation13], %s79
      %s82 = sshll.u32 [#allocation14], 4
      %s83 = int_to_ptr.vmem [resolvable:$true] %s82
      %85 = dma.hbm_to_vmem [thread:$0]  %s11, 16, %s83, [#allocation13]
    $region41: #{tpu_custom_call.1} parent=1 // pred_fallthru
      _
    // Predicated region
    $region42: #{tpu_custom_call.1} parent=1 // pred_check
      _
    $region43: #{tpu_custom_call.1} parent=1 // pred_check_branch
      %87 = sbr.rel (0) target = $region45
    $region44: #{tpu_custom_call.1} parent=1 // pred_region
      %s89 = ssub.s32 16, 16
      %90 = vsyncadd [#allocation16], %s89
      %s92 = sshll.u32 [#allocation15], 4
      %s93 = int_to_ptr.vmem [resolvable:$true] %s92
      %95 = dma.hbm_to_vmem [thread:$0]  %s12, 16, %s93, [#allocation16]
    $region45: #{tpu_custom_call.1} parent=1 // pred_fallthru
      _
    // Predicated region
    $region46: #{tpu_custom_call.1} parent=1 // pred_check
      _
    $region47: #{tpu_custom_call.1} parent=1 // pred_check_branch
      %97 = sbr.rel (0) target = $region49
    $region48: #{tpu_custom_call.1} parent=1 // pred_region
      %s99 = ssub.s32 16, 16
      %100 = vsyncadd [#allocation16], %s99
      %s102 = sshll.u32 [#allocation17], 4
      %s103 = int_to_ptr.vmem [resolvable:$true] %s102
      %105 = dma.hbm_to_vmem [thread:$0]  %s13, 16, %s103, [#allocation16]
    $region49: #{tpu_custom_call.1} parent=1 // pred_fallthru
      _
    // Predicated region
    $region50: #{tpu_custom_call.1} parent=1 // pred_check
      _
    $region51: #{tpu_custom_call.1} parent=1 // pred_check_branch
      %107 = sbr.rel (0) target = $region53
    $region52: #{tpu_custom_call.1} parent=1 // pred_region
      _
    $region53: #{tpu_custom_call.1} parent=1 // pred_fallthru
      _
    // Predicated region
    $region54: #{tpu_custom_call.1} parent=1 // pred_check
      _
    $region55: #{tpu_custom_call.1} parent=1 // pred_check_branch
      %109 = sbr.rel (0) target = $region57
    $region56: #{tpu_custom_call.1} parent=1 // pred_region
      %s111 = ssub.s32 16, 16
      %112 = vsyncadd [#allocation19], %s111
      %s114 = sshll.u32 [#allocation18], 4
      %s115 = int_to_ptr.vmem [resolvable:$true] %s114
      %117 = dma.hbm_to_vmem [thread:$0]  %s15, 16, %s115, [#allocation19]
    $region57: #{tpu_custom_call.1} parent=1 // pred_fallthru
      _
    // Predicated region
    $region58: #{tpu_custom_call.1} parent=1 // pred_check
      _
    $region59: #{tpu_custom_call.1} parent=1 // pred_check_branch
      %119 = sbr.rel (0) target = $region61
    $region60: #{tpu_custom_call.1} parent=1 // pred_region
      %s121 = ssub.s32 256, 256
      %122 = vsyncadd [#allocation19], %s121
      %s123 = sshll.u32 [#allocation20], 4
      %s124 = int_to_ptr.vmem [resolvable:$true] %s123
      %129 = dma.hbm_to_vmem [thread:$0]  %s16, 256, %s124, [#allocation19], 64, 64, 4
    $region61: #{tpu_custom_call.1} parent=1 // pred_fallthru
      _
    // Predicated region
    $region62: #{tpu_custom_call.1} parent=1 // pred_check
      _
    $region63: #{tpu_custom_call.1} parent=1 // pred_check_branch
      %131 = sbr.rel (0) target = $region65
    $region64: #{tpu_custom_call.1} parent=1 // pred_region
      _
    $region65: #{tpu_custom_call.1} parent=1 // pred_fallthru
      _
    // Predicated region
    $region66: #{tpu_custom_call.1} parent=1 // pred_check
      _
    $region67: #{tpu_custom_call.1} parent=1 // pred_check_branch
      %133 = sbr.rel (0) target = $region69
    $region68: #{tpu_custom_call.1} parent=1 // pred_region
      _
    $region69: #{tpu_custom_call.1} parent=1 // pred_fallthru
      _
    // Predicated region
    $region70: #{tpu_custom_call.1} parent=1 // pred_check
      _
    $region71: #{tpu_custom_call.1} parent=1 // pred_check_branch
      %135 = sbr.rel (0) target = $region73
    $region72: #{tpu_custom_call.1} parent=1 // pred_region
      %s137 = ssub.s32 256, 256
      %138 = vsyncadd [#allocation22], %s137
      %s139 = sshll.u32 [#allocation21], 4
      %s140 = int_to_ptr.vmem [resolvable:$true] %s139
      %145 = dma.hbm_to_vmem [thread:$0]  %s19, 256, %s140, [#allocation22], 64, 64, 4
    $region73: #{tpu_custom_call.1} parent=1 // pred_fallthru
      _
    // Predicated region
    $region74: #{tpu_custom_call.1} parent=1 // pred_check
      _
    $region75: #{tpu_custom_call.1} parent=1 // pred_check_branch
      %147 = sbr.rel (0) target = $region77
    $region76: #{tpu_custom_call.1} parent=1 // pred_region
      _
    $region77: #{tpu_custom_call.1} parent=1 // pred_fallthru
      _
    // Predicated region
    $region78: #{tpu_custom_call.1} parent=1 // pred_check
      _
    $region79: #{tpu_custom_call.1} parent=1 // pred_check_branch
      %149 = sbr.rel (0) target = $region81
    $region80: #{tpu_custom_call.1} parent=1 // pred_region
      %150 = dma.done [#allocation10], 128
    $region81: #{tpu_custom_call.1} parent=1 // pred_fallthru
      _
    // Predicated region
    $region82: #{tpu_custom_call.1} parent=1 // pred_check
      _
    $region83: #{tpu_custom_call.1} parent=1 // pred_check_branch
      %152 = sbr.rel (0) target = $region85
    $region84: #{tpu_custom_call.1} parent=1 // pred_region
      %153 = dma.done [#allocation13], 16
    $region85: #{tpu_custom_call.1} parent=1 // pred_fallthru
      _
    // Predicated region
    $region86: #{tpu_custom_call.1} parent=1 // pred_check
      _
    $region87: #{tpu_custom_call.1} parent=1 // pred_check_branch
      %155 = sbr.rel (0) target = $region89
    $region88: #{tpu_custom_call.1} parent=1 // pred_region
      %156 = dma.done [#allocation13], 16
    $region89: #{tpu_custom_call.1} parent=1 // pred_fallthru
      _
    // Predicated region
    $region90: #{tpu_custom_call.1} parent=1 // pred_check
      _
    $region91: #{tpu_custom_call.1} parent=1 // pred_check_branch
      %158 = sbr.rel (0) target = $region93
    $region92: #{tpu_custom_call.1} parent=1 // pred_region
      %159 = dma.done [#allocation16], 16
    $region93: #{tpu_custom_call.1} parent=1 // pred_fallthru
      _
    // Predicated region
    $region94: #{tpu_custom_call.1} parent=1 // pred_check
      _
    $region95: #{tpu_custom_call.1} parent=1 // pred_check_branch
      %161 = sbr.rel (0) target = $region97
    $region96: #{tpu_custom_call.1} parent=1 // pred_region
      %162 = dma.done [#allocation16], 16
    $region97: #{tpu_custom_call.1} parent=1 // pred_fallthru
      _
    // Predicated region
    $region98: #{tpu_custom_call.1} parent=1 // pred_check
      _
    $region99: #{tpu_custom_call.1} parent=1 // pred_check_branch
      %164 = sbr.rel (0) target = $region101
    $region100: #{tpu_custom_call.1} parent=1 // pred_region
      %165 = dma.done [#allocation19], 16
    $region101: #{tpu_custom_call.1} parent=1 // pred_fallthru
      _
    // Predicated region
    $region102: #{tpu_custom_call.1} parent=1 // pred_check
      _
    $region103: #{tpu_custom_call.1} parent=1 // pred_check_branch
      %167 = sbr.rel (0) target = $region105
    $region104: #{tpu_custom_call.1} parent=1 // pred_region
      %168 = dma.done [#allocation19], 256
    $region105: #{tpu_custom_call.1} parent=1 // pred_fallthru
      _
    // Predicated region
    $region106: #{tpu_custom_call.1} parent=1 // pred_check
      _
    $region107: #{tpu_custom_call.1} parent=1 // pred_check_branch
      %170 = sbr.rel (0) target = $region109
    $region108: #{tpu_custom_call.1} parent=1 // pred_region
      %171 = dma.done [#allocation22], 256
    $region109: #{tpu_custom_call.1} parent=1 // pred_fallthru
      _
    %p173 = scmp.eq.s32.totalorder 0, 0
    // Predicated region
    $region110: #{tpu_custom_call.1} parent=1 // pred_check
      %p174 = pneg %p173
    $region111: #{tpu_custom_call.1} parent=1 // pred_check_branch
      %176 = sbr.rel (%p174) target = $region113
    $region112: #{tpu_custom_call.1} parent=1 // pred_region
      %vm177 = vcmask 259072
      %178 = vst.msk [vmem:[#allocation2 + $0x2] sm:$0x3f] %vm177, 0.0
      %s179 = sld [smem:[#allocation8]]
      %s180 = scalar_lea.vmem %s1, %s179
      %p182 = scmp.lt.u32.totalorder 1, 8
      %p183 = pneg %p182
      // Predicated region
      $region114: #{tpu_custom_call.1} parent=112 // pred_check
        _
      $region115: #{tpu_custom_call.1} parent=112 // pred_check_branch
        %185 = sbr.rel (%p182) target = $region117
      $region116: #{tpu_custom_call.1} parent=112 // pred_region
        %s200 = sand.u32 1, 7
        %p201 = scmp.eq.s32.totalorder %s200, 0
        %p202 = pneg %p201
        // Predicated region
        $region129: #{tpu_custom_call.1} parent=116 // pred_check
          _
        $region130: #{tpu_custom_call.1} parent=116 // pred_check_branch
          %204 = sbr.rel (%p201) target = $region132
        $region131: #{tpu_custom_call.1} parent=116 // pred_region
          %s205 = sand.u32 1, 7
          %s206 = ssub.s32 1, %s205
          %s207 = scalar_lea.vmem %s180, %s206
          %s208 = ssub.s32 1, %s205
          %s209 = scalar_lea.vmem [#allocation2], %s208
          %s210 = sshllo.u32 0, %s205
          loop: start=0, step=1, limit=1
          $region133: #{tpu_custom_call.1} parent=131 // loop_pre_header
            _
          $region134: #{tpu_custom_call.1} parent=131 // loop_header
            %s212 = sphi 0, %s216
            %p213 = scmp.ge.s32.totalorder %s212, 1
            %s217 = sphi %s207, %s207
            %s218 = sphi %s209, %s209
          $region135: #{tpu_custom_call.1} parent=131 // loop_header_branch
            %215 = sbr.rel (%p213) target = $region139
          $region136: #{tpu_custom_call.1} parent=131 // loop_body
            %v219 = vld [vmem:[%s217] sm:%s210]
            %220 = vst [vmem:[%s218] sm:%s210] %v219
          $region137: #{tpu_custom_call.1} parent=131 // loop_footer
            %s216 = sadd.s32 1, %s212
          $region138: #{tpu_custom_call.1} parent=131 // loop_footer_branch
            %211 = sbr.rel target = $region134
          $region139: #{tpu_custom_call.1} parent=131 // loop_exit
            _
        $region132: #{tpu_custom_call.1} parent=116 // pred_fallthru
          _
      $region117: #{tpu_custom_call.1} parent=112 // pred_fallthru
        _
      // Predicated region
      $region118: #{tpu_custom_call.1} parent=112 // pred_check
        %p186 = pneg %p182
      $region119: #{tpu_custom_call.1} parent=112 // pred_check_branch
        %188 = sbr.rel (%p186) target = $region121
      $region120: #{tpu_custom_call.1} parent=112 // pred_region
        %s189 = sshllo.u32 0, 1
        loop: start=0, step=1, limit=1
        $region122: #{tpu_custom_call.1} parent=120 // loop_pre_header
          _
        $region123: #{tpu_custom_call.1} parent=120 // loop_header
          %s191 = sphi 0, %s195
          %p192 = scmp.ge.s32.totalorder %s191, 1
          %s196 = sphi %s180, %s180
          %s197 = sphi [#allocation2], [#allocation2]
        $region124: #{tpu_custom_call.1} parent=120 // loop_header_branch
          %194 = sbr.rel (%p192) target = $region128
        $region125: #{tpu_custom_call.1} parent=120 // loop_body
          %v198 = vld [vmem:[%s196] sm:%s189]
          %199 = vst [vmem:[%s197] sm:%s189] %v198
        $region126: #{tpu_custom_call.1} parent=120 // loop_footer
          %s195 = sadd.s32 1, %s191
        $region127: #{tpu_custom_call.1} parent=120 // loop_footer_branch
          %190 = sbr.rel target = $region123
        $region128: #{tpu_custom_call.1} parent=120 // loop_exit
          _
      $region121: #{tpu_custom_call.1} parent=112 // pred_fallthru
        _
      // Predicated region
      $region140: #{tpu_custom_call.1} parent=112 // pred_check
        _
      $region141: #{tpu_custom_call.1} parent=112 // pred_check_branch
        %223 = sbr.rel (0) target = $region143
      $region142: #{tpu_custom_call.1} parent=112 // pred_region
        %224 = vsyncadd [#allocation3], 16
      $region143: #{tpu_custom_call.1} parent=112 // pred_fallthru
        _
      %s225 = sld [smem:[#allocation8 + $0x1]]
      %s226 = scalar_lea.vmem %s1, %s225
      %s227 = scalar_lea.vmem [#allocation2], 1
      %s228 = scalar_lea.sflag [#allocation3], 1
      %p230 = scmp.lt.u32.totalorder 1, 8
      %p231 = pneg %p230
      // Predicated region
      $region144: #{tpu_custom_call.1} parent=112 // pred_check
        _
      $region145: #{tpu_custom_call.1} parent=112 // pred_check_branch
        %233 = sbr.rel (%p230) target = $region147
      $region146: #{tpu_custom_call.1} parent=112 // pred_region
        %s248 = sand.u32 1, 7
        %p249 = scmp.eq.s32.totalorder %s248, 0
        %p250 = pneg %p249
        // Predicated region
        $region159: #{tpu_custom_call.1} parent=146 // pred_check
          _
        $region160: #{tpu_custom_call.1} parent=146 // pred_check_branch
          %252 = sbr.rel (%p249) target = $region162
        $region161: #{tpu_custom_call.1} parent=146 // pred_region
          %s253 = sand.u32 1, 7
          %s254 = ssub.s32 1, %s253
          %s255 = scalar_lea.vmem %s226, %s254
          %s256 = ssub.s32 1, %s253
          %s257 = scalar_lea.vmem %s227, %s256 [#allocation2]
          %s258 = sshllo.u32 0, %s253
          loop: start=0, step=1, limit=1
          $region163: #{tpu_custom_call.1} parent=161 // loop_pre_header
            _
          $region164: #{tpu_custom_call.1} parent=161 // loop_header
            %s260 = sphi 0, %s264
            %p261 = scmp.ge.s32.totalorder %s260, 1
            %s265 = sphi %s255, %s255
            %s266 = sphi %s257, %s257
          $region165: #{tpu_custom_call.1} parent=161 // loop_header_branch
            %263 = sbr.rel (%p261) target = $region169
          $region166: #{tpu_custom_call.1} parent=161 // loop_body
            %v267 = vld [vmem:[%s265] sm:%s258]
            %268 = vst [vmem:[%s266] sm:%s258] %v267
          $region167: #{tpu_custom_call.1} parent=161 // loop_footer
            %s264 = sadd.s32 1, %s260
          $region168: #{tpu_custom_call.1} parent=161 // loop_footer_branch
            %259 = sbr.rel target = $region164
          $region169: #{tpu_custom_call.1} parent=161 // loop_exit
            _
        $region162: #{tpu_custom_call.1} parent=146 // pred_fallthru
          _
      $region147: #{tpu_custom_call.1} parent=112 // pred_fallthru
        _
      // Predicated region
      $region148: #{tpu_custom_call.1} parent=112 // pred_check
        %p234 = pneg %p230
      $region149: #{tpu_custom_call.1} parent=112 // pred_check_branch
        %236 = sbr.rel (%p234) target = $region151
      $region150: #{tpu_custom_call.1} parent=112 // pred_region
        %s237 = sshllo.u32 0, 1
        loop: start=0, step=1, limit=1
        $region152: #{tpu_custom_call.1} parent=150 // loop_pre_header
          _
        $region153: #{tpu_custom_call.1} parent=150 // loop_header
          %s239 = sphi 0, %s243
          %p240 = scmp.ge.s32.totalorder %s239, 1
          %s244 = sphi %s226, %s226
          %s245 = sphi %s227, %s227
        $region154: #{tpu_custom_call.1} parent=150 // loop_header_branch
          %242 = sbr.rel (%p240) target = $region158
        $region155: #{tpu_custom_call.1} parent=150 // loop_body
          %v246 = vld [vmem:[%s244] sm:%s237]
          %247 = vst [vmem:[%s245] sm:%s237] %v246
        $region156: #{tpu_custom_call.1} parent=150 // loop_footer
          %s243 = sadd.s32 1, %s239
        $region157: #{tpu_custom_call.1} parent=150 // loop_footer_branch
          %238 = sbr.rel target = $region153
        $region158: #{tpu_custom_call.1} parent=150 // loop_exit
          _
      $region151: #{tpu_custom_call.1} parent=112 // pred_fallthru
        _
      // Predicated region
      $region170: #{tpu_custom_call.1} parent=112 // pred_check
        _
      $region171: #{tpu_custom_call.1} parent=112 // pred_check_branch
        %271 = sbr.rel (0) target = $region173
      $region172: #{tpu_custom_call.1} parent=112 // pred_region
        %272 = vsyncadd %s228, 16
      $region173: #{tpu_custom_call.1} parent=112 // pred_fallthru
        _
      %s273 = sld [smem:[#allocation8]]
      %s274 = smul.u32 1, 1
      %s275 = sshll.u32 %s274, 4
      %276 = dma.done [#allocation3], %s275
      %s277 = sld [smem:[#allocation8 + $0x1]]
      %s278 = sshll.u32 %s274, 4
      %279 = dma.done %s228, %s278
      %v280 = vld [vmem:[#allocation2] sm:$0xff]
      %v281 = vpack.c.bf16 %v280, %v280
      %v282 = vld [vmem:[#allocation9] sm:$0xff]
      %v283 = vpack.c.bf16 %v282, %v282
      %v284 = vld [vmem:[%s4] sm:$0xf]
      %v285 = vld [vmem:[%s4 + $0x4] sm:$0xf]
      %v286 = vld [vmem:[%s4 + $0x8] sm:$0xf]
      %v287 = vld [vmem:[%s4 + $0xc] sm:$0xf]
      %v288 = vld [vmem:[%s7] sm:$0xf]
      %v289 = vld [vmem:[%s7 + $0x4] sm:$0xf]
      %v290 = vld [vmem:[%s7 + $0x8] sm:$0xf]
      %v291 = vld [vmem:[%s7 + $0xc] sm:$0xf]
      %v296 = vunpack.c.l.b16 %v288
      %v297 = vunpack.c.l.b16 %v289
      %v298 = vunpack.c.l.b16 %v290
      %v299 = vunpack.c.l.b16 %v291
      %v300 = vpack.c.b16 %v297, %v296
      %v301 = vpack.c.b16 %v299, %v298
      %vm304 = vcmask 261120
      %v306 = vsel %vm304, %v283, 0
      %308 = vmatprep.subr.bf16.mxu0 0
      %309 = vmatpush1.bf16.msra.mxu0 %v300
      %310 = vmatprep.subr.bf16.mxu0 0
      %311 = vmatpush1.bf16.msra.mxu0 %v301
      %312 = vmatprep.subr.bf16.mxu0 0
      %313 = vmatpush1.bf16.msra.mxu0 0
      %314 = vmatprep.subr.bf16.mxu0 0
      %315 = vmatpush1.bf16.msra.mxu0 0
      %316 = vmatprep.subr.bf16.mxu0 0
      %317 = vmatpush1.bf16.msra.mxu0 0
      %318 = vmatprep.subr.bf16.mxu0 0
      %319 = vmatpush1.bf16.msra.mxu0 0
      %320 = vmatprep.subr.bf16.mxu0 0
      %321 = vmatpush1.bf16.msra.mxu0 0
      %322 = vmatprep.subr.bf16.mxu0 0
      %323 = vmatpush1.bf16.msra.mxu0 0
      %324 = vmatprep.subr.bf16.mxu0 0
      %325 = vmatpush1.bf16.msra.mxu0 0
      %326 = vmatprep.subr.bf16.mxu0 0
      %327 = vmatpush1.bf16.msra.mxu0 0
      %328 = vmatprep.subr.bf16.mxu0 0
      %329 = vmatpush1.bf16.msra.mxu0 0
      %330 = vmatprep.subr.bf16.mxu0 0
      %331 = vmatpush1.bf16.msra.mxu0 0
      %332 = vmatprep.subr.bf16.mxu0 0
      %333 = vmatpush1.bf16.msra.mxu0 0
      %334 = vmatprep.subr.bf16.mxu0 0
      %335 = vmatpush1.bf16.msra.mxu0 0
      %336 = vmatprep.subr.bf16.mxu0 0
      %337 = vmatpush1.bf16.msra.mxu0 0
      %338 = vmatprep.subr.bf16.mxu0 0
      %339 = vmatpush1.bf16.msra.mxu0 0
      %340 = vmatprep.mubr.bf16.mxu0 0
      %341 = vmatmul.mubr.bf16.gmra.mrb[0].mxu0 %v306
      %v342 = vpop.f32.mrb[0].mxu0
      %v343 = vadd.f32 0.0, %v342
      %v344 = vpop.f32.mrb[0].mxu0
      %v345 = vpop.f32.mrb[0].mxu0
      %v346 = vpop.f32.mrb[0].mxu0
      %347 = vdwg.mxu0
      %v352 = vunpack.c.l.b16 %v284
      %v353 = vunpack.c.l.b16 %v285
      %v354 = vunpack.c.l.b16 %v286
      %v355 = vunpack.c.l.b16 %v287
      %v356 = vpack.c.b16 %v353, %v352
      %v357 = vpack.c.b16 %v355, %v354
      %v361 = vsel %vm304, %v281, 0
      %363 = vmatprep.subr.bf16.mxu0 0
      %364 = vmatpush1.bf16.msra.mxu0 %v356
      %365 = vmatprep.subr.bf16.mxu0 0
      %366 = vmatpush1.bf16.msra.mxu0 %v357
      %367 = vmatprep.subr.bf16.mxu0 0
      %368 = vmatpush1.bf16.msra.mxu0 0
      %369 = vmatprep.subr.bf16.mxu0 0
      %370 = vmatpush1.bf16.msra.mxu0 0
      %371 = vmatprep.subr.bf16.mxu0 0
      %372 = vmatpush1.bf16.msra.mxu0 0
      %373 = vmatprep.subr.bf16.mxu0 0
      %374 = vmatpush1.bf16.msra.mxu0 0
      %375 = vmatprep.subr.bf16.mxu0 0
      %376 = vmatpush1.bf16.msra.mxu0 0
      %377 = vmatprep.subr.bf16.mxu0 0
      %378 = vmatpush1.bf16.msra.mxu0 0
      %379 = vmatprep.subr.bf16.mxu0 0
      %380 = vmatpush1.bf16.msra.mxu0 0
      %381 = vmatprep.subr.bf16.mxu0 0
      %382 = vmatpush1.bf16.msra.mxu0 0
      %383 = vmatprep.subr.bf16.mxu0 0
      %384 = vmatpush1.bf16.msra.mxu0 0
      %385 = vmatprep.subr.bf16.mxu0 0
      %386 = vmatpush1.bf16.msra.mxu0 0
      %387 = vmatprep.subr.bf16.mxu0 0
      %388 = vmatpush1.bf16.msra.mxu0 0
      %389 = vmatprep.subr.bf16.mxu0 0
      %390 = vmatpush1.bf16.msra.mxu0 0
      %391 = vmatprep.subr.bf16.mxu0 0
      %392 = vmatpush1.bf16.msra.mxu0 0
      %393 = vmatprep.subr.bf16.mxu0 0
      %394 = vmatpush1.bf16.msra.mxu0 0
      %395 = vmatprep.mubr.bf16.mxu0 0
      %396 = vmatmul.mubr.bf16.gmra.mrb[0].mxu0 %v361
      %v397 = vpop.f32.mrb[0].mxu0
      %v398 = vadd.f32 %v343, %v397
      %v399 = vpop.f32.mrb[0].mxu0
      %v400 = vpop.f32.mrb[0].mxu0
      %v401 = vpop.f32.mrb[0].mxu0
      %402 = vdwg.mxu0
      %v403 = vld [vmem:[#allocation12] sm:$0x1]
      %v405 = vlaneseq
      %v406 = vshrl.u32 %v405, 7
      %v407 = vsub.s32 0, %v406
      %v408 = vrot.slane %v403, %v407
      %v410 = vadd.f32 %v398, %v408
      %v411 = vxor.u32 %v410, 2147483648
      %v412 = vmul.f32 %v411, 1.442695
      %v413 = vpow.pop %v412
      %v414 = vadd.f32 %v413, 1.0
      %v415 = vrcp.pop %v414
      %v416 = vmul.f32 1.0, %v415
      %v417 = vld [vmem:[%s5] sm:$0xf]
      %v418 = vld [vmem:[%s5 + $0x4] sm:$0xf]
      %v419 = vld [vmem:[%s5 + $0x8] sm:$0xf]
      %v420 = vld [vmem:[%s5 + $0xc] sm:$0xf]
      %v421 = vld [vmem:[%s8] sm:$0xf]
      %v422 = vld [vmem:[%s8 + $0x4] sm:$0xf]
      %v423 = vld [vmem:[%s8 + $0x8] sm:$0xf]
      %v424 = vld [vmem:[%s8 + $0xc] sm:$0xf]
      %v429 = vunpack.c.l.b16 %v421
      %v430 = vunpack.c.l.b16 %v422
      %v431 = vunpack.c.l.b16 %v423
      %v432 = vunpack.c.l.b16 %v424
      %v433 = vpack.c.b16 %v430, %v429
      %v434 = vpack.c.b16 %v432, %v431
      %437 = vmatprep.subr.bf16.mxu0 0
      %438 = vmatpush1.bf16.msra.mxu0 %v433
      %439 = vmatprep.subr.bf16.mxu0 0
      %440 = vmatpush1.bf16.msra.mxu0 %v434
      %441 = vmatprep.subr.bf16.mxu0 0
      %442 = vmatpush1.bf16.msra.mxu0 0
      %443 = vmatprep.subr.bf16.mxu0 0
      %444 = vmatpush1.bf16.msra.mxu0 0
      %445 = vmatprep.subr.bf16.mxu0 0
      %446 = vmatpush1.bf16.msra.mxu0 0
      %447 = vmatprep.subr.bf16.mxu0 0
      %448 = vmatpush1.bf16.msra.mxu0 0
      %449 = vmatprep.subr.bf16.mxu0 0
      %450 = vmatpush1.bf16.msra.mxu0 0
      %451 = vmatprep.subr.bf16.mxu0 0
      %452 = vmatpush1.bf16.msra.mxu0 0
      %453 = vmatprep.subr.bf16.mxu0 0
      %454 = vmatpush1.bf16.msra.mxu0 0
      %455 = vmatprep.subr.bf16.mxu0 0
      %456 = vmatpush1.bf16.msra.mxu0 0
      %457 = vmatprep.subr.bf16.mxu0 0
      %458 = vmatpush1.bf16.msra.mxu0 0
      %459 = vmatprep.subr.bf16.mxu0 0
      %460 = vmatpush1.bf16.msra.mxu0 0
      %461 = vmatprep.subr.bf16.mxu0 0
      %462 = vmatpush1.bf16.msra.mxu0 0
      %463 = vmatprep.subr.bf16.mxu0 0
      %464 = vmatpush1.bf16.msra.mxu0 0
      %465 = vmatprep.subr.bf16.mxu0 0
      %466 = vmatpush1.bf16.msra.mxu0 0
      %467 = vmatprep.subr.bf16.mxu0 0
      %468 = vmatpush1.bf16.msra.mxu0 0
      %469 = vmatprep.mubr.bf16.mxu0 0
      %470 = vmatmul.mubr.bf16.gmra.mrb[0].mxu0 %v306
      %v471 = vpop.f32.mrb[0].mxu0
      %v472 = vadd.f32 0.0, %v471
      %v473 = vpop.f32.mrb[0].mxu0
      %v474 = vpop.f32.mrb[0].mxu0
      %v475 = vpop.f32.mrb[0].mxu0
      %476 = vdwg.mxu0
      %v481 = vunpack.c.l.b16 %v417
      %v482 = vunpack.c.l.b16 %v418
      %v483 = vunpack.c.l.b16 %v419
      %v484 = vunpack.c.l.b16 %v420
      %v485 = vpack.c.b16 %v482, %v481
      %v486 = vpack.c.b16 %v484, %v483
      %489 = vmatprep.subr.bf16.mxu0 0
      %490 = vmatpush1.bf16.msra.mxu0 %v485
      %491 = vmatprep.subr.bf16.mxu0 0
      %492 = vmatpush1.bf16.msra.mxu0 %v486
      %493 = vmatprep.subr.bf16.mxu0 0
      %494 = vmatpush1.bf16.msra.mxu0 0
      %495 = vmatprep.subr.bf16.mxu0 0
      %496 = vmatpush1.bf16.msra.mxu0 0
      %497 = vmatprep.subr.bf16.mxu0 0
      %498 = vmatpush1.bf16.msra.mxu0 0
      %499 = vmatprep.subr.bf16.mxu0 0
      %500 = vmatpush1.bf16.msra.mxu0 0
      %501 = vmatprep.subr.bf16.mxu0 0
      %502 = vmatpush1.bf16.msra.mxu0 0
      %503 = vmatprep.subr.bf16.mxu0 0
      %504 = vmatpush1.bf16.msra.mxu0 0
      %505 = vmatprep.subr.bf16.mxu0 0
      %506 = vmatpush1.bf16.msra.mxu0 0
      %507 = vmatprep.subr.bf16.mxu0 0
      %508 = vmatpush1.bf16.msra.mxu0 0
      %509 = vmatprep.subr.bf16.mxu0 0
      %510 = vmatpush1.bf16.msra.mxu0 0
      %511 = vmatprep.subr.bf16.mxu0 0
      %512 = vmatpush1.bf16.msra.mxu0 0
      %513 = vmatprep.subr.bf16.mxu0 0
      %514 = vmatpush1.bf16.msra.mxu0 0
      %515 = vmatprep.subr.bf16.mxu0 0
      %516 = vmatpush1.bf16.msra.mxu0 0
      %517 = vmatprep.subr.bf16.mxu0 0
      %518 = vmatpush1.bf16.msra.mxu0 0
      %519 = vmatprep.subr.bf16.mxu0 0
      %520 = vmatpush1.bf16.msra.mxu0 0
      %521 = vmatprep.mubr.bf16.mxu0 0
      %522 = vmatmul.mubr.bf16.gmra.mrb[0].mxu0 %v361
      %v523 = vpop.f32.mrb[0].mxu0
      %v524 = vadd.f32 %v472, %v523
      %v525 = vpop.f32.mrb[0].mxu0
      %v526 = vpop.f32.mrb[0].mxu0
      %v527 = vpop.f32.mrb[0].mxu0
      %528 = vdwg.mxu0
      %v529 = vld [vmem:[#allocation14] sm:$0x1]
      %v531 = vlaneseq
      %v532 = vshrl.u32 %v531, 7
      %v533 = vsub.s32 0, %v532
      %v534 = vrot.slane %v529, %v533
      %v536 = vadd.f32 %v524, %v534
      %v537 = vxor.u32 %v536, 2147483648
      %v538 = vmul.f32 %v537, 1.442695
      %v539 = vpow.pop %v538
      %v540 = vadd.f32 %v539, 1.0
      %v541 = vrcp.pop %v540
      %v542 = vmul.f32 1.0, %v541
      %v543 = vld [vmem:[%s6] sm:$0xf]
      %v544 = vld [vmem:[%s6 + $0x4] sm:$0xf]
      %v545 = vld [vmem:[%s6 + $0x8] sm:$0xf]
      %v546 = vld [vmem:[%s6 + $0xc] sm:$0xf]
      %v547 = vld [vmem:[#allocation15] sm:$0x1]
      %v549 = vlaneseq
      %v550 = vshrl.u32 %v549, 7
      %v551 = vsub.s32 0, %v550
      %v552 = vrot.slane %v547, %v551
      %v558 = vunpack.c.l.b16 %v543
      %v559 = vunpack.c.l.b16 %v544
      %v560 = vunpack.c.l.b16 %v545
      %v561 = vunpack.c.l.b16 %v546
      %v562 = vpack.c.b16 %v559, %v558
      %v563 = vpack.c.b16 %v561, %v560
      %566 = vmatprep.subr.bf16.mxu0 0
      %567 = vmatpush1.bf16.msra.mxu0 %v562
      %568 = vmatprep.subr.bf16.mxu0 0
      %569 = vmatpush1.bf16.msra.mxu0 %v563
      %570 = vmatprep.subr.bf16.mxu0 0
      %571 = vmatpush1.bf16.msra.mxu0 0
      %572 = vmatprep.subr.bf16.mxu0 0
      %573 = vmatpush1.bf16.msra.mxu0 0
      %574 = vmatprep.subr.bf16.mxu0 0
      %575 = vmatpush1.bf16.msra.mxu0 0
      %576 = vmatprep.subr.bf16.mxu0 0
      %577 = vmatpush1.bf16.msra.mxu0 0
      %578 = vmatprep.subr.bf16.mxu0 0
      %579 = vmatpush1.bf16.msra.mxu0 0
      %580 = vmatprep.subr.bf16.mxu0 0
      %581 = vmatpush1.bf16.msra.mxu0 0
      %582 = vmatprep.subr.bf16.mxu0 0
      %583 = vmatpush1.bf16.msra.mxu0 0
      %584 = vmatprep.subr.bf16.mxu0 0
      %585 = vmatpush1.bf16.msra.mxu0 0
      %586 = vmatprep.subr.bf16.mxu0 0
      %587 = vmatpush1.bf16.msra.mxu0 0
      %588 = vmatprep.subr.bf16.mxu0 0
      %589 = vmatpush1.bf16.msra.mxu0 0
      %590 = vmatprep.subr.bf16.mxu0 0
      %591 = vmatpush1.bf16.msra.mxu0 0
      %592 = vmatprep.subr.bf16.mxu0 0
      %593 = vmatpush1.bf16.msra.mxu0 0
      %594 = vmatprep.subr.bf16.mxu0 0
      %595 = vmatpush1.bf16.msra.mxu0 0
      %596 = vmatprep.subr.bf16.mxu0 0
      %597 = vmatpush1.bf16.msra.mxu0 0
      %598 = vmatprep.mubr.bf16.mxu0 0
      %599 = vmatmul.mubr.bf16.gmra.mrb[0].mxu0 %v361
      %v600 = vpop.f32.mrb[0].mxu0
      %v601 = vadd.f32 %v552, %v600
      %v602 = vpop.f32.mrb[0].mxu0
      %v603 = vpop.f32.mrb[0].mxu0
      %v604 = vpop.f32.mrb[0].mxu0
      %605 = vdwg.mxu0
      %v606 = vld [vmem:[%s9] sm:$0xf]
      %v607 = vld [vmem:[%s9 + $0x4] sm:$0xf]
      %v608 = vld [vmem:[%s9 + $0x8] sm:$0xf]
      %v609 = vld [vmem:[%s9 + $0xc] sm:$0xf]
      %v610 = vld [vmem:[#allocation17] sm:$0x1]
      %v612 = vlaneseq
      %v613 = vshrl.u32 %v612, 7
      %v614 = vsub.s32 0, %v613
      %v615 = vrot.slane %v610, %v614
      %v621 = vunpack.c.l.b16 %v606
      %v622 = vunpack.c.l.b16 %v607
      %v623 = vunpack.c.l.b16 %v608
      %v624 = vunpack.c.l.b16 %v609
      %v625 = vpack.c.b16 %v622, %v621
      %v626 = vpack.c.b16 %v624, %v623
      %629 = vmatprep.subr.bf16.mxu0 0
      %630 = vmatpush1.bf16.msra.mxu0 %v625
      %631 = vmatprep.subr.bf16.mxu0 0
      %632 = vmatpush1.bf16.msra.mxu0 %v626
      %633 = vmatprep.subr.bf16.mxu0 0
      %634 = vmatpush1.bf16.msra.mxu0 0
      %635 = vmatprep.subr.bf16.mxu0 0
      %636 = vmatpush1.bf16.msra.mxu0 0
      %637 = vmatprep.subr.bf16.mxu0 0
      %638 = vmatpush1.bf16.msra.mxu0 0
      %639 = vmatprep.subr.bf16.mxu0 0
      %640 = vmatpush1.bf16.msra.mxu0 0
      %641 = vmatprep.subr.bf16.mxu0 0
      %642 = vmatpush1.bf16.msra.mxu0 0
      %643 = vmatprep.subr.bf16.mxu0 0
      %644 = vmatpush1.bf16.msra.mxu0 0
      %645 = vmatprep.subr.bf16.mxu0 0
      %646 = vmatpush1.bf16.msra.mxu0 0
      %647 = vmatprep.subr.bf16.mxu0 0
      %648 = vmatpush1.bf16.msra.mxu0 0
      %649 = vmatprep.subr.bf16.mxu0 0
      %650 = vmatpush1.bf16.msra.mxu0 0
      %651 = vmatprep.subr.bf16.mxu0 0
      %652 = vmatpush1.bf16.msra.mxu0 0
      %653 = vmatprep.subr.bf16.mxu0 0
      %654 = vmatpush1.bf16.msra.mxu0 0
      %655 = vmatprep.subr.bf16.mxu0 0
      %656 = vmatpush1.bf16.msra.mxu0 0
      %657 = vmatprep.subr.bf16.mxu0 0
      %658 = vmatpush1.bf16.msra.mxu0 0
      %659 = vmatprep.subr.bf16.mxu0 0
      %660 = vmatpush1.bf16.msra.mxu0 0
      %661 = vmatprep.mubr.bf16.mxu0 0
      %662 = vmatmul.mubr.bf16.gmra.mrb[0].mxu0 %v306
      %v663 = vpop.f32.mrb[0].mxu0
      %v664 = vadd.f32 %v615, %v663
      %v665 = vpop.f32.mrb[0].mxu0
      %v666 = vpop.f32.mrb[0].mxu0
      %v667 = vpop.f32.mrb[0].mxu0
      %668 = vdwg.mxu0
      %v669 = vmul.f32 %v416, %v664
      %v670 = vadd.f32 %v601, %v669
      %v671 = vtanh.pop %v670
      %v672 = vsub.f32 1.0, %v542
      %v673 = vmul.f32 %v672, %v671
      %v674 = vmul.f32 %v542, %v282
      %v675 = vadd.f32 %v673, %v674
      %676 = vst.msk [vmem:[#allocation27] sm:$0xff] %vm304, %v675
      %v677 = vld [vmem:[%s3] sm:$0xf]
      %v678 = vld [vmem:[%s3 + $0x4] sm:$0xf]
      %v679 = vld [vmem:[%s3 + $0x8] sm:$0xf]
      %v680 = vld [vmem:[%s3 + $0xc] sm:$0xf]
      %v681 = vld [vmem:[%s3 + $0x10] sm:$0xf]
      %v682 = vld [vmem:[%s3 + $0x14] sm:$0xf]
      %v683 = vld [vmem:[%s3 + $0x18] sm:$0xf]
      %v684 = vld [vmem:[%s3 + $0x1c] sm:$0xf]
      %v685 = vpack.c.bf16 %v675, %v675
      %v686 = vld [vmem:[%s14] sm:$0xf]
      %v687 = vld [vmem:[%s14 + $0x4] sm:$0xf]
      %v688 = vld [vmem:[%s14 + $0x8] sm:$0xf]
      %v689 = vld [vmem:[%s14 + $0xc] sm:$0xf]
      %v694 = vunpack.c.l.b16 %v686
      %v695 = vunpack.c.l.b16 %v687
      %v696 = vunpack.c.l.b16 %v688
      %v697 = vunpack.c.l.b16 %v689
      %v698 = vpack.c.b16 %v695, %v694
      %v699 = vpack.c.b16 %v697, %v696
      %v703 = vsel %vm304, %v685, 0
      %705 = vmatprep.subr.bf16.mxu0 0
      %706 = vmatpush1.bf16.msra.mxu0 %v698
      %707 = vmatprep.subr.bf16.mxu0 0
      %708 = vmatpush1.bf16.msra.mxu0 %v699
      %709 = vmatprep.subr.bf16.mxu0 0
      %710 = vmatpush1.bf16.msra.mxu0 0
      %711 = vmatprep.subr.bf16.mxu0 0
      %712 = vmatpush1.bf16.msra.mxu0 0
      %713 = vmatprep.subr.bf16.mxu0 0
      %714 = vmatpush1.bf16.msra.mxu0 0
      %715 = vmatprep.subr.bf16.mxu0 0
      %716 = vmatpush1.bf16.msra.mxu0 0
      %717 = vmatprep.subr.bf16.mxu0 0
      %718 = vmatpush1.bf16.msra.mxu0 0
      %719 = vmatprep.subr.bf16.mxu0 0
      %720 = vmatpush1.bf16.msra.mxu0 0
      %721 = vmatprep.subr.bf16.mxu0 0
      %722 = vmatpush1.bf16.msra.mxu0 0
      %723 = vmatprep.subr.bf16.mxu0 0
      %724 = vmatpush1.bf16.msra.mxu0 0
      %725 = vmatprep.subr.bf16.mxu0 0
      %726 = vmatpush1.bf16.msra.mxu0 0
      %727 = vmatprep.subr.bf16.mxu0 0
      %728 = vmatpush1.bf16.msra.mxu0 0
      %729 = vmatprep.subr.bf16.mxu0 0
      %730 = vmatpush1.bf16.msra.mxu0 0
      %731 = vmatprep.subr.bf16.mxu0 0
      %732 = vmatpush1.bf16.msra.mxu0 0
      %733 = vmatprep.subr.bf16.mxu0 0
      %734 = vmatpush1.bf16.msra.mxu0 0
      %735 = vmatprep.subr.bf16.mxu0 0
      %736 = vmatpush1.bf16.msra.mxu0 0
      %737 = vmatprep.mubr.bf16.mxu0 0
      %738 = vmatmul.mubr.bf16.gmra.mrb[0].mxu0 %v703
      %v739 = vpop.f32.mrb[0].mxu0
      %v740 = vadd.f32 0.0, %v739
      %v741 = vpop.f32.mrb[0].mxu0
      %v742 = vpop.f32.mrb[0].mxu0
      %v743 = vpop.f32.mrb[0].mxu0
      %744 = vdwg.mxu0
      %v745 = vld [vmem:[#allocation18] sm:$0x1]
      %v747 = vlaneseq
      %v748 = vshrl.u32 %v747, 7
      %v749 = vsub.s32 0, %v748
      %v750 = vrot.slane %v745, %v749
      %v752 = vmul.f32 %v675, %v750
      %v753 = vsel %vm304, %v752, 0.0
      %754 = vadd.xlane.f32.xlu0 %v753
      %v755 = vpop.xlane.xlu0 %754
      %v757 = vcombine.high %v740, %v740
      %v759 = vunpack.c.l.s4 1966171168
      %v760 = vunpack.c.0.s8 %v759
      %v761 = vlaneseq
      %v762 = vshrl.u32 %v761, 7
      %v763 = vsub.s32 %v760, %v762
      %v764 = vrot.slane %v740, %v763
      %v766 = vunpack.c.l.s4 1966171168
      %v767 = vunpack.c.0.s8 %v766
      %v768 = vlaneseq
      %v769 = vshrl.u32 %v768, 7
      %v770 = vsub.s32 %v767, %v769
      %v771 = vrot.slane %v757, %v770
      %v772 = vcombine.high %v764, %v764
      %v773 = vcombine.high %v771, %v771
      %v775 = vunpack.c.l.s4 1966171168
      %v776 = vunpack.c.0.s8 %v775
      %v777 = vlaneseq
      %v778 = vshrl.u32 %v777, 7
      %v779 = vsub.s32 %v776, %v778
      %v780 = vrot.slane %v764, %v779
      %v782 = vunpack.c.l.s4 1966171168
      %v783 = vunpack.c.0.s8 %v782
      %v784 = vlaneseq
      %v785 = vshrl.u32 %v784, 7
      %v786 = vsub.s32 %v783, %v785
      %v787 = vrot.slane %v771, %v786
      %v789 = vunpack.c.l.s4 1966171168
      %v790 = vunpack.c.0.s8 %v789
      %v791 = vlaneseq
      %v792 = vshrl.u32 %v791, 7
      %v793 = vsub.s32 %v790, %v792
      %v794 = vrot.slane %v772, %v793
      %v796 = vunpack.c.l.s4 1966171168
      %v797 = vunpack.c.0.s8 %v796
      %v798 = vlaneseq
      %v799 = vshrl.u32 %v798, 7
      %v800 = vsub.s32 %v797, %v799
      %v801 = vrot.slane %v773, %v800
      %v802 = vcombine.high %v780, %v780
      %v803 = vcombine.high %v787, %v787
      %v804 = vcombine.high %v794, %v794
      %v805 = vcombine.high %v801, %v801
      %v806 = vunpack.c.l.bf16 %v677
      %v807 = vunpack.c.l.bf16 %v678
      %v808 = vunpack.c.l.bf16 %v679
      %v809 = vunpack.c.l.bf16 %v680
      %v810 = vunpack.c.l.bf16 %v681
      %v811 = vunpack.c.l.bf16 %v682
      %v812 = vunpack.c.l.bf16 %v683
      %v813 = vunpack.c.l.bf16 %v684
      %v814 = vlaneseq
      %v815 = vshrl.u32 %v814, 7
      %v816 = vsub.s32 0, %v815
      %v817 = vrot.slane %v780, %v816
      %v818 = vlaneseq
      %v819 = vshrl.u32 %v818, 7
      %v820 = vsub.s32 0, %v819
      %v821 = vrot.slane %v794, %v820
      %v822 = vlaneseq
      %v823 = vshrl.u32 %v822, 7
      %v824 = vsub.s32 0, %v823
      %v825 = vrot.slane %v802, %v824
      %v826 = vlaneseq
      %v827 = vshrl.u32 %v826, 7
      %v828 = vsub.s32 0, %v827
      %v829 = vrot.slane %v804, %v828
      %v830 = vlaneseq
      %v831 = vshrl.u32 %v830, 7
      %v832 = vsub.s32 0, %v831
      %v833 = vrot.slane %v787, %v832
      %v834 = vlaneseq
      %v835 = vshrl.u32 %v834, 7
      %v836 = vsub.s32 0, %v835
      %v837 = vrot.slane %v801, %v836
      %v838 = vlaneseq
      %v839 = vshrl.u32 %v838, 7
      %v840 = vsub.s32 0, %v839
      %v841 = vrot.slane %v803, %v840
      %v842 = vlaneseq
      %v843 = vshrl.u32 %v842, 7
      %v844 = vsub.s32 0, %v843
      %v845 = vrot.slane %v805, %v844
      %v854 = vmul.f32 %v806, %v817
      %v855 = vmul.f32 %v807, %v821
      %v856 = vmul.f32 %v808, %v825
      %v857 = vmul.f32 %v809, %v829
      %v858 = vmul.f32 %v810, %v833
      %v859 = vmul.f32 %v811, %v837
      %v860 = vmul.f32 %v812, %v841
      %v861 = vmul.f32 %v813, %v845
      %v862 = vsel %vm304, %v854, 0.0
      %863 = vadd.xlane.f32.xlu0 %v862
      %v864 = vpop.xlane.xlu0 %863
      %v865 = vsel %vm304, %v855, 0.0
      %866 = vadd.xlane.f32.xlu0 %v865
      %v867 = vpop.xlane.xlu0 %866
      %v868 = vsel %vm304, %v856, 0.0
      %869 = vadd.xlane.f32.xlu0 %v868
      %v870 = vpop.xlane.xlu0 %869
      %v871 = vsel %vm304, %v857, 0.0
      %872 = vadd.xlane.f32.xlu0 %v871
      %v873 = vpop.xlane.xlu0 %872
      %v874 = vsel %vm304, %v858, 0.0
      %875 = vadd.xlane.f32.xlu0 %v874
      %v876 = vpop.xlane.xlu0 %875
      %v877 = vsel %vm304, %v859, 0.0
      %878 = vadd.xlane.f32.xlu0 %v877
      %v879 = vpop.xlane.xlu0 %878
      %v880 = vsel %vm304, %v860, 0.0
      %881 = vadd.xlane.f32.xlu0 %v880
      %v882 = vpop.xlane.xlu0 %881
      %v883 = vsel %vm304, %v861, 0.0
      %884 = vadd.xlane.f32.xlu0 %v883
      %v885 = vpop.xlane.xlu0 %884
      %v887 = vlaneseq
      %v888 = vshrl.u32 %v887, 7
      %v889 = vsub.s32 0, %v888
      %v890 = vrot.slane %v755, %v889
      %v891 = vlaneseq
      %v892 = vshrl.u32 %v891, 7
      %v893 = vsub.s32 1, %v892
      %v894 = vrot.slane %v755, %v893
      %v895 = vlaneseq
      %v896 = vshrl.u32 %v895, 7
      %v897 = vsub.s32 2, %v896
      %v898 = vrot.slane %v755, %v897
      %v899 = vlaneseq
      %v900 = vshrl.u32 %v899, 7
      %v901 = vsub.s32 3, %v900
      %v902 = vrot.slane %v755, %v901
      %v903 = vlaneseq
      %v904 = vshrl.u32 %v903, 7
      %v905 = vsub.s32 4, %v904
      %v906 = vrot.slane %v755, %v905
      %v907 = vlaneseq
      %v908 = vshrl.u32 %v907, 7
      %v909 = vsub.s32 5, %v908
      %v910 = vrot.slane %v755, %v909
      %v911 = vlaneseq
      %v912 = vshrl.u32 %v911, 7
      %v913 = vsub.s32 6, %v912
      %v914 = vrot.slane %v755, %v913
      %v915 = vlaneseq
      %v916 = vshrl.u32 %v915, 7
      %v917 = vsub.s32 7, %v916
      %v918 = vrot.slane %v755, %v917
      %v927 = vadd.f32 %v864, %v890
      %v928 = vadd.f32 %v867, %v894
      %v929 = vadd.f32 %v870, %v898
      %v930 = vadd.f32 %v873, %v902
      %v931 = vadd.f32 %v876, %v906
      %v932 = vadd.f32 %v879, %v910
      %v933 = vadd.f32 %v882, %v914
      %v934 = vadd.f32 %v885, %v918
      %943 = vset.pattern.permute.xlu0 0
      %944 = vperm.xlu0 %943, %v927
      %v945 = vpop.permute.xlu0 %944
      %946 = vset.pattern.permute.xlu0 0
      %947 = vperm.xlu0 %946, %v928
      %v948 = vpop.permute.xlu0 %947
      %949 = vset.pattern.permute.xlu0 0
      %950 = vperm.xlu0 %949, %v929
      %v951 = vpop.permute.xlu0 %950
      %952 = vset.pattern.permute.xlu0 0
      %953 = vperm.xlu0 %952, %v930
      %v954 = vpop.permute.xlu0 %953
      %955 = vset.pattern.permute.xlu0 0
      %956 = vperm.xlu0 %955, %v931
      %v957 = vpop.permute.xlu0 %956
      %958 = vset.pattern.permute.xlu0 0
      %959 = vperm.xlu0 %958, %v932
      %v960 = vpop.permute.xlu0 %959
      %961 = vset.pattern.permute.xlu0 0
      %962 = vperm.xlu0 %961, %v933
      %v963 = vpop.permute.xlu0 %962
      %964 = vset.pattern.permute.xlu0 0
      %965 = vperm.xlu0 %964, %v934
      %v966 = vpop.permute.xlu0 %965
      %v967 = vlaneseq
      %v968 = vand.u32 %v967, 127
      %v969 = vlaneseq
      %v970 = vshrl.u32 %v969, 7
      %v971 = vsub.s32 %v968, %v970
      %v972 = vrot.slane %v945, %v971
      %v973 = vlaneseq
      %v974 = vshrl.u32 %v973, 7
      %v975 = vsub.s32 %v968, %v974
      %v976 = vrot.slane %v948, %v975
      %v977 = vlaneseq
      %v978 = vshrl.u32 %v977, 7
      %v979 = vsub.s32 %v968, %v978
      %v980 = vrot.slane %v951, %v979
      %v981 = vlaneseq
      %v982 = vshrl.u32 %v981, 7
      %v983 = vsub.s32 %v968, %v982
      %v984 = vrot.slane %v954, %v983
      %v985 = vlaneseq
      %v986 = vshrl.u32 %v985, 7
      %v987 = vsub.s32 %v968, %v986
      %v988 = vrot.slane %v957, %v987
      %v989 = vlaneseq
      %v990 = vshrl.u32 %v989, 7
      %v991 = vsub.s32 %v968, %v990
      %v992 = vrot.slane %v960, %v991
      %v993 = vlaneseq
      %v994 = vshrl.u32 %v993, 7
      %v995 = vsub.s32 %v968, %v994
      %v996 = vrot.slane %v963, %v995
      %v997 = vlaneseq
      %v998 = vshrl.u32 %v997, 7
      %v999 = vsub.s32 %v968, %v998
      %v1000 = vrot.slane %v966, %v999
      %vm1001 = vcmask 1041409
      %v1002 = vsel %vm1001, %v976, %v972
      %vm1003 = vcmask 1042434
      %v1004 = vsel %vm1003, %v980, %v1002
      %vm1005 = vcmask 1043459
      %v1006 = vsel %vm1005, %v984, %v1004
      %vm1007 = vcmask 1044484
      %v1008 = vsel %vm1007, %v988, %v1006
      %vm1009 = vcmask 1045509
      %v1010 = vsel %vm1009, %v992, %v1008
      %vm1011 = vcmask 1046534
      %v1012 = vsel %vm1011, %v996, %v1010
      %vm1013 = vcmask 1047559
      %v1014 = vsel %vm1013, %v1000, %v1012
      %vm1016 = vcmask 64512
      %v1017 = vsel %vm1016, %v1014, -inf
      %1018 = vmax.xlane.f32.xlu0 %v1017
      %v1019 = vpop.xlane.xlu0 %1018
      %v1021 = vlaneseq
      %v1022 = vshrl.u32 %v1021, 7
      %v1023 = vsub.s32 0, %v1022
      %v1024 = vrot.slane %v1019, %v1023
      %v1025 = vlaneseq
      %v1026 = vshrl.u32 %v1025, 7
      %v1027 = vsub.s32 1, %v1026
      %v1028 = vrot.slane %v1019, %v1027
      %v1029 = vlaneseq
      %v1030 = vshrl.u32 %v1029, 7
      %v1031 = vsub.s32 2, %v1030
      %v1032 = vrot.slane %v1019, %v1031
      %v1033 = vlaneseq
      %v1034 = vshrl.u32 %v1033, 7
      %v1035 = vsub.s32 3, %v1034
      %v1036 = vrot.slane %v1019, %v1035
      %v1037 = vlaneseq
      %v1038 = vshrl.u32 %v1037, 7
      %v1039 = vsub.s32 4, %v1038
      %v1040 = vrot.slane %v1019, %v1039
      %v1041 = vlaneseq
      %v1042 = vshrl.u32 %v1041, 7
      %v1043 = vsub.s32 5, %v1042
      %v1044 = vrot.slane %v1019, %v1043
      %v1045 = vlaneseq
      %v1046 = vshrl.u32 %v1045, 7
      %v1047 = vsub.s32 6, %v1046
      %v1048 = vrot.slane %v1019, %v1047
      %v1049 = vlaneseq
      %v1050 = vshrl.u32 %v1049, 7
      %v1051 = vsub.s32 7, %v1050
      %v1052 = vrot.slane %v1019, %v1051
      %v1061 = vsub.f32 %v927, %v1024
      %v1062 = vsub.f32 %v928, %v1028
      %v1063 = vsub.f32 %v929, %v1032
      %v1064 = vsub.f32 %v930, %v1036
      %v1065 = vsub.f32 %v931, %v1040
      %v1066 = vsub.f32 %v932, %v1044
      %v1067 = vsub.f32 %v933, %v1048
      %v1068 = vsub.f32 %v934, %v1052
      %v1069 = vmul.f32 %v1061, 1.442695
      %v1070 = vpow.pop %v1069
      %v1071 = vmul.f32 %v1062, 1.442695
      %v1072 = vpow.pop %v1071
      %v1073 = vmul.f32 %v1063, 1.442695
      %v1074 = vpow.pop %v1073
      %v1075 = vmul.f32 %v1064, 1.442695
      %v1076 = vpow.pop %v1075
      %v1077 = vmul.f32 %v1065, 1.442695
      %v1078 = vpow.pop %v1077
      %v1079 = vmul.f32 %v1066, 1.442695
      %v1080 = vpow.pop %v1079
      %v1081 = vmul.f32 %v1067, 1.442695
      %v1082 = vpow.pop %v1081
      %v1083 = vmul.f32 %v1068, 1.442695
      %v1084 = vpow.pop %v1083
      %1093 = vset.pattern.permute.xlu0 0
      %1094 = vperm.xlu0 %1093, %v1070
      %v1095 = vpop.permute.xlu0 %1094
      %1096 = vset.pattern.permute.xlu0 0
      %1097 = vperm.xlu0 %1096, %v1072
      %v1098 = vpop.permute.xlu0 %1097
      %1099 = vset.pattern.permute.xlu0 0
      %1100 = vperm.xlu0 %1099, %v1074
      %v1101 = vpop.permute.xlu0 %1100
      %1102 = vset.pattern.permute.xlu0 0
      %1103 = vperm.xlu0 %1102, %v1076
      %v1104 = vpop.permute.xlu0 %1103
      %1105 = vset.pattern.permute.xlu0 0
      %1106 = vperm.xlu0 %1105, %v1078
      %v1107 = vpop.permute.xlu0 %1106
      %1108 = vset.pattern.permute.xlu0 0
      %1109 = vperm.xlu0 %1108, %v1080
      %v1110 = vpop.permute.xlu0 %1109
      %1111 = vset.pattern.permute.xlu0 0
      %1112 = vperm.xlu0 %1111, %v1082
      %v1113 = vpop.permute.xlu0 %1112
      %1114 = vset.pattern.permute.xlu0 0
      %1115 = vperm.xlu0 %1114, %v1084
      %v1116 = vpop.permute.xlu0 %1115
      %v1117 = vlaneseq
      %v1118 = vshrl.u32 %v1117, 7
      %v1119 = vsub.s32 %v968, %v1118
      %v1120 = vrot.slane %v1095, %v1119
      %v1121 = vlaneseq
      %v1122 = vshrl.u32 %v1121, 7
      %v1123 = vsub.s32 %v968, %v1122
      %v1124 = vrot.slane %v1098, %v1123
      %v1125 = vlaneseq
      %v1126 = vshrl.u32 %v1125, 7
      %v1127 = vsub.s32 %v968, %v1126
      %v1128 = vrot.slane %v1101, %v1127
      %v1129 = vlaneseq
      %v1130 = vshrl.u32 %v1129, 7
      %v1131 = vsub.s32 %v968, %v1130
      %v1132 = vrot.slane %v1104, %v1131
      %v1133 = vlaneseq
      %v1134 = vshrl.u32 %v1133, 7
      %v1135 = vsub.s32 %v968, %v1134
      %v1136 = vrot.slane %v1107, %v1135
      %v1137 = vlaneseq
      %v1138 = vshrl.u32 %v1137, 7
      %v1139 = vsub.s32 %v968, %v1138
      %v1140 = vrot.slane %v1110, %v1139
      %v1141 = vlaneseq
      %v1142 = vshrl.u32 %v1141, 7
      %v1143 = vsub.s32 %v968, %v1142
      %v1144 = vrot.slane %v1113, %v1143
      %v1145 = vlaneseq
      %v1146 = vshrl.u32 %v1145, 7
      %v1147 = vsub.s32 %v968, %v1146
      %v1148 = vrot.slane %v1116, %v1147
      %v1149 = vsel %vm1001, %v1124, %v1120
      %v1150 = vsel %vm1003, %v1128, %v1149
      %v1151 = vsel %vm1005, %v1132, %v1150
      %v1152 = vsel %vm1007, %v1136, %v1151
      %v1153 = vsel %vm1009, %v1140, %v1152
      %v1154 = vsel %vm1011, %v1144, %v1153
      %v1155 = vsel %vm1013, %v1148, %v1154
      %v1157 = vsel %vm1016, %v1155, 0.0
      %1158 = vadd.xlane.f32.xlu0 %v1157
      %v1159 = vpop.xlane.xlu0 %1158
      %v1160 = vrcp.pop %v1159
      %v1162 = vlaneseq
      %v1163 = vshrl.u32 %v1162, 7
      %v1164 = vsub.s32 0, %v1163
      %v1165 = vrot.slane %v1160, %v1164
      %v1166 = vlaneseq
      %v1167 = vshrl.u32 %v1166, 7
      %v1168 = vsub.s32 1, %v1167
      %v1169 = vrot.slane %v1160, %v1168
      %v1170 = vlaneseq
      %v1171 = vshrl.u32 %v1170, 7
      %v1172 = vsub.s32 2, %v1171
      %v1173 = vrot.slane %v1160, %v1172
      %v1174 = vlaneseq
      %v1175 = vshrl.u32 %v1174, 7
      %v1176 = vsub.s32 3, %v1175
      %v1177 = vrot.slane %v1160, %v1176
      %v1178 = vlaneseq
      %v1179 = vshrl.u32 %v1178, 7
      %v1180 = vsub.s32 4, %v1179
      %v1181 = vrot.slane %v1160, %v1180
      %v1182 = vlaneseq
      %v1183 = vshrl.u32 %v1182, 7
      %v1184 = vsub.s32 5, %v1183
      %v1185 = vrot.slane %v1160, %v1184
      %v1186 = vlaneseq
      %v1187 = vshrl.u32 %v1186, 7
      %v1188 = vsub.s32 6, %v1187
      %v1189 = vrot.slane %v1160, %v1188
      %v1190 = vlaneseq
      %v1191 = vshrl.u32 %v1190, 7
      %v1192 = vsub.s32 7, %v1191
      %v1193 = vrot.slane %v1160, %v1192
      %v1202 = vmul.f32 %v1070, %v1165
      %v1203 = vmul.f32 %v1072, %v1169
      %v1204 = vmul.f32 %v1074, %v1173
      %v1205 = vmul.f32 %v1076, %v1177
      %v1206 = vmul.f32 %v1078, %v1181
      %v1207 = vmul.f32 %v1080, %v1185
      %v1208 = vmul.f32 %v1082, %v1189
      %v1209 = vmul.f32 %v1084, %v1193
      %1211 = vset.pattern.permute.xlu0 0
      %1212 = vperm.xlu0 %1211, %v1202
      %v1213 = vpop.permute.xlu0 %1212
      %1216 = vset.pattern.permute.xlu0 0
      %1217 = vperm.xlu0 %1216, %v1203
      %v1218 = vpop.permute.xlu0 %1217
      %1221 = vset.pattern.permute.xlu0 0
      %1222 = vperm.xlu0 %1221, %v1204
      %v1223 = vpop.permute.xlu0 %1222
      %1226 = vset.pattern.permute.xlu0 0
      %1227 = vperm.xlu0 %1226, %v1205
      %v1228 = vpop.permute.xlu0 %1227
      %1231 = vset.pattern.permute.xlu0 0
      %1232 = vperm.xlu0 %1231, %v1206
      %v1233 = vpop.permute.xlu0 %1232
      %1236 = vset.pattern.permute.xlu0 0
      %1237 = vperm.xlu0 %1236, %v1207
      %v1238 = vpop.permute.xlu0 %1237
      %1241 = vset.pattern.permute.xlu0 0
      %1242 = vperm.xlu0 %1241, %v1208
      %v1243 = vpop.permute.xlu0 %1242
      %1246 = vset.pattern.permute.xlu0 0
      %1247 = vperm.xlu0 %1246, %v1209
      %v1248 = vpop.permute.xlu0 %1247
      %v1250 = vmul.f32 %v1213, %v806
      %v1251 = vmul.f32 %v1218, %v807
      %v1252 = vmul.f32 %v1223, %v808
      %v1253 = vmul.f32 %v1228, %v809
      %v1254 = vmul.f32 %v1233, %v810
      %v1255 = vmul.f32 %v1238, %v811
      %v1256 = vmul.f32 %v1243, %v812
      %v1257 = vmul.f32 %v1248, %v813
      %v1258 = vsel %vm304, %v1250, 0.0
      %v1259 = vrot.slane %v1258, 4
      %v1260 = vadd.f32 %v1258, %v1259
      %v1261 = vrot.slane %v1260, 2
      %v1262 = vadd.f32 %v1260, %v1261
      %v1263 = vrot.slane %v1262, 1
      %v1264 = vadd.f32 %v1262, %v1263
      %v1265 = vsel %vm304, %v1251, 0.0
      %v1266 = vrot.slane %v1265, 4
      %v1267 = vadd.f32 %v1265, %v1266
      %v1268 = vrot.slane %v1267, 2
      %v1269 = vadd.f32 %v1267, %v1268
      %v1270 = vrot.slane %v1269, 1
      %v1271 = vadd.f32 %v1269, %v1270
      %v1272 = vsel %vm304, %v1252, 0.0
      %v1273 = vrot.slane %v1272, 4
      %v1274 = vadd.f32 %v1272, %v1273
      %v1275 = vrot.slane %v1274, 2
      %v1276 = vadd.f32 %v1274, %v1275
      %v1277 = vrot.slane %v1276, 1
      %v1278 = vadd.f32 %v1276, %v1277
      %v1279 = vsel %vm304, %v1253, 0.0
      %v1280 = vrot.slane %v1279, 4
      %v1281 = vadd.f32 %v1279, %v1280
      %v1282 = vrot.slane %v1281, 2
      %v1283 = vadd.f32 %v1281, %v1282
      %v1284 = vrot.slane %v1283, 1
      %v1285 = vadd.f32 %v1283, %v1284
      %v1286 = vsel %vm304, %v1254, 0.0
      %v1287 = vrot.slane %v1286, 4
      %v1288 = vadd.f32 %v1286, %v1287
      %v1289 = vrot.slane %v1288, 2
      %v1290 = vadd.f32 %v1288, %v1289
      %v1291 = vrot.slane %v1290, 1
      %v1292 = vadd.f32 %v1290, %v1291
      %v1293 = vsel %vm304, %v1255, 0.0
      %v1294 = vrot.slane %v1293, 4
      %v1295 = vadd.f32 %v1293, %v1294
      %v1296 = vrot.slane %v1295, 2
      %v1297 = vadd.f32 %v1295, %v1296
      %v1298 = vrot.slane %v1297, 1
      %v1299 = vadd.f32 %v1297, %v1298
      %v1300 = vsel %vm304, %v1256, 0.0
      %v1301 = vrot.slane %v1300, 4
      %v1302 = vadd.f32 %v1300, %v1301
      %v1303 = vrot.slane %v1302, 2
      %v1304 = vadd.f32 %v1302, %v1303
      %v1305 = vrot.slane %v1304, 1
      %v1306 = vadd.f32 %v1304, %v1305
      %v1307 = vsel %vm304, %v1257, 0.0
      %v1308 = vrot.slane %v1307, 4
      %v1309 = vadd.f32 %v1307, %v1308
      %v1310 = vrot.slane %v1309, 2
      %v1311 = vadd.f32 %v1309, %v1310
      %v1312 = vrot.slane %v1311, 1
      %v1313 = vadd.f32 %v1311, %v1312
      %v1314 = vld [vmem:[#allocation20] sm:$0xf]
      %v1315 = vld [vmem:[#allocation20 + $0x4] sm:$0xf]
      %v1316 = vld [vmem:[#allocation20 + $0x8] sm:$0xf]
      %v1317 = vld [vmem:[#allocation20 + $0xc] sm:$0xf]
      %v1318 = vpack.c.bf16 %v1264, %v1264
      %v1319 = vpack.c.bf16 %v1271, %v1271
      %v1320 = vpack.c.bf16 %v1278, %v1278
      %v1321 = vpack.c.bf16 %v1285, %v1285
      %v1322 = vpack.c.bf16 %v1292, %v1292
      %v1323 = vpack.c.bf16 %v1299, %v1299
      %v1324 = vpack.c.bf16 %v1306, %v1306
      %v1325 = vpack.c.bf16 %v1313, %v1313
      %v1326 = vld [vmem:[%s17] sm:$0xf]
      %v1327 = vld [vmem:[%s17 + $0x4] sm:$0xf]
      %v1328 = vld [vmem:[%s17 + $0x8] sm:$0xf]
      %v1329 = vld [vmem:[%s17 + $0xc] sm:$0xf]
      %v1338 = vunpack.c.l.b16 %v1318
      %v1339 = vunpack.c.l.b16 %v1319
      %v1340 = vunpack.c.l.b16 %v1320
      %v1341 = vunpack.c.l.b16 %v1321
      %v1342 = vunpack.c.l.b16 %v1322
      %v1343 = vunpack.c.l.b16 %v1323
      %v1344 = vunpack.c.l.b16 %v1324
      %v1345 = vunpack.c.l.b16 %v1325
      %v1346 = vsel %vm1001, %v1339, %v1338
      %v1347 = vsel %vm1003, %v1340, %v1346
      %v1348 = vsel %vm1005, %v1341, %v1347
      %v1349 = vsel %vm1007, %v1342, %v1348
      %v1350 = vsel %vm1009, %v1343, %v1349
      %v1351 = vsel %vm1011, %v1344, %v1350
      %v1352 = vsel %vm1013, %v1345, %v1351
      %v1353 = vpack.c.b16 %v1352, %v1352
      %v1358 = vunpack.c.l.b16 %v1326
      %v1359 = vunpack.c.l.b16 %v1327
      %v1360 = vunpack.c.l.b16 %v1328
      %v1361 = vunpack.c.l.b16 %v1329
      %v1362 = vpack.c.b16 %v1359, %v1358
      %v1363 = vpack.c.b16 %v1361, %v1360
      %v1367 = vsel %vm304, %v1353, 0
      %1369 = vmatprep.subr.bf16.mxu0 0
      %1370 = vmatpush1.bf16.msra.mxu0 %v1362
      %1371 = vmatprep.subr.bf16.mxu0 0
      %1372 = vmatpush1.bf16.msra.mxu0 %v1363
      %1373 = vmatprep.subr.bf16.mxu0 0
      %1374 = vmatpush1.bf16.msra.mxu0 0
      %1375 = vmatprep.subr.bf16.mxu0 0
      %1376 = vmatpush1.bf16.msra.mxu0 0
      %1377 = vmatprep.subr.bf16.mxu0 0
      %1378 = vmatpush1.bf16.msra.mxu0 0
      %1379 = vmatprep.subr.bf16.mxu0 0
      %1380 = vmatpush1.bf16.msra.mxu0 0
      %1381 = vmatprep.subr.bf16.mxu0 0
      %1382 = vmatpush1.bf16.msra.mxu0 0
      %1383 = vmatprep.subr.bf16.mxu0 0
      %1384 = vmatpush1.bf16.msra.mxu0 0
      %1385 = vmatprep.subr.bf16.mxu0 0
      %1386 = vmatpush1.bf16.msra.mxu0 0
      %1387 = vmatprep.subr.bf16.mxu0 0
      %1388 = vmatpush1.bf16.msra.mxu0 0
      %1389 = vmatprep.subr.bf16.mxu0 0
      %1390 = vmatpush1.bf16.msra.mxu0 0
      %1391 = vmatprep.subr.bf16.mxu0 0
      %1392 = vmatpush1.bf16.msra.mxu0 0
      %1393 = vmatprep.subr.bf16.mxu0 0
      %1394 = vmatpush1.bf16.msra.mxu0 0
      %1395 = vmatprep.subr.bf16.mxu0 0
      %1396 = vmatpush1.bf16.msra.mxu0 0
      %1397 = vmatprep.subr.bf16.mxu0 0
      %1398 = vmatpush1.bf16.msra.mxu0 0
      %1399 = vmatprep.subr.bf16.mxu0 0
      %1400 = vmatpush1.bf16.msra.mxu0 0
      %1401 = vmatprep.mubr.bf16.mxu0 0
      %1402 = vmatmul.mubr.bf16.gmra.mrb[0].mxu0 %v1367
      %v1403 = vpop.f32.mrb[0].mxu0
      %v1404 = vadd.f32 0.0, %v1403
      %v1405 = vpop.f32.mrb[0].mxu0
      %v1406 = vpop.f32.mrb[0].mxu0
      %v1407 = vpop.f32.mrb[0].mxu0
      %1408 = vdwg.mxu0
      %v1413 = vunpack.c.l.b16 %v1314
      %v1414 = vunpack.c.l.b16 %v1315
      %v1415 = vunpack.c.l.b16 %v1316
      %v1416 = vunpack.c.l.b16 %v1317
      %v1417 = vpack.c.b16 %v1414, %v1413
      %v1418 = vpack.c.b16 %v1416, %v1415
      %1421 = vmatprep.subr.bf16.mxu0 0
      %1422 = vmatpush1.bf16.msra.mxu0 %v1417
      %1423 = vmatprep.subr.bf16.mxu0 0
      %1424 = vmatpush1.bf16.msra.mxu0 %v1418
      %1425 = vmatprep.subr.bf16.mxu0 0
      %1426 = vmatpush1.bf16.msra.mxu0 0
      %1427 = vmatprep.subr.bf16.mxu0 0
      %1428 = vmatpush1.bf16.msra.mxu0 0
      %1429 = vmatprep.subr.bf16.mxu0 0
      %1430 = vmatpush1.bf16.msra.mxu0 0
      %1431 = vmatprep.subr.bf16.mxu0 0
      %1432 = vmatpush1.bf16.msra.mxu0 0
      %1433 = vmatprep.subr.bf16.mxu0 0
      %1434 = vmatpush1.bf16.msra.mxu0 0
      %1435 = vmatprep.subr.bf16.mxu0 0
      %1436 = vmatpush1.bf16.msra.mxu0 0
      %1437 = vmatprep.subr.bf16.mxu0 0
      %1438 = vmatpush1.bf16.msra.mxu0 0
      %1439 = vmatprep.subr.bf16.mxu0 0
      %1440 = vmatpush1.bf16.msra.mxu0 0
      %1441 = vmatprep.subr.bf16.mxu0 0
      %1442 = vmatpush1.bf16.msra.mxu0 0
      %1443 = vmatprep.subr.bf16.mxu0 0
      %1444 = vmatpush1.bf16.msra.mxu0 0
      %1445 = vmatprep.subr.bf16.mxu0 0
      %1446 = vmatpush1.bf16.msra.mxu0 0
      %1447 = vmatprep.subr.bf16.mxu0 0
      %1448 = vmatpush1.bf16.msra.mxu0 0
      %1449 = vmatprep.subr.bf16.mxu0 0
      %1450 = vmatpush1.bf16.msra.mxu0 0
      %1451 = vmatprep.subr.bf16.mxu0 0
      %1452 = vmatpush1.bf16.msra.mxu0 0
      %1453 = vmatprep.mubr.bf16.mxu0 0
      %1454 = vmatmul.mubr.bf16.gmra.mrb[0].mxu0 %v703
      %v1455 = vpop.f32.mrb[0].mxu0
      %v1456 = vadd.f32 %v1404, %v1455
      %v1457 = vpop.f32.mrb[0].mxu0
      %v1458 = vpop.f32.mrb[0].mxu0
      %v1459 = vpop.f32.mrb[0].mxu0
      %1460 = vdwg.mxu0
      %v1461 = vld [vmem:[%s18] sm:$0x1]
      %v1463 = vlaneseq
      %v1464 = vshrl.u32 %v1463, 7
      %v1465 = vsub.s32 0, %v1464
      %v1466 = vrot.slane %v1461, %v1465
      %v1468 = vadd.f32 %v1456, %v1466
      %v1469 = vtanh.pop %v1468
      %v1470 = vpack.c.bf16 %v1469, %v1469
      %vm1471 = vcmask 257024
      %1472 = vst.msk [vmem:[#allocation4] sm:$0xf] %vm1471, %v1470
      %vm1473 = vcmask 7168
      %1474 = vst.msk [vmem:[#allocation5] sm:$0xff] %vm1473, -inf
      %1475 = vst.msk [vmem:[#allocation6] sm:$0xff] %vm1473, 0.0
    $region113: #{tpu_custom_call.1} parent=1 // pred_fallthru
      _
    %v1476 = vld [vmem:[#allocation4] sm:$0xf]
    %v1477 = vld [vmem:[#allocation21] sm:$0xf]
    %v1478 = vld [vmem:[#allocation21 + $0x4] sm:$0xf]
    %v1479 = vld [vmem:[#allocation21 + $0x8] sm:$0xf]
    %v1480 = vld [vmem:[#allocation21 + $0xc] sm:$0xf]
    %v1481 = vld [vmem:[%s20] sm:$0x1]
    %v1483 = vlaneseq
    %v1484 = vshrl.u32 %v1483, 7
    %v1485 = vsub.s32 0, %v1484
    %v1486 = vrot.slane %v1481, %v1485
    %v1492 = vunpack.c.l.b16 %v1477
    %v1493 = vunpack.c.l.b16 %v1478
    %v1494 = vunpack.c.l.b16 %v1479
    %v1495 = vunpack.c.l.b16 %v1480
    %v1496 = vpack.c.b16 %v1493, %v1492
    %v1497 = vpack.c.b16 %v1495, %v1494
    %vm1500 = vcmask 261120
    %v1502 = vsel %vm1500, %v1476, 0
    %1504 = vmatprep.subr.bf16.mxu0 0
    %1505 = vmatpush1.bf16.msra.mxu0 %v1496
    %1506 = vmatprep.subr.bf16.mxu0 0
    %1507 = vmatpush1.bf16.msra.mxu0 %v1497
    %1508 = vmatprep.subr.bf16.mxu0 0
    %1509 = vmatpush1.bf16.msra.mxu0 0
    %1510 = vmatprep.subr.bf16.mxu0 0
    %1511 = vmatpush1.bf16.msra.mxu0 0
    %1512 = vmatprep.subr.bf16.mxu0 0
    %1513 = vmatpush1.bf16.msra.mxu0 0
    %1514 = vmatprep.subr.bf16.mxu0 0
    %1515 = vmatpush1.bf16.msra.mxu0 0
    %1516 = vmatprep.subr.bf16.mxu0 0
    %1517 = vmatpush1.bf16.msra.mxu0 0
    %1518 = vmatprep.subr.bf16.mxu0 0
    %1519 = vmatpush1.bf16.msra.mxu0 0
    %1520 = vmatprep.subr.bf16.mxu0 0
    %1521 = vmatpush1.bf16.msra.mxu0 0
    %1522 = vmatprep.subr.bf16.mxu0 0
    %1523 = vmatpush1.bf16.msra.mxu0 0
    %1524 = vmatprep.subr.bf16.mxu0 0
    %1525 = vmatpush1.bf16.msra.mxu0 0
    %1526 = vmatprep.subr.bf16.mxu0 0
    %1527 = vmatpush1.bf16.msra.mxu0 0
    %1528 = vmatprep.subr.bf16.mxu0 0
    %1529 = vmatpush1.bf16.msra.mxu0 0
    %1530 = vmatprep.subr.bf16.mxu0 0
    %1531 = vmatpush1.bf16.msra.mxu0 0
    %1532 = vmatprep.subr.bf16.mxu0 0
    %1533 = vmatpush1.bf16.msra.mxu0 0
    %1534 = vmatprep.subr.bf16.mxu0 0
    %1535 = vmatpush1.bf16.msra.mxu0 0
    %1536 = vmatprep.mubr.bf16.mxu0 0
    %1537 = vmatmul.mubr.bf16.gmra.mrb[0].mxu0 %v1502
    %v1538 = vpop.f32.mrb[0].mxu0
    %v1539 = vadd.f32 %v1486, %v1538
    %v1540 = vpop.f32.mrb[0].mxu0
    %v1541 = vpop.f32.mrb[0].mxu0
    %v1542 = vpop.f32.mrb[0].mxu0
    %1543 = vdwg.mxu0
    %1544 = vst [vmem:[#allocation23] sm:$0xff] %v1539
    %v1545 = vld [vmem:[#allocation5] sm:$0xff]
    %1546 = vmax.xlane.f32.xlu0 %v1539
    %v1547 = vpop.xlane.xlu0 %1546
    %v1548 = vmax.f32 %v1545, %v1547
    %v1549 = vld [vmem:[#allocation6] sm:$0xff]
    %v1550 = vsub.f32 %v1545, %v1548
    %v1551 = vmul.f32 %v1550, 1.442695
    %v1552 = vpow.pop %v1551
    %v1553 = vmul.f32 %v1549, %v1552
    %1555 = vset.pattern.permute.xlu0 0
    %1556 = vperm.xlu0 %1555, %v1548
    %v1557 = vpop.permute.xlu0 %1556
    %v1559 = vsub.f32 %v1539, %v1557
    %v1560 = vmul.f32 %v1559, 1.442695
    %v1561 = vpow.pop %v1560
    %1562 = vadd.xlane.f32.xlu0 %v1561
    %v1563 = vpop.xlane.xlu0 %1562
    %v1564 = vadd.f32 %v1553, %v1563
    %vm1565 = vcmask 7168
    %1566 = vst.msk [vmem:[#allocation6] sm:$0xff] %vm1565, %v1564
    %1567 = vst.msk [vmem:[#allocation5] sm:$0xff] %vm1565, %v1548
    // Predicated region
    $region174: #{tpu_custom_call.1} parent=1 // pred_check
      %p1568 = pneg %p173
    $region175: #{tpu_custom_call.1} parent=1 // pred_check_branch
      %1570 = sbr.rel (%p1568) target = $region177
    $region176: #{tpu_custom_call.1} parent=1 // pred_region
      %v1571 = vld [vmem:[#allocation5] sm:$0xff]
      %1573 = vset.pattern.permute.xlu0 0
      %1574 = vperm.xlu0 %1573, %v1571
      %v1575 = vpop.permute.xlu0 %1574
      %1577 = vst [vmem:[#allocation24] sm:$0xff] %v1575
      %v1578 = vld [vmem:[#allocation6] sm:$0xff]
      %1580 = vset.pattern.permute.xlu0 0
      %1581 = vperm.xlu0 %1580, %v1578
      %v1582 = vpop.permute.xlu0 %1581
      %1584 = vst [vmem:[#allocation26] sm:$0xff] %v1582
    $region177: #{tpu_custom_call.1} parent=1 // pred_fallthru
      _
    // Predicated region
    $region178: #{tpu_custom_call.1} parent=1 // pred_check
      _
    $region179: #{tpu_custom_call.1} parent=1 // pred_check_branch
      %1586 = sbr.rel (0) target = $region181
    $region180: #{tpu_custom_call.1} parent=1 // pred_region
      %s1588 = ssub.s32 128, 128
      %1589 = vsyncadd [#allocation11], %s1588
      %s1591 = sshll.u32 [#allocation23], 4
      %s1592 = int_to_ptr.vmem [resolvable:$true] %s1591
      %1594 = dma.vmem_to_hbm [thread:$0]  %s1592, 128, %s21, [#allocation11]
    $region181: #{tpu_custom_call.1} parent=1 // pred_fallthru
      _
    // Predicated region
    $region182: #{tpu_custom_call.1} parent=1 // pred_check
      _
    $region183: #{tpu_custom_call.1} parent=1 // pred_check_branch
      %1596 = sbr.rel (0) target = $region185
    $region184: #{tpu_custom_call.1} parent=1 // pred_region
      %s1598 = ssub.s32 128, 128
      %1599 = vsyncadd [#allocation25], %s1598
      %s1601 = sshll.u32 [#allocation24], 4
      %s1602 = int_to_ptr.vmem [resolvable:$true] %s1601
      %1604 = dma.vmem_to_hbm [thread:$0]  %s1602, 128, %s22, [#allocation25]
    $region185: #{tpu_custom_call.1} parent=1 // pred_fallthru
      _
    // Predicated region
    $region186: #{tpu_custom_call.1} parent=1 // pred_check
      _
    $region187: #{tpu_custom_call.1} parent=1 // pred_check_branch
      %1606 = sbr.rel (0) target = $region189
    $region188: #{tpu_custom_call.1} parent=1 // pred_region
      %s1608 = ssub.s32 128, 128
      %1609 = vsyncadd [#allocation25], %s1608
      %s1611 = sshll.u32 [#allocation26], 4
      %s1612 = int_to_ptr.vmem [resolvable:$true] %s1611
      %1614 = dma.vmem_to_hbm [thread:$0]  %s1612, 128, %s23, [#allocation25]
    $region189: #{tpu_custom_call.1} parent=1 // pred_fallthru
      _
    // Predicated region
    $region190: #{tpu_custom_call.1} parent=1 // pred_check
      _
    $region191: #{tpu_custom_call.1} parent=1 // pred_check_branch
      %1616 = sbr.rel (0) target = $region193
    $region192: #{tpu_custom_call.1} parent=1 // pred_region
      %s1618 = ssub.s32 128, 128
      %1619 = vsyncadd [#allocation28], %s1618
      %s1621 = sshll.u32 [#allocation27], 4
      %s1622 = int_to_ptr.vmem [resolvable:$true] %s1621
      %1624 = dma.vmem_to_hbm [thread:$0]  %s1622, 128, %s24, [#allocation28]
    $region193: #{tpu_custom_call.1} parent=1 // pred_fallthru
      _
    // Predicated region
    $region194: #{tpu_custom_call.1} parent=1 // pred_check
      _
    $region195: #{tpu_custom_call.1} parent=1 // pred_check_branch
      %1626 = sbr.rel (0) target = $region197
    $region196: #{tpu_custom_call.1} parent=1 // pred_region
      %1627 = dma.done [#allocation11], 128
    $region197: #{tpu_custom_call.1} parent=1 // pred_fallthru
      _
    // Predicated region
    $region198: #{tpu_custom_call.1} parent=1 // pred_check
      _
    $region199: #{tpu_custom_call.1} parent=1 // pred_check_branch
      %1629 = sbr.rel (0) target = $region201
    $region200: #{tpu_custom_call.1} parent=1 // pred_region
      %1630 = dma.done [#allocation25], 128
    $region201: #{tpu_custom_call.1} parent=1 // pred_fallthru
      _
    // Predicated region
    $region202: #{tpu_custom_call.1} parent=1 // pred_check
      _
    $region203: #{tpu_custom_call.1} parent=1 // pred_check_branch
      %1632 = sbr.rel (0) target = $region205
    $region204: #{tpu_custom_call.1} parent=1 // pred_region
      %1633 = dma.done [#allocation25], 128
    $region205: #{tpu_custom_call.1} parent=1 // pred_fallthru
      _
    // Predicated region
    $region206: #{tpu_custom_call.1} parent=1 // pred_check
      _
    $region207: #{tpu_custom_call.1} parent=1 // pred_check_branch
      %1635 = sbr.rel (0) target = $region209
    $region208: #{tpu_custom_call.1} parent=1 // pred_region
      %1636 = dma.done [#allocation28], 128
    $region209: #{tpu_custom_call.1} parent=1 // pred_fallthru
      _
    %1637 = vsyncpa [#allocation10], 1
    %1638 = vsyncpa [#allocation13], 1
    %1639 = vsyncpa [#allocation16], 1
    %1640 = vsyncpa [#allocation19], 1
    %1641 = vsyncpa [#allocation22], 1
    %1642 = vsyncpa [#allocation11], 1
    %1643 = vsyncpa [#allocation25], 1
    %1644 = vsyncpa [#allocation28], 1
  %1645 = vsyncmov [#allocation3]
  %s1646 = vpop.sfrf %1645
  %p1647 = scmp.eq.s32.totalorder %s1646, 0
  %p1648 = pneg %p1647
  %1650 = shalt.err (%p1648)
  %s1651 = scalar_lea.sflag [#allocation3], 1
  %1652 = vsyncmov %s1651
  %s1653 = vpop.sfrf %1652
  %p1654 = scmp.eq.s32.totalorder %s1653, 0
  %p1655 = pneg %p1654
  %1657 = shalt.err (%p1655)

// kernel: tpu_custom_call.1
$region0: #{tpu_custom_call.1}
  #allocation0 [shape = 'u32[]', space=smem, size = 0x4, offset = 0x4, fixed_abs, tag = 'smem constant byte address 0x4 - core index']
  #allocation1 [shape = 'u32[144,128]{1,0:T(1,128)}', space=vmem, size = 0x12000, scoped, tag = 'internal scratch']
  #allocation2 [shape = 'f32[8,32]{1,0:T(8,128)}', space=vmem, size = 0x1000, scoped, tag = 'scratch operand']
  #allocation3 [shape = 's32[2]{0}', space=sflag, size = 0x8, scoped, tag = 'scratch operand']
  #allocation4 [shape = 'bf16[8,32]{1,0:T(8,128)(2,1)}', space=vmem, size = 0x800, scoped, tag = 'scratch operand']
  #allocation5 [shape = 'f32[8,1]{1,0:T(8,128)}', space=vmem, size = 0x1000, scoped, tag = 'scratch operand']
  #allocation6 [shape = 'f32[8,1]{1,0:T(8,128)}', space=vmem, size = 0x1000, scoped, tag = 'scratch operand']
  #allocation7 [shape = 's32[1]{0}', space=sflag, size = 0x4, scoped, tag = 'scoped memory for tpu_custom_call.1']
  #allocation8 [shape = 'u8[512]{0}', space=smem, size = 0x200, scoped, tag = 'prefetched SMEM operand 0']
  #allocation29 [shape = 's32[]', space=sflag, size = 0x4, offset = 0, fixed_abs, tag = 'sflag constant byte address 0x0 - dummy sync flag']
  #allocation30 [shape = 's32[]', space=sflag, size = 0x4, offset = 0, fixed_abs, tag = 'sflag constant byte address 0x0 - dummy sync flag']
  %s0 = inlined_call_operand.hbm [shape: s32[8], index: 0, kind: input, shape index: {}]
  %s1 = inlined_call_operand.vmem [shape: f32[64,32], index: 1, kind: input, shape index: {}]
  %s2 = inlined_call_operand.hbm [shape: f32[8,32], index: 2, kind: input, shape index: {}]
  %s3 = inlined_call_operand.vmem [shape: bf16[8,8,32], index: 3, kind: input, shape index: {}]
  %s4 = inlined_call_operand.vmem [shape: bf16[32,32], index: 4, kind: input, shape index: {}]
  %s5 = inlined_call_operand.vmem [shape: bf16[32,32], index: 5, kind: input, shape index: {}]
  %s6 = inlined_call_operand.vmem [shape: bf16[32,32], index: 6, kind: input, shape index: {}]
  %s7 = inlined_call_operand.vmem [shape: bf16[32,32], index: 7, kind: input, shape index: {}]
  %s8 = inlined_call_operand.vmem [shape: bf16[32,32], index: 8, kind: input, shape index: {}]
  %s9 = inlined_call_operand.vmem [shape: bf16[32,32], index: 9, kind: input, shape index: {}]
  %s10 = inlined_call_operand.hbm [shape: f32[1,32], index: 10, kind: input, shape index: {}]
  %s11 = inlined_call_operand.hbm [shape: f32[1,32], index: 11, kind: input, shape index: {}]
  %s12 = inlined_call_operand.hbm [shape: f32[1,32], index: 12, kind: input, shape index: {}]
  %s13 = inlined_call_operand.hbm [shape: f32[1,32], index: 13, kind: input, shape index: {}]
  %s14 = inlined_call_operand.vmem [shape: bf16[32,32], index: 14, kind: input, shape index: {}]
  %s15 = inlined_call_operand.hbm [shape: f32[1,32], index: 15, kind: input, shape index: {}]
  %s16 = inlined_call_operand.hbm [shape: bf16[32,32], index: 16, kind: input, shape index: {}]
  %s17 = inlined_call_operand.vmem [shape: bf16[32,32], index: 17, kind: input, shape index: {}]
  %s18 = inlined_call_operand.vmem [shape: f32[1,32], index: 18, kind: input, shape index: {}]
  %s19 = inlined_call_operand.hbm [shape: bf16[32,128], index: 19, kind: input, shape index: {}]
  %s20 = inlined_call_operand.vmem [shape: f32[1,128], index: 20, kind: input, shape index: {}]
  %s21 = inlined_call_operand.hbm [shape: f32[8,128], index: 21, kind: output, shape index: {0}]
  %s22 = inlined_call_operand.hbm [shape: f32[8,128], index: 22, kind: output, shape index: {1}]
  %s23 = inlined_call_operand.hbm [shape: f32[8,128], index: 23, kind: output, shape index: {2}]
  %s24 = inlined_call_operand.hbm [shape: f32[8,32], index: 24, kind: output, shape index: {3}]
  %25 = xla_tuple %s21, %s22, %s23, %s24
  %s26 = sld [smem:[#allocation0]]
  $region210: #{tpu_custom_call.1} parent=0
    _
  %s28 = ssub.s32 1, %s26
  %s29 = scalar_select 0, %s28, %s26
  %31 = dma.hbm_to_smem %s0, 16, [#allocation8], [#allocation7]
  %32 = dma.done [#allocation7], 16
  %33 = sfence
  $region1: #{tpu_custom_call.1} parent=0
    #allocation9 [shape = 'u8[4096]{0}', space=vmem, size = 0x1000, scoped, tag = 'input window, operand 2, single buffered']
    #allocation10 [shape = 's32[1]{0}', space=sflag, size = 0x4, scoped, tag = 'scoped memory for tpu_custom_call.1']
    #allocation11 [shape = 's32[1]{0}', space=sflag, size = 0x4, scoped, tag = 'scoped memory for tpu_custom_call.1']
    #allocation12 [shape = 'u8[512]{0}', space=vmem, size = 0x400, scoped, tag = 'input window, operand 10, single buffered']
    #allocation13 [shape = 's32[1]{0}', space=sflag, size = 0x4, scoped, tag = 'scoped memory for tpu_custom_call.1']
    #allocation14 [shape = 'u8[512]{0}', space=vmem, size = 0x400, scoped, tag = 'input window, operand 11, single buffered']
    #allocation15 [shape = 'u8[512]{0}', space=vmem, size = 0x400, scoped, tag = 'input window, operand 12, single buffered']
    #allocation16 [shape = 's32[1]{0}', space=sflag, size = 0x4, scoped, tag = 'scoped memory for tpu_custom_call.1']
    #allocation17 [shape = 'u8[512]{0}', space=vmem, size = 0x400, scoped, tag = 'input window, operand 13, single buffered']
    #allocation18 [shape = 'u8[512]{0}', space=vmem, size = 0x400, scoped, tag = 'input window, operand 15, single buffered']
    #allocation19 [shape = 's32[1]{0}', space=sflag, size = 0x4, scoped, tag = 'scoped memory for tpu_custom_call.1']
    #allocation20 [shape = 'u8[8192]{0}', space=vmem, size = 0x2000, scoped, tag = 'input window, operand 16, single buffered']
    #allocation21 [shape = 'u8[8192]{0}', space=vmem, size = 0x2000, scoped, tag = 'input window, operand 19, single buffered']
    #allocation22 [shape = 's32[1]{0}', space=sflag, size = 0x4, scoped, tag = 'scoped memory for tpu_custom_call.1']
    #allocation23 [shape = 'u8[4096]{0}', space=vmem, size = 0x1000, scoped, tag = 'output window, operand 0, single buffered']
    #allocation24 [shape = 'u8[4096]{0}', space=vmem, size = 0x1000, scoped, tag = 'output window, operand 1, single buffered']
    #allocation25 [shape = 's32[1]{0}', space=sflag, size = 0x4, scoped, tag = 'scoped memory for tpu_custom_call.1']
    #allocation26 [shape = 'u8[4096]{0}', space=vmem, size = 0x1000, scoped, tag = 'output window, operand 2, single buffered']
    #allocation27 [shape = 'u8[4096]{0}', space=vmem, size = 0x1000, scoped, tag = 'output window, operand 3, single buffered']
    #allocation28 [shape = 's32[1]{0}', space=sflag, size = 0x4, scoped, tag = 'scoped memory for tpu_custom_call.1']
    %34 = vsyncpa [#allocation10], 0
    %35 = vsyncpa [#allocation13], 0
    %36 = vsyncpa [#allocation16], 0
    %37 = vsyncpa [#allocation19], 0
    %38 = vsyncpa [#allocation22], 0
    %39 = vsyncpa [#allocation11], 0
    %40 = vsyncpa [#allocation25], 0
    %41 = vsyncpa [#allocation28], 0
    // Predicated region
    $region2: #{tpu_custom_call.1} parent=1 // pred_check
      _
    $region3: #{tpu_custom_call.1} parent=1 // pred_check_branch
      %43 = sbr.rel (0) target = $region5
    $region4: #{tpu_custom_call.1} parent=1 // pred_region
      %s45 = ssub.s32 128, 128
      %46 = vsyncadd [#allocation10], %s45
      %s48 = sshll.u32 [#allocation9], 4
      %s49 = int_to_ptr.vmem [resolvable:$true] %s48
      %51 = dma.hbm_to_vmem [thread:$0]  %s2, 128, %s49, [#allocation10]
    $region5: #{tpu_custom_call.1} parent=1 // pred_fallthru
      _
    // Predicated region
    $region6: #{tpu_custom_call.1} parent=1 // pred_check
      _
    $region7: #{tpu_custom_call.1} parent=1 // pred_check_branch
      %53 = sbr.rel (0) target = $region9
    $region8: #{tpu_custom_call.1} parent=1 // pred_region
      _
    $region9: #{tpu_custom_call.1} parent=1 // pred_fallthru
      _
    // Predicated region
    $region10: #{tpu_custom_call.1} parent=1 // pred_check
      _
    $region11: #{tpu_custom_call.1} parent=1 // pred_check_branch
      %55 = sbr.rel (0) target = $region13
    $region12: #{tpu_custom_call.1} parent=1 // pred_region
      _
    $region13: #{tpu_custom_call.1} parent=1 // pred_fallthru
      _
    // Predicated region
    $region14: #{tpu_custom_call.1} parent=1 // pred_check
      _
    $region15: #{tpu_custom_call.1} parent=1 // pred_check_branch
      %57 = sbr.rel (0) target = $region17
    $region16: #{tpu_custom_call.1} parent=1 // pred_region
      _
    $region17: #{tpu_custom_call.1} parent=1 // pred_fallthru
      _
    // Predicated region
    $region18: #{tpu_custom_call.1} parent=1 // pred_check
      _
    $region19: #{tpu_custom_call.1} parent=1 // pred_check_branch
      %59 = sbr.rel (0) target = $region21
    $region20: #{tpu_custom_call.1} parent=1 // pred_region
      _
    $region21: #{tpu_custom_call.1} parent=1 // pred_fallthru
      _
    // Predicated region
    $region22: #{tpu_custom_call.1} parent=1 // pred_check
      _
    $region23: #{tpu_custom_call.1} parent=1 // pred_check_branch
      %61 = sbr.rel (0) target = $region25
    $region24: #{tpu_custom_call.1} parent=1 // pred_region
      _
    $region25: #{tpu_custom_call.1} parent=1 // pred_fallthru
      _
    // Predicated region
    $region26: #{tpu_custom_call.1} parent=1 // pred_check
      _
    $region27: #{tpu_custom_call.1} parent=1 // pred_check_branch
      %63 = sbr.rel (0) target = $region29
    $region28: #{tpu_custom_call.1} parent=1 // pred_region
      _
    $region29: #{tpu_custom_call.1} parent=1 // pred_fallthru
      _
    // Predicated region
    $region30: #{tpu_custom_call.1} parent=1 // pred_check
      _
    $region31: #{tpu_custom_call.1} parent=1 // pred_check_branch
      %65 = sbr.rel (0) target = $region33
    $region32: #{tpu_custom_call.1} parent=1 // pred_region
      _
    $region33: #{tpu_custom_call.1} parent=1 // pred_fallthru
      _
    // Predicated region
    $region34: #{tpu_custom_call.1} parent=1 // pred_check
      _
    $region35: #{tpu_custom_call.1} parent=1 // pred_check_branch
      %67 = sbr.rel (0) target = $region37
    $region36: #{tpu_custom_call.1} parent=1 // pred_region
      %s69 = ssub.s32 16, 16
      %70 = vsyncadd [#allocation13], %s69
      %s72 = sshll.u32 [#allocation12], 4
      %s73 = int_to_ptr.vmem [resolvable:$true] %s72
      %75 = dma.hbm_to_vmem [thread:$0]  %s10, 16, %s73, [#allocation13]
    $region37: #{tpu_custom_call.1} parent=1 // pred_fallthru
      _
    // Predicated region
    $region38: #{tpu_custom_call.1} parent=1 // pred_check
      _
    $region39: #{tpu_custom_call.1} parent=1 // pred_check_branch
      %77 = sbr.rel (0) target = $region41
    $region40: #{tpu_custom_call.1} parent=1 // pred_region
      %s79 = ssub.s32 16, 16
      %80 = vsyncadd [#allocation13], %s79
      %s82 = sshll.u32 [#allocation14], 4
      %s83 = int_to_ptr.vmem [resolvable:$true] %s82
      %85 = dma.hbm_to_vmem [thread:$0]  %s11, 16, %s83, [#allocation13]
    $region41: #{tpu_custom_call.1} parent=1 // pred_fallthru
      _
    // Predicated region
    $region42: #{tpu_custom_call.1} parent=1 // pred_check
      _
    $region43: #{tpu_custom_call.1} parent=1 // pred_check_branch
      %87 = sbr.rel (0) target = $region45
    $region44: #{tpu_custom_call.1} parent=1 // pred_region
      %s89 = ssub.s32 16, 16
      %90 = vsyncadd [#allocation16], %s89
      %s92 = sshll.u32 [#allocation15], 4
      %s93 = int_to_ptr.vmem [resolvable:$true] %s92
      %95 = dma.hbm_to_vmem [thread:$0]  %s12, 16, %s93, [#allocation16]
    $region45: #{tpu_custom_call.1} parent=1 // pred_fallthru
      _
    // Predicated region
    $region46: #{tpu_custom_call.1} parent=1 // pred_check
      _
    $region47: #{tpu_custom_call.1} parent=1 // pred_check_branch
      %97 = sbr.rel (0) target = $region49
    $region48: #{tpu_custom_call.1} parent=1 // pred_region
      %s99 = ssub.s32 16, 16
      %100 = vsyncadd [#allocation16], %s99
      %s102 = sshll.u32 [#allocation17], 4
      %s103 = int_to_ptr.vmem [resolvable:$true] %s102
      %105 = dma.hbm_to_vmem [thread:$0]  %s13, 16, %s103, [#allocation16]
    $region49: #{tpu_custom_call.1} parent=1 // pred_fallthru
      _
    // Predicated region
    $region50: #{tpu_custom_call.1} parent=1 // pred_check
      _
    $region51: #{tpu_custom_call.1} parent=1 // pred_check_branch
      %107 = sbr.rel (0) target = $region53
    $region52: #{tpu_custom_call.1} parent=1 // pred_region
      _
    $region53: #{tpu_custom_call.1} parent=1 // pred_fallthru
      _
    // Predicated region
    $region54: #{tpu_custom_call.1} parent=1 // pred_check
      _
    $region55: #{tpu_custom_call.1} parent=1 // pred_check_branch
      %109 = sbr.rel (0) target = $region57
    $region56: #{tpu_custom_call.1} parent=1 // pred_region
      %s111 = ssub.s32 16, 16
      %112 = vsyncadd [#allocation19], %s111
      %s114 = sshll.u32 [#allocation18], 4
      %s115 = int_to_ptr.vmem [resolvable:$true] %s114
      %117 = dma.hbm_to_vmem [thread:$0]  %s15, 16, %s115, [#allocation19]
    $region57: #{tpu_custom_call.1} parent=1 // pred_fallthru
      _
    // Predicated region
    $region58: #{tpu_custom_call.1} parent=1 // pred_check
      _
    $region59: #{tpu_custom_call.1} parent=1 // pred_check_branch
      %119 = sbr.rel (0) target = $region61
    $region60: #{tpu_custom_call.1} parent=1 // pred_region
      %s121 = ssub.s32 256, 256
      %122 = vsyncadd [#allocation19], %s121
      %s123 = sshll.u32 [#allocation20], 4
      %s124 = int_to_ptr.vmem [resolvable:$true] %s123
      %129 = dma.hbm_to_vmem [thread:$0]  %s16, 256, %s124, [#allocation19], 64, 64, 4
    $region61: #{tpu_custom_call.1} parent=1 // pred_fallthru
      _
    // Predicated region
    $region62: #{tpu_custom_call.1} parent=1 // pred_check
      _
    $region63: #{tpu_custom_call.1} parent=1 // pred_check_branch
      %131 = sbr.rel (0) target = $region65
    $region64: #{tpu_custom_call.1} parent=1 // pred_region
      _
    $region65: #{tpu_custom_call.1} parent=1 // pred_fallthru
      _
    // Predicated region
    $region66: #{tpu_custom_call.1} parent=1 // pred_check
      _
    $region67: #{tpu_custom_call.1} parent=1 // pred_check_branch
      %133 = sbr.rel (0) target = $region69
    $region68: #{tpu_custom_call.1} parent=1 // pred_region
      _
    $region69: #{tpu_custom_call.1} parent=1 // pred_fallthru
      _
    // Predicated region
    $region70: #{tpu_custom_call.1} parent=1 // pred_check
      _
    $region71: #{tpu_custom_call.1} parent=1 // pred_check_branch
      %135 = sbr.rel (0) target = $region73
    $region72: #{tpu_custom_call.1} parent=1 // pred_region
      %s137 = ssub.s32 256, 256
      %138 = vsyncadd [#allocation22], %s137
      %s139 = sshll.u32 [#allocation21], 4
      %s140 = int_to_ptr.vmem [resolvable:$true] %s139
      %145 = dma.hbm_to_vmem [thread:$0]  %s19, 256, %s140, [#allocation22], 64, 64, 4
    $region73: #{tpu_custom_call.1} parent=1 // pred_fallthru
      _
    // Predicated region
    $region74: #{tpu_custom_call.1} parent=1 // pred_check
      _
    $region75: #{tpu_custom_call.1} parent=1 // pred_check_branch
      %147 = sbr.rel (0) target = $region77
    $region76: #{tpu_custom_call.1} parent=1 // pred_region
      _
    $region77: #{tpu_custom_call.1} parent=1 // pred_fallthru
      _
    // Predicated region
    $region78: #{tpu_custom_call.1} parent=1 // pred_check
      _
    $region79: #{tpu_custom_call.1} parent=1 // pred_check_branch
      %149 = sbr.rel (0) target = $region81
    $region80: #{tpu_custom_call.1} parent=1 // pred_region
      %150 = dma.done [#allocation10], 128
    $region81: #{tpu_custom_call.1} parent=1 // pred_fallthru
      _
    // Predicated region
    $region82: #{tpu_custom_call.1} parent=1 // pred_check
      _
    $region83: #{tpu_custom_call.1} parent=1 // pred_check_branch
      %152 = sbr.rel (0) target = $region85
    $region84: #{tpu_custom_call.1} parent=1 // pred_region
      %153 = dma.done [#allocation13], 16
    $region85: #{tpu_custom_call.1} parent=1 // pred_fallthru
      _
    // Predicated region
    $region86: #{tpu_custom_call.1} parent=1 // pred_check
      _
    $region87: #{tpu_custom_call.1} parent=1 // pred_check_branch
      %155 = sbr.rel (0) target = $region89
    $region88: #{tpu_custom_call.1} parent=1 // pred_region
      %156 = dma.done [#allocation13], 16
    $region89: #{tpu_custom_call.1} parent=1 // pred_fallthru
      _
    // Predicated region
    $region90: #{tpu_custom_call.1} parent=1 // pred_check
      _
    $region91: #{tpu_custom_call.1} parent=1 // pred_check_branch
      %158 = sbr.rel (0) target = $region93
    $region92: #{tpu_custom_call.1} parent=1 // pred_region
      %159 = dma.done [#allocation16], 16
    $region93: #{tpu_custom_call.1} parent=1 // pred_fallthru
      _
    // Predicated region
    $region94: #{tpu_custom_call.1} parent=1 // pred_check
      _
    $region95: #{tpu_custom_call.1} parent=1 // pred_check_branch
      %161 = sbr.rel (0) target = $region97
    $region96: #{tpu_custom_call.1} parent=1 // pred_region
      %162 = dma.done [#allocation16], 16
    $region97: #{tpu_custom_call.1} parent=1 // pred_fallthru
      _
    // Predicated region
    $region98: #{tpu_custom_call.1} parent=1 // pred_check
      _
    $region99: #{tpu_custom_call.1} parent=1 // pred_check_branch
      %164 = sbr.rel (0) target = $region101
    $region100: #{tpu_custom_call.1} parent=1 // pred_region
      %165 = dma.done [#allocation19], 16
    $region101: #{tpu_custom_call.1} parent=1 // pred_fallthru
      _
    // Predicated region
    $region102: #{tpu_custom_call.1} parent=1 // pred_check
      _
    $region103: #{tpu_custom_call.1} parent=1 // pred_check_branch
      %167 = sbr.rel (0) target = $region105
    $region104: #{tpu_custom_call.1} parent=1 // pred_region
      %168 = dma.done [#allocation19], 256
    $region105: #{tpu_custom_call.1} parent=1 // pred_fallthru
      _
    // Predicated region
    $region106: #{tpu_custom_call.1} parent=1 // pred_check
      _
    $region107: #{tpu_custom_call.1} parent=1 // pred_check_branch
      %170 = sbr.rel (0) target = $region109
    $region108: #{tpu_custom_call.1} parent=1 // pred_region
      %171 = dma.done [#allocation22], 256
    $region109: #{tpu_custom_call.1} parent=1 // pred_fallthru
      _
    %p173 = scmp.eq.s32.totalorder 0, 0
    // Predicated region
    $region110: #{tpu_custom_call.1} parent=1 // pred_check
      %p174 = pneg %p173
    $region111: #{tpu_custom_call.1} parent=1 // pred_check_branch
      %176 = sbr.rel (%p174) target = $region113
    $region112: #{tpu_custom_call.1} parent=1 // pred_region
      %vm177 = vcmask 259072
      %178 = vst.msk [vmem:[#allocation2 + $0x2] sm:$0x3f] %vm177, 0.0
      %s179 = sld [smem:[#allocation8]]
      %s180 = scalar_lea.vmem %s1, %s179
      %p182 = scmp.lt.u32.totalorder 1, 8
      %p183 = pneg %p182
      // Predicated region
      $region114: #{tpu_custom_call.1} parent=112 // pred_check
        _
      $region115: #{tpu_custom_call.1} parent=112 // pred_check_branch
        %185 = sbr.rel (%p182) target = $region117
      $region116: #{tpu_custom_call.1} parent=112 // pred_region
        %s200 = sand.u32 1, 7
        %p201 = scmp.eq.s32.totalorder %s200, 0
        %p202 = pneg %p201
        // Predicated region
        $region129: #{tpu_custom_call.1} parent=116 // pred_check
          _
        $region130: #{tpu_custom_call.1} parent=116 // pred_check_branch
          %204 = sbr.rel (%p201) target = $region132
        $region131: #{tpu_custom_call.1} parent=116 // pred_region
          %s205 = sand.u32 1, 7
          %s206 = ssub.s32 1, %s205
          %s207 = scalar_lea.vmem %s180, %s206
          %s208 = ssub.s32 1, %s205
          %s209 = scalar_lea.vmem [#allocation2], %s208
          %s210 = sshllo.u32 0, %s205
          loop: start=0, step=1, limit=1
          $region133: #{tpu_custom_call.1} parent=131 // loop_pre_header
            _
          $region134: #{tpu_custom_call.1} parent=131 // loop_header
            %s212 = sphi 0, %s216
            %p213 = scmp.ge.s32.totalorder %s212, 1
            %s217 = sphi %s207, %s207
            %s218 = sphi %s209, %s209
          $region135: #{tpu_custom_call.1} parent=131 // loop_header_branch
            %215 = sbr.rel (%p213) target = $region139
          $region136: #{tpu_custom_call.1} parent=131 // loop_body
            %v219 = vld [vmem:[%s217] sm:%s210]
            %220 = vst [vmem:[%s218] sm:%s210] %v219
          $region137: #{tpu_custom_call.1} parent=131 // loop_footer
            %s216 = sadd.s32 1, %s212
          $region138: #{tpu_custom_call.1} parent=131 // loop_footer_branch
            %211 = sbr.rel target = $region134
          $region139: #{tpu_custom_call.1} parent=131 // loop_exit
            _
        $region132: #{tpu_custom_call.1} parent=116 // pred_fallthru
          _
      $region117: #{tpu_custom_call.1} parent=112 // pred_fallthru
        _
      // Predicated region
      $region118: #{tpu_custom_call.1} parent=112 // pred_check
        %p186 = pneg %p182
      $region119: #{tpu_custom_call.1} parent=112 // pred_check_branch
        %188 = sbr.rel (%p186) target = $region121
      $region120: #{tpu_custom_call.1} parent=112 // pred_region
        %s189 = sshllo.u32 0, 1
        loop: start=0, step=1, limit=1
        $region122: #{tpu_custom_call.1} parent=120 // loop_pre_header
          _
        $region123: #{tpu_custom_call.1} parent=120 // loop_header
          %s191 = sphi 0, %s195
          %p192 = scmp.ge.s32.totalorder %s191, 1
          %s196 = sphi %s180, %s180
          %s197 = sphi [#allocation2], [#allocation2]
        $region124: #{tpu_custom_call.1} parent=120 // loop_header_branch
          %194 = sbr.rel (%p192) target = $region128
        $region125: #{tpu_custom_call.1} parent=120 // loop_body
          %v198 = vld [vmem:[%s196] sm:%s189]
          %199 = vst [vmem:[%s197] sm:%s189] %v198
        $region126: #{tpu_custom_call.1} parent=120 // loop_footer
          %s195 = sadd.s32 1, %s191
        $region127: #{tpu_custom_call.1} parent=120 // loop_footer_branch
          %190 = sbr.rel target = $region123
        $region128: #{tpu_custom_call.1} parent=120 // loop_exit
          _
      $region121: #{tpu_custom_call.1} parent=112 // pred_fallthru
        _
      // Predicated region
      $region140: #{tpu_custom_call.1} parent=112 // pred_check
        _
      $region141: #{tpu_custom_call.1} parent=112 // pred_check_branch
        %223 = sbr.rel (0) target = $region143
      $region142: #{tpu_custom_call.1} parent=112 // pred_region
        %224 = vsyncadd [#allocation3], 16
      $region143: #{tpu_custom_call.1} parent=112 // pred_fallthru
        _
      %s225 = sld [smem:[#allocation8 + $0x1]]
      %s226 = scalar_lea.vmem %s1, %s225
      %s227 = scalar_lea.vmem [#allocation2], 1
      %s228 = scalar_lea.sflag [#allocation3], 1
      %p230 = scmp.lt.u32.totalorder 1, 8
      %p231 = pneg %p230
      // Predicated region
      $region144: #{tpu_custom_call.1} parent=112 // pred_check
        _
      $region145: #{tpu_custom_call.1} parent=112 // pred_check_branch
        %233 = sbr.rel (%p230) target = $region147
      $region146: #{tpu_custom_call.1} parent=112 // pred_region
        %s248 = sand.u32 1, 7
        %p249 = scmp.eq.s32.totalorder %s248, 0
        %p250 = pneg %p249
        // Predicated region
        $region159: #{tpu_custom_call.1} parent=146 // pred_check
          _
        $region160: #{tpu_custom_call.1} parent=146 // pred_check_branch
          %252 = sbr.rel (%p249) target = $region162
        $region161: #{tpu_custom_call.1} parent=146 // pred_region
          %s253 = sand.u32 1, 7
          %s254 = ssub.s32 1, %s253
          %s255 = scalar_lea.vmem %s226, %s254
          %s256 = ssub.s32 1, %s253
          %s257 = scalar_lea.vmem %s227, %s256 [#allocation2]
          %s258 = sshllo.u32 0, %s253
          loop: start=0, step=1, limit=1
          $region163: #{tpu_custom_call.1} parent=161 // loop_pre_header
            _
          $region164: #{tpu_custom_call.1} parent=161 // loop_header
            %s260 = sphi 0, %s264
            %p261 = scmp.ge.s32.totalorder %s260, 1
            %s265 = sphi %s255, %s255
            %s266 = sphi %s257, %s257
          $region165: #{tpu_custom_call.1} parent=161 // loop_header_branch
            %263 = sbr.rel (%p261) target = $region169
          $region166: #{tpu_custom_call.1} parent=161 // loop_body
            %v267 = vld [vmem:[%s265] sm:%s258]
            %268 = vst [vmem:[%s266] sm:%s258] %v267
          $region167: #{tpu_custom_call.1} parent=161 // loop_footer
            %s264 = sadd.s32 1, %s260
          $region168: #{tpu_custom_call.1} parent=161 // loop_footer_branch
            %259 = sbr.rel target = $region164
          $region169: #{tpu_custom_call.1} parent=161 // loop_exit
            _
        $region162: #{tpu_custom_call.1} parent=146 // pred_fallthru
          _
      $region147: #{tpu_custom_call.1} parent=112 // pred_fallthru
        _
      // Predicated region
      $region148: #{tpu_custom_call.1} parent=112 // pred_check
        %p234 = pneg %p230
      $region149: #{tpu_custom_call.1} parent=112 // pred_check_branch
        %236 = sbr.rel (%p234) target = $region151
      $region150: #{tpu_custom_call.1} parent=112 // pred_region
        %s237 = sshllo.u32 0, 1
        loop: start=0, step=1, limit=1
        $region152: #{tpu_custom_call.1} parent=150 // loop_pre_header
          _
        $region153: #{tpu_custom_call.1} parent=150 // loop_header
          %s239 = sphi 0, %s243
          %p240 = scmp.ge.s32.totalorder %s239, 1
          %s244 = sphi %s226, %s226
          %s245 = sphi %s227, %s227
        $region154: #{tpu_custom_call.1} parent=150 // loop_header_branch
          %242 = sbr.rel (%p240) target = $region158
        $region155: #{tpu_custom_call.1} parent=150 // loop_body
          %v246 = vld [vmem:[%s244] sm:%s237]
          %247 = vst [vmem:[%s245] sm:%s237] %v246
        $region156: #{tpu_custom_call.1} parent=150 // loop_footer
          %s243 = sadd.s32 1, %s239
        $region157: #{tpu_custom_call.1} parent=150 // loop_footer_branch
          %238 = sbr.rel target = $region153
        $region158: #{tpu_custom_call.1} parent=150 // loop_exit
          _
      $region151: #{tpu_custom_call.1} parent=112 // pred_fallthru
        _
      // Predicated region
      $region170: #{tpu_custom_call.1} parent=112 // pred_check
        _
      $region171: #{tpu_custom_call.1} parent=112 // pred_check_branch
        %271 = sbr.rel (0) target = $region173
      $region172: #{tpu_custom_call.1} parent=112 // pred_region
        %272 = vsyncadd %s228, 16
      $region173: #{tpu_custom_call.1} parent=112 // pred_fallthru
        _
      %s273 = sld [smem:[#allocation8]]
      %s274 = smul.u32 1, 1
      %s275 = sshll.u32 %s274, 4
      %276 = dma.done [#allocation3], %s275
      %s277 = sld [smem:[#allocation8 + $0x1]]
      %s278 = sshll.u32 %s274, 4
      %279 = dma.done %s228, %s278
      %v280 = vld [vmem:[#allocation2] sm:$0xff]
      %v281 = vpack.c.bf16 %v280, %v280
      %v282 = vld [vmem:[#allocation9] sm:$0xff]
      %v283 = vpack.c.bf16 %v282, %v282
      %v284 = vld [vmem:[%s4] sm:$0xf]
      %v285 = vld [vmem:[%s4 + $0x4] sm:$0xf]
      %v286 = vld [vmem:[%s4 + $0x8] sm:$0xf]
      %v287 = vld [vmem:[%s4 + $0xc] sm:$0xf]
      %v288 = vld [vmem:[%s7] sm:$0xf]
      %v289 = vld [vmem:[%s7 + $0x4] sm:$0xf]
      %v290 = vld [vmem:[%s7 + $0x8] sm:$0xf]
      %v291 = vld [vmem:[%s7 + $0xc] sm:$0xf]
      %v296 = vunpack.c.l.b16 %v288
      %v297 = vunpack.c.l.b16 %v289
      %v298 = vunpack.c.l.b16 %v290
      %v299 = vunpack.c.l.b16 %v291
      %v300 = vpack.c.b16 %v297, %v296
      %v301 = vpack.c.b16 %v299, %v298
      %vm304 = vcmask 261120
      %v306 = vsel %vm304, %v283, 0
      %308 = vmatprep.subr.bf16.mxu0 0
      %309 = vmatpush1.bf16.msra.mxu0 %v300
      %310 = vmatprep.subr.bf16.mxu0 0
      %311 = vmatpush1.bf16.msra.mxu0 %v301
      %312 = vmatprep.subr.bf16.mxu0 0
      %313 = vmatpush1.bf16.msra.mxu0 0
      %314 = vmatprep.subr.bf16.mxu0 0
      %315 = vmatpush1.bf16.msra.mxu0 0
      %316 = vmatprep.subr.bf16.mxu0 0
      %317 = vmatpush1.bf16.msra.mxu0 0
      %318 = vmatprep.subr.bf16.mxu0 0
      %319 = vmatpush1.bf16.msra.mxu0 0
      %320 = vmatprep.subr.bf16.mxu0 0
      %321 = vmatpush1.bf16.msra.mxu0 0
      %322 = vmatprep.subr.bf16.mxu0 0
      %323 = vmatpush1.bf16.msra.mxu0 0
      %324 = vmatprep.subr.bf16.mxu0 0
      %325 = vmatpush1.bf16.msra.mxu0 0
      %326 = vmatprep.subr.bf16.mxu0 0
      %327 = vmatpush1.bf16.msra.mxu0 0
      %328 = vmatprep.subr.bf16.mxu0 0
      %329 = vmatpush1.bf16.msra.mxu0 0
      %330 = vmatprep.subr.bf16.mxu0 0
      %331 = vmatpush1.bf16.msra.mxu0 0
      %332 = vmatprep.subr.bf16.mxu0 0
      %333 = vmatpush1.bf16.msra.mxu0 0
      %334 = vmatprep.subr.bf16.mxu0 0
      %335 = vmatpush1.bf16.msra.mxu0 0
      %336 = vmatprep.subr.bf16.mxu0 0
      %337 = vmatpush1.bf16.msra.mxu0 0
      %338 = vmatprep.subr.bf16.mxu0 0
      %339 = vmatpush1.bf16.msra.mxu0 0
      %340 = vmatprep.mubr.bf16.mxu0 0
      %341 = vmatmul.mubr.bf16.gmra.mrb[0].mxu0 %v306
      %v342 = vpop.f32.mrb[0].mxu0
      %v343 = vadd.f32 0.0, %v342
      %v344 = vpop.f32.mrb[0].mxu0
      %v345 = vpop.f32.mrb[0].mxu0
      %v346 = vpop.f32.mrb[0].mxu0
      %347 = vdwg.mxu0
      %v352 = vunpack.c.l.b16 %v284
      %v353 = vunpack.c.l.b16 %v285
      %v354 = vunpack.c.l.b16 %v286
      %v355 = vunpack.c.l.b16 %v287
      %v356 = vpack.c.b16 %v353, %v352
      %v357 = vpack.c.b16 %v355, %v354
      %v361 = vsel %vm304, %v281, 0
      %363 = vmatprep.subr.bf16.mxu0 0
      %364 = vmatpush1.bf16.msra.mxu0 %v356
      %365 = vmatprep.subr.bf16.mxu0 0
      %366 = vmatpush1.bf16.msra.mxu0 %v357
      %367 = vmatprep.subr.bf16.mxu0 0
      %368 = vmatpush1.bf16.msra.mxu0 0
      %369 = vmatprep.subr.bf16.mxu0 0
      %370 = vmatpush1.bf16.msra.mxu0 0
      %371 = vmatprep.subr.bf16.mxu0 0
      %372 = vmatpush1.bf16.msra.mxu0 0
      %373 = vmatprep.subr.bf16.mxu0 0
      %374 = vmatpush1.bf16.msra.mxu0 0
      %375 = vmatprep.subr.bf16.mxu0 0
      %376 = vmatpush1.bf16.msra.mxu0 0
      %377 = vmatprep.subr.bf16.mxu0 0
      %378 = vmatpush1.bf16.msra.mxu0 0
      %379 = vmatprep.subr.bf16.mxu0 0
      %380 = vmatpush1.bf16.msra.mxu0 0
      %381 = vmatprep.subr.bf16.mxu0 0
      %382 = vmatpush1.bf16.msra.mxu0 0
      %383 = vmatprep.subr.bf16.mxu0 0
      %384 = vmatpush1.bf16.msra.mxu0 0
      %385 = vmatprep.subr.bf16.mxu0 0
      %386 = vmatpush1.bf16.msra.mxu0 0
      %387 = vmatprep.subr.bf16.mxu0 0
      %388 = vmatpush1.bf16.msra.mxu0 0
      %389 = vmatprep.subr.bf16.mxu0 0
      %390 = vmatpush1.bf16.msra.mxu0 0
      %391 = vmatprep.subr.bf16.mxu0 0
      %392 = vmatpush1.bf16.msra.mxu0 0
      %393 = vmatprep.subr.bf16.mxu0 0
      %394 = vmatpush1.bf16.msra.mxu0 0
      %395 = vmatprep.mubr.bf16.mxu0 0
      %396 = vmatmul.mubr.bf16.gmra.mrb[0].mxu0 %v361
      %v397 = vpop.f32.mrb[0].mxu0
      %v398 = vadd.f32 %v343, %v397
      %v399 = vpop.f32.mrb[0].mxu0
      %v400 = vpop.f32.mrb[0].mxu0
      %v401 = vpop.f32.mrb[0].mxu0
      %402 = vdwg.mxu0
      %v403 = vld [vmem:[#allocation12] sm:$0x1]
      %v405 = vlaneseq
      %v406 = vshrl.u32 %v405, 7
      %v407 = vsub.s32 0, %v406
      %v408 = vrot.slane %v403, %v407
      %v410 = vadd.f32 %v398, %v408
      %v411 = vxor.u32 %v410, 2147483648
      %v412 = vmul.f32 %v411, 1.442695
      %v413 = vpow.pop %v412
      %v414 = vadd.f32 %v413, 1.0
      %v415 = vrcp.pop %v414
      %v416 = vmul.f32 1.0, %v415
      %v417 = vld [vmem:[%s5] sm:$0xf]
      %v418 = vld [vmem:[%s5 + $0x4] sm:$0xf]
      %v419 = vld [vmem:[%s5 + $0x8] sm:$0xf]
      %v420 = vld [vmem:[%s5 + $0xc] sm:$0xf]
      %v421 = vld [vmem:[%s8] sm:$0xf]
      %v422 = vld [vmem:[%s8 + $0x4] sm:$0xf]
      %v423 = vld [vmem:[%s8 + $0x8] sm:$0xf]
      %v424 = vld [vmem:[%s8 + $0xc] sm:$0xf]
      %v429 = vunpack.c.l.b16 %v421
      %v430 = vunpack.c.l.b16 %v422
      %v431 = vunpack.c.l.b16 %v423
      %v432 = vunpack.c.l.b16 %v424
      %v433 = vpack.c.b16 %v430, %v429
      %v434 = vpack.c.b16 %v432, %v431
      %437 = vmatprep.subr.bf16.mxu0 0
      %438 = vmatpush1.bf16.msra.mxu0 %v433
      %439 = vmatprep.subr.bf16.mxu0 0
      %440 = vmatpush1.bf16.msra.mxu0 %v434
      %441 = vmatprep.subr.bf16.mxu0 0
      %442 = vmatpush1.bf16.msra.mxu0 0
      %443 = vmatprep.subr.bf16.mxu0 0
      %444 = vmatpush1.bf16.msra.mxu0 0
      %445 = vmatprep.subr.bf16.mxu0 0
      %446 = vmatpush1.bf16.msra.mxu0 0
      %447 = vmatprep.subr.bf16.mxu0 0
      %448 = vmatpush1.bf16.msra.mxu0 0
      %449 = vmatprep.subr.bf16.mxu0 0
      %450 = vmatpush1.bf16.msra.mxu0 0
      %451 = vmatprep.subr.bf16.mxu0 0
      %452 = vmatpush1.bf16.msra.mxu0 0
      %453 = vmatprep.subr.bf16.mxu0 0
      %454 = vmatpush1.bf16.msra.mxu0 0
      %455 = vmatprep.subr.bf16.mxu0 0
      %456 = vmatpush1.bf16.msra.mxu0 0
      %457 = vmatprep.subr.bf16.mxu0 0
      %458 = vmatpush1.bf16.msra.mxu0 0
      %459 = vmatprep.subr.bf16.mxu0 0
      %460 = vmatpush1.bf16.msra.mxu0 0
      %461 = vmatprep.subr.bf16.mxu0 0
      %462 = vmatpush1.bf16.msra.mxu0 0
      %463 = vmatprep.subr.bf16.mxu0 0
      %464 = vmatpush1.bf16.msra.mxu0 0
      %465 = vmatprep.subr.bf16.mxu0 0
      %466 = vmatpush1.bf16.msra.mxu0 0
      %467 = vmatprep.subr.bf16.mxu0 0
      %468 = vmatpush1.bf16.msra.mxu0 0
      %469 = vmatprep.mubr.bf16.mxu0 0
      %470 = vmatmul.mubr.bf16.gmra.mrb[0].mxu0 %v306
      %v471 = vpop.f32.mrb[0].mxu0
      %v472 = vadd.f32 0.0, %v471
      %v473 = vpop.f32.mrb[0].mxu0
      %v474 = vpop.f32.mrb[0].mxu0
      %v475 = vpop.f32.mrb[0].mxu0
      %476 = vdwg.mxu0
      %v481 = vunpack.c.l.b16 %v417
      %v482 = vunpack.c.l.b16 %v418
      %v483 = vunpack.c.l.b16 %v419
      %v484 = vunpack.c.l.b16 %v420
      %v485 = vpack.c.b16 %v482, %v481
      %v486 = vpack.c.b16 %v484, %v483
      %489 = vmatprep.subr.bf16.mxu0 0
      %490 = vmatpush1.bf16.msra.mxu0 %v485
      %491 = vmatprep.subr.bf16.mxu0 0
      %492 = vmatpush1.bf16.msra.mxu0 %v486
      %493 = vmatprep.subr.bf16.mxu0 0
      %494 = vmatpush1.bf16.msra.mxu0 0
      %495 = vmatprep.subr.bf16.mxu0 0
      %496 = vmatpush1.bf16.msra.mxu0 0
      %497 = vmatprep.subr.bf16.mxu0 0
      %498 = vmatpush1.bf16.msra.mxu0 0
      %499 = vmatprep.subr.bf16.mxu0 0
      %500 = vmatpush1.bf16.msra.mxu0 0
      %501 = vmatprep.subr.bf16.mxu0 0
      %502 = vmatpush1.bf16.msra.mxu0 0
      %503 = vmatprep.subr.bf16.mxu0 0
      %504 = vmatpush1.bf16.msra.mxu0 0
      %505 = vmatprep.subr.bf16.mxu0 0
      %506 = vmatpush1.bf16.msra.mxu0 0
      %507 = vmatprep.subr.bf16.mxu0 0
      %508 = vmatpush1.bf16.msra.mxu0 0
      %509 = vmatprep.subr.bf16.mxu0 0
      %510 = vmatpush1.bf16.msra.mxu0 0
      %511 = vmatprep.subr.bf16.mxu0 0
      %512 = vmatpush1.bf16.msra.mxu0 0
      %513 = vmatprep.subr.bf16.mxu0 0
      %514 = vmatpush1.bf16.msra.mxu0 0
      %515 = vmatprep.subr.bf16.mxu0 0
      %516 = vmatpush1.bf16.msra.mxu0 0
      %517 = vmatprep.subr.bf16.mxu0 0
      %518 = vmatpush1.bf16.msra.mxu0 0
      %519 = vmatprep.subr.bf16.mxu0 0
      %520 = vmatpush1.bf16.msra.mxu0 0
      %521 = vmatprep.mubr.bf16.mxu0 0
      %522 = vmatmul.mubr.bf16.gmra.mrb[0].mxu0 %v361
      %v523 = vpop.f32.mrb[0].mxu0
      %v524 = vadd.f32 %v472, %v523
      %v525 = vpop.f32.mrb[0].mxu0
      %v526 = vpop.f32.mrb[0].mxu0
      %v527 = vpop.f32.mrb[0].mxu0
      %528 = vdwg.mxu0
      %v529 = vld [vmem:[#allocation14] sm:$0x1]
      %v531 = vlaneseq
      %v532 = vshrl.u32 %v531, 7
      %v533 = vsub.s32 0, %v532
      %v534 = vrot.slane %v529, %v533
      %v536 = vadd.f32 %v524, %v534
      %v537 = vxor.u32 %v536, 2147483648
      %v538 = vmul.f32 %v537, 1.442695
      %v539 = vpow.pop %v538
      %v540 = vadd.f32 %v539, 1.0
      %v541 = vrcp.pop %v540
      %v542 = vmul.f32 1.0, %v541
      %v543 = vld [vmem:[%s6] sm:$0xf]
      %v544 = vld [vmem:[%s6 + $0x4] sm:$0xf]
      %v545 = vld [vmem:[%s6 + $0x8] sm:$0xf]
      %v546 = vld [vmem:[%s6 + $0xc] sm:$0xf]
      %v547 = vld [vmem:[#allocation15] sm:$0x1]
      %v549 = vlaneseq
      %v550 = vshrl.u32 %v549, 7
      %v551 = vsub.s32 0, %v550
      %v552 = vrot.slane %v547, %v551
      %v558 = vunpack.c.l.b16 %v543
      %v559 = vunpack.c.l.b16 %v544
      %v560 = vunpack.c.l.b16 %v545
      %v561 = vunpack.c.l.b16 %v546
      %v562 = vpack.c.b16 %v559, %v558
      %v563 = vpack.c.b16 %v561, %v560
      %566 = vmatprep.subr.bf16.mxu0 0
      %567 = vmatpush1.bf16.msra.mxu0 %v562
      %568 = vmatprep.subr.bf16.mxu0 0
      %569 = vmatpush1.bf16.msra.mxu0 %v563
      %570 = vmatprep.subr.bf16.mxu0 0
      %571 = vmatpush1.bf16.msra.mxu0 0
      %572 = vmatprep.subr.bf16.mxu0 0
      %573 = vmatpush1.bf16.msra.mxu0 0
      %574 = vmatprep.subr.bf16.mxu0 0
      %575 = vmatpush1.bf16.msra.mxu0 0
      %576 = vmatprep.subr.bf16.mxu0 0
      %577 = vmatpush1.bf16.msra.mxu0 0
      %578 = vmatprep.subr.bf16.mxu0 0
      %579 = vmatpush1.bf16.msra.mxu0 0
      %580 = vmatprep.subr.bf16.mxu0 0
      %581 = vmatpush1.bf16.msra.mxu0 0
      %582 = vmatprep.subr.bf16.mxu0 0
      %583 = vmatpush1.bf16.msra.mxu0 0
      %584 = vmatprep.subr.bf16.mxu0 0
      %585 = vmatpush1.bf16.msra.mxu0 0
      %586 = vmatprep.subr.bf16.mxu0 0
      %587 = vmatpush1.bf16.msra.mxu0 0
      %588 = vmatprep.subr.bf16.mxu0 0
      %589 = vmatpush1.bf16.msra.mxu0 0
      %590 = vmatprep.subr.bf16.mxu0 0
      %591 = vmatpush1.bf16.msra.mxu0 0
      %592 = vmatprep.subr.bf16.mxu0 0
      %593 = vmatpush1.bf16.msra.mxu0 0
      %594 = vmatprep.subr.bf16.mxu0 0
      %595 = vmatpush1.bf16.msra.mxu0 0
      %596 = vmatprep.subr.bf16.mxu0 0
      %597 = vmatpush1.bf16.msra.mxu0 0
      %598 = vmatprep.mubr.bf16.mxu0 0
      %599 = vmatmul.mubr.bf16.gmra.mrb[0].mxu0 %v361
      %v600 = vpop.f32.mrb[0].mxu0
      %v601 = vadd.f32 %v552, %v600
      %v602 = vpop.f32.mrb[0].mxu0
      %v603 = vpop.f32.mrb[0].mxu0
      %v604 = vpop.f32.mrb[0].mxu0
      %605 = vdwg.mxu0
      %v606 = vld [vmem:[%s9] sm:$0xf]
      %v607 = vld [vmem:[%s9 + $0x4] sm:$0xf]
      %v608 = vld [vmem:[%s9 + $0x8] sm:$0xf]
      %v609 = vld [vmem:[%s9 + $0xc] sm:$0xf]
      %v610 = vld [vmem:[#allocation17] sm:$0x1]
      %v612 = vlaneseq
      %v613 = vshrl.u32 %v612, 7
      %v614 = vsub.s32 0, %v613
      %v615 = vrot.slane %v610, %v614
      %v621 = vunpack.c.l.b16 %v606
      %v622 = vunpack.c.l.b16 %v607
      %v623 = vunpack.c.l.b16 %v608
      %v624 = vunpack.c.l.b16 %v609
      %v625 = vpack.c.b16 %v622, %v621
      %v626 = vpack.c.b16 %v624, %v623
      %629 = vmatprep.subr.bf16.mxu0 0
      %630 = vmatpush1.bf16.msra.mxu0 %v625
      %631 = vmatprep.subr.bf16.mxu0 0
      %632 = vmatpush1.bf16.msra.mxu0 %v626
      %633 = vmatprep.subr.bf16.mxu0 0
      %634 = vmatpush1.bf16.msra.mxu0 0
      %635 = vmatprep.subr.bf16.mxu0 0
      %636 = vmatpush1.bf16.msra.mxu0 0
      %637 = vmatprep.subr.bf16.mxu0 0
      %638 = vmatpush1.bf16.msra.mxu0 0
      %639 = vmatprep.subr.bf16.mxu0 0
      %640 = vmatpush1.bf16.msra.mxu0 0
      %641 = vmatprep.subr.bf16.mxu0 0
      %642 = vmatpush1.bf16.msra.mxu0 0
      %643 = vmatprep.subr.bf16.mxu0 0
      %644 = vmatpush1.bf16.msra.mxu0 0
      %645 = vmatprep.subr.bf16.mxu0 0
      %646 = vmatpush1.bf16.msra.mxu0 0
      %647 = vmatprep.subr.bf16.mxu0 0
      %648 = vmatpush1.bf16.msra.mxu0 0
      %649 = vmatprep.subr.bf16.mxu0 0
      %650 = vmatpush1.bf16.msra.mxu0 0
      %651 = vmatprep.subr.bf16.mxu0 0
      %652 = vmatpush1.bf16.msra.mxu0 0
      %653 = vmatprep.subr.bf16.mxu0 0
      %654 = vmatpush1.bf16.msra.mxu0 0
      %655 = vmatprep.subr.bf16.mxu0 0
      %656 = vmatpush1.bf16.msra.mxu0 0
      %657 = vmatprep.subr.bf16.mxu0 0
      %658 = vmatpush1.bf16.msra.mxu0 0
      %659 = vmatprep.subr.bf16.mxu0 0
      %660 = vmatpush1.bf16.msra.mxu0 0
      %661 = vmatprep.mubr.bf16.mxu0 0
      %662 = vmatmul.mubr.bf16.gmra.mrb[0].mxu0 %v306
      %v663 = vpop.f32.mrb[0].mxu0
      %v664 = vadd.f32 %v615, %v663
      %v665 = vpop.f32.mrb[0].mxu0
      %v666 = vpop.f32.mrb[0].mxu0
      %v667 = vpop.f32.mrb[0].mxu0
      %668 = vdwg.mxu0
      %v669 = vmul.f32 %v416, %v664
      %v670 = vadd.f32 %v601, %v669
      %v671 = vtanh.pop %v670
      %v672 = vsub.f32 1.0, %v542
      %v673 = vmul.f32 %v672, %v671
      %v674 = vmul.f32 %v542, %v282
      %v675 = vadd.f32 %v673, %v674
      %676 = vst.msk [vmem:[#allocation27] sm:$0xff] %vm304, %v675
      %v677 = vld [vmem:[%s3] sm:$0xf]
      %v678 = vld [vmem:[%s3 + $0x4] sm:$0xf]
      %v679 = vld [vmem:[%s3 + $0x8] sm:$0xf]
      %v680 = vld [vmem:[%s3 + $0xc] sm:$0xf]
      %v681 = vld [vmem:[%s3 + $0x10] sm:$0xf]
      %v682 = vld [vmem:[%s3 + $0x14] sm:$0xf]
      %v683 = vld [vmem:[%s3 + $0x18] sm:$0xf]
      %v684 = vld [vmem:[%s3 + $0x1c] sm:$0xf]
      %v685 = vpack.c.bf16 %v675, %v675
      %v686 = vld [vmem:[%s14] sm:$0xf]
      %v687 = vld [vmem:[%s14 + $0x4] sm:$0xf]
      %v688 = vld [vmem:[%s14 + $0x8] sm:$0xf]
      %v689 = vld [vmem:[%s14 + $0xc] sm:$0xf]
      %v694 = vunpack.c.l.b16 %v686
      %v695 = vunpack.c.l.b16 %v687
      %v696 = vunpack.c.l.b16 %v688
      %v697 = vunpack.c.l.b16 %v689
      %v698 = vpack.c.b16 %v695, %v694
      %v699 = vpack.c.b16 %v697, %v696
      %v703 = vsel %vm304, %v685, 0
      %705 = vmatprep.subr.bf16.mxu0 0
      %706 = vmatpush1.bf16.msra.mxu0 %v698
      %707 = vmatprep.subr.bf16.mxu0 0
      %708 = vmatpush1.bf16.msra.mxu0 %v699
      %709 = vmatprep.subr.bf16.mxu0 0
      %710 = vmatpush1.bf16.msra.mxu0 0
      %711 = vmatprep.subr.bf16.mxu0 0
      %712 = vmatpush1.bf16.msra.mxu0 0
      %713 = vmatprep.subr.bf16.mxu0 0
      %714 = vmatpush1.bf16.msra.mxu0 0
      %715 = vmatprep.subr.bf16.mxu0 0
      %716 = vmatpush1.bf16.msra.mxu0 0
      %717 = vmatprep.subr.bf16.mxu0 0
      %718 = vmatpush1.bf16.msra.mxu0 0
      %719 = vmatprep.subr.bf16.mxu0 0
      %720 = vmatpush1.bf16.msra.mxu0 0
      %721 = vmatprep.subr.bf16.mxu0 0
      %722 = vmatpush1.bf16.msra.mxu0 0
      %723 = vmatprep.subr.bf16.mxu0 0
      %724 = vmatpush1.bf16.msra.mxu0 0
      %725 = vmatprep.subr.bf16.mxu0 0
      %726 = vmatpush1.bf16.msra.mxu0 0
      %727 = vmatprep.subr.bf16.mxu0 0
      %728 = vmatpush1.bf16.msra.mxu0 0
      %729 = vmatprep.subr.bf16.mxu0 0
      %730 = vmatpush1.bf16.msra.mxu0 0
      %731 = vmatprep.subr.bf16.mxu0 0
      %732 = vmatpush1.bf16.msra.mxu0 0
      %733 = vmatprep.subr.bf16.mxu0 0
      %734 = vmatpush1.bf16.msra.mxu0 0
      %735 = vmatprep.subr.bf16.mxu0 0
      %736 = vmatpush1.bf16.msra.mxu0 0
      %737 = vmatprep.mubr.bf16.mxu0 0
      %738 = vmatmul.mubr.bf16.gmra.mrb[0].mxu0 %v703
      %v739 = vpop.f32.mrb[0].mxu0
      %v740 = vadd.f32 0.0, %v739
      %v741 = vpop.f32.mrb[0].mxu0
      %v742 = vpop.f32.mrb[0].mxu0
      %v743 = vpop.f32.mrb[0].mxu0
      %744 = vdwg.mxu0
      %v745 = vld [vmem:[#allocation18] sm:$0x1]
      %v747 = vlaneseq
      %v748 = vshrl.u32 %v747, 7
      %v749 = vsub.s32 0, %v748
      %v750 = vrot.slane %v745, %v749
      %v752 = vmul.f32 %v675, %v750
      %v753 = vsel %vm304, %v752, 0.0
      %754 = vadd.xlane.f32.xlu0 %v753
      %v755 = vpop.xlane.xlu0 %754
      %v757 = vcombine.high %v740, %v740
      %v759 = vunpack.c.l.s4 1966171168
      %v760 = vunpack.c.0.s8 %v759
      %v761 = vlaneseq
      %v762 = vshrl.u32 %v761, 7
      %v763 = vsub.s32 %v760, %v762
      %v764 = vrot.slane %v740, %v763
      %v766 = vunpack.c.l.s4 1966171168
      %v767 = vunpack.c.0.s8 %v766
      %v768 = vlaneseq
      %v769 = vshrl.u32 %v768, 7
      %v770 = vsub.s32 %v767, %v769
      %v771 = vrot.slane %v757, %v770
      %v772 = vcombine.high %v764, %v764
      %v773 = vcombine.high %v771, %v771
      %v775 = vunpack.c.l.s4 1966171168
      %v776 = vunpack.c.0.s8 %v775
      %v777 = vlaneseq
      %v778 = vshrl.u32 %v777, 7
      %v779 = vsub.s32 %v776, %v778
      %v780 = vrot.slane %v764, %v779
      %v782 = vunpack.c.l.s4 1966171168
      %v783 = vunpack.c.0.s8 %v782
      %v784 = vlaneseq
      %v785 = vshrl.u32 %v784, 7
      %v786 = vsub.s32 %v783, %v785
      %v787 = vrot.slane %v771, %v786
      %v789 = vunpack.c.l.s4 1966171168
      %v790 = vunpack.c.0.s8 %v789
      %v791 = vlaneseq
      %v792 = vshrl.u32 %v791, 7
      %v793 = vsub.s32 %v790, %v792
      %v794 = vrot.slane %v772, %v793
      %v796 = vunpack.c.l.s4 1966171168
      %v797 = vunpack.c.0.s8 %v796
      %v798 = vlaneseq
      %v799 = vshrl.u32 %v798, 7
      %v800 = vsub.s32 %v797, %v799
      %v801 = vrot.slane %v773, %v800
      %v802 = vcombine.high %v780, %v780
      %v803 = vcombine.high %v787, %v787
      %v804 = vcombine.high %v794, %v794
      %v805 = vcombine.high %v801, %v801
      %v806 = vunpack.c.l.bf16 %v677
      %v807 = vunpack.c.l.bf16 %v678
      %v808 = vunpack.c.l.bf16 %v679
      %v809 = vunpack.c.l.bf16 %v680
      %v810 = vunpack.c.l.bf16 %v681
      %v811 = vunpack.c.l.bf16 %v682
      %v812 = vunpack.c.l.bf16 %v683
      %v813 = vunpack.c.l.bf16 %v684
      %v814 = vlaneseq
      %v815 = vshrl.u32 %v814, 7
      %v816 = vsub.s32 0, %v815
      %v817 = vrot.slane %v780, %v816
      %v818 = vlaneseq
      %v819 = vshrl.u32 %v818, 7
      %v820 = vsub.s32 0, %v819
      %v821 = vrot.slane %v794, %v820
      %v822 = vlaneseq
      %v823 = vshrl.u32 %v822, 7
      %v824 = vsub.s32 0, %v823
      %v825 = vrot.slane %v802, %v824
      %v826 = vlaneseq
      %v827 = vshrl.u32 %v826, 7
      %v828 = vsub.s32 0, %v827
      %v829 = vrot.slane %v804, %v828
      %v830 = vlaneseq
      %v831 = vshrl.u32 %v830, 7
      %v832 = vsub.s32 0, %v831
      %v833 = vrot.slane %v787, %v832
      %v834 = vlaneseq
      %v835 = vshrl.u32 %v834, 7
      %v836 = vsub.s32 0, %v835
      %v837 = vrot.slane %v801, %v836
      %v838 = vlaneseq
      %v839 = vshrl.u32 %v838, 7
      %v840 = vsub.s32 0, %v839
      %v841 = vrot.slane %v803, %v840
      %v842 = vlaneseq
      %v843 = vshrl.u32 %v842, 7
      %v844 = vsub.s32 0, %v843
      %v845 = vrot.slane %v805, %v844
      %v854 = vmul.f32 %v806, %v817
      %v855 = vmul.f32 %v807, %v821
      %v856 = vmul.f32 %v808, %v825
      %v857 = vmul.f32 %v809, %v829
      %v858 = vmul.f32 %v810, %v833
      %v859 = vmul.f32 %v811, %v837
      %v860 = vmul.f32 %v812, %v841
      %v861 = vmul.f32 %v813, %v845
      %v862 = vsel %vm304, %v854, 0.0
      %863 = vadd.xlane.f32.xlu0 %v862
      %v864 = vpop.xlane.xlu0 %863
      %v865 = vsel %vm304, %v855, 0.0
      %866 = vadd.xlane.f32.xlu0 %v865
      %v867 = vpop.xlane.xlu0 %866
      %v868 = vsel %vm304, %v856, 0.0
      %869 = vadd.xlane.f32.xlu0 %v868
      %v870 = vpop.xlane.xlu0 %869
      %v871 = vsel %vm304, %v857, 0.0
      %872 = vadd.xlane.f32.xlu0 %v871
      %v873 = vpop.xlane.xlu0 %872
      %v874 = vsel %vm304, %v858, 0.0
      %875 = vadd.xlane.f32.xlu0 %v874
      %v876 = vpop.xlane.xlu0 %875
      %v877 = vsel %vm304, %v859, 0.0
      %878 = vadd.xlane.f32.xlu0 %v877
      %v879 = vpop.xlane.xlu0 %878
      %v880 = vsel %vm304, %v860, 0.0
      %881 = vadd.xlane.f32.xlu0 %v880
      %v882 = vpop.xlane.xlu0 %881
      %v883 = vsel %vm304, %v861, 0.0
      %884 = vadd.xlane.f32.xlu0 %v883
      %v885 = vpop.xlane.xlu0 %884
      %v887 = vlaneseq
      %v888 = vshrl.u32 %v887, 7
      %v889 = vsub.s32 0, %v888
      %v890 = vrot.slane %v755, %v889
      %v891 = vlaneseq
      %v892 = vshrl.u32 %v891, 7
      %v893 = vsub.s32 1, %v892
      %v894 = vrot.slane %v755, %v893
      %v895 = vlaneseq
      %v896 = vshrl.u32 %v895, 7
      %v897 = vsub.s32 2, %v896
      %v898 = vrot.slane %v755, %v897
      %v899 = vlaneseq
      %v900 = vshrl.u32 %v899, 7
      %v901 = vsub.s32 3, %v900
      %v902 = vrot.slane %v755, %v901
      %v903 = vlaneseq
      %v904 = vshrl.u32 %v903, 7
      %v905 = vsub.s32 4, %v904
      %v906 = vrot.slane %v755, %v905
      %v907 = vlaneseq
      %v908 = vshrl.u32 %v907, 7
      %v909 = vsub.s32 5, %v908
      %v910 = vrot.slane %v755, %v909
      %v911 = vlaneseq
      %v912 = vshrl.u32 %v911, 7
      %v913 = vsub.s32 6, %v912
      %v914 = vrot.slane %v755, %v913
      %v915 = vlaneseq
      %v916 = vshrl.u32 %v915, 7
      %v917 = vsub.s32 7, %v916
      %v918 = vrot.slane %v755, %v917
      %v927 = vadd.f32 %v864, %v890
      %v928 = vadd.f32 %v867, %v894
      %v929 = vadd.f32 %v870, %v898
      %v930 = vadd.f32 %v873, %v902
      %v931 = vadd.f32 %v876, %v906
      %v932 = vadd.f32 %v879, %v910
      %v933 = vadd.f32 %v882, %v914
      %v934 = vadd.f32 %v885, %v918
      %943 = vset.pattern.permute.xlu0 0
      %944 = vperm.xlu0 %943, %v927
      %v945 = vpop.permute.xlu0 %944
      %946 = vset.pattern.permute.xlu0 0
      %947 = vperm.xlu0 %946, %v928
      %v948 = vpop.permute.xlu0 %947
      %949 = vset.pattern.permute.xlu0 0
      %950 = vperm.xlu0 %949, %v929
      %v951 = vpop.permute.xlu0 %950
      %952 = vset.pattern.permute.xlu0 0
      %953 = vperm.xlu0 %952, %v930
      %v954 = vpop.permute.xlu0 %953
      %955 = vset.pattern.permute.xlu0 0
      %956 = vperm.xlu0 %955, %v931
      %v957 = vpop.permute.xlu0 %956
      %958 = vset.pattern.permute.xlu0 0
      %959 = vperm.xlu0 %958, %v932
      %v960 = vpop.permute.xlu0 %959
      %961 = vset.pattern.permute.xlu0 0
      %962 = vperm.xlu0 %961, %v933
      %v963 = vpop.permute.xlu0 %962
      %964 = vset.pattern.permute.xlu0 0
      %965 = vperm.xlu0 %964, %v934
      %v966 = vpop.permute.xlu0 %965
      %v967 = vlaneseq
      %v968 = vand.u32 %v967, 127
      %v969 = vlaneseq
      %v970 = vshrl.u32 %v969, 7
      %v971 = vsub.s32 %v968, %v970
      %v972 = vrot.slane %v945, %v971
      %v973 = vlaneseq
      %v974 = vshrl.u32 %v973, 7
      %v975 = vsub.s32 %v968, %v974
      %v976 = vrot.slane %v948, %v975
      %v977 = vlaneseq
      %v978 = vshrl.u32 %v977, 7
      %v979 = vsub.s32 %v968, %v978
      %v980 = vrot.slane %v951, %v979
      %v981 = vlaneseq
      %v982 = vshrl.u32 %v981, 7
      %v983 = vsub.s32 %v968, %v982
      %v984 = vrot.slane %v954, %v983
      %v985 = vlaneseq
      %v986 = vshrl.u32 %v985, 7
      %v987 = vsub.s32 %v968, %v986
      %v988 = vrot.slane %v957, %v987
      %v989 = vlaneseq
      %v990 = vshrl.u32 %v989, 7
      %v991 = vsub.s32 %v968, %v990
      %v992 = vrot.slane %v960, %v991
      %v993 = vlaneseq
      %v994 = vshrl.u32 %v993, 7
      %v995 = vsub.s32 %v968, %v994
      %v996 = vrot.slane %v963, %v995
      %v997 = vlaneseq
      %v998 = vshrl.u32 %v997, 7
      %v999 = vsub.s32 %v968, %v998
      %v1000 = vrot.slane %v966, %v999
      %vm1001 = vcmask 1041409
      %v1002 = vsel %vm1001, %v976, %v972
      %vm1003 = vcmask 1042434
      %v1004 = vsel %vm1003, %v980, %v1002
      %vm1005 = vcmask 1043459
      %v1006 = vsel %vm1005, %v984, %v1004
      %vm1007 = vcmask 1044484
      %v1008 = vsel %vm1007, %v988, %v1006
      %vm1009 = vcmask 1045509
      %v1010 = vsel %vm1009, %v992, %v1008
      %vm1011 = vcmask 1046534
      %v1012 = vsel %vm1011, %v996, %v1010
      %vm1013 = vcmask 1047559
      %v1014 = vsel %vm1013, %v1000, %v1012
      %vm1016 = vcmask 64512
      %v1017 = vsel %vm1016, %v1014, -inf
      %1018 = vmax.xlane.f32.xlu0 %v1017
      %v1019 = vpop.xlane.xlu0 %1018
      %v1021 = vlaneseq
      %v1022 = vshrl.u32 %v1021, 7
      %v1023 = vsub.s32 0, %v1022
      %v1024 = vrot.slane %v1019, %v1023
      %v1025 = vlaneseq
      %v1026 = vshrl.u32 %v1025, 7
      %v1027 = vsub.s32 1, %v1026
      %v1028 = vrot.slane %v1019, %v1027
      %v1029 = vlaneseq
      %v1030 = vshrl.u32 %v1029, 7
      %v1031 = vsub.s32 2, %v1030
      %v1032 = vrot.slane %v1019, %v1031
      %v1033 = vlaneseq
      %v1034 = vshrl.u32 %v1033, 7
      %v1035 = vsub.s32 3, %v1034
      %v1036 = vrot.slane %v1019, %v1035
      %v1037 = vlaneseq
      %v1038 = vshrl.u32 %v1037, 7
      %v1039 = vsub.s32 4, %v1038
      %v1040 = vrot.slane %v1019, %v1039
      %v1041 = vlaneseq
      %v1042 = vshrl.u32 %v1041, 7
      %v1043 = vsub.s32 5, %v1042
      %v1044 = vrot.slane %v1019, %v1043
      %v1045 = vlaneseq
      %v1046 = vshrl.u32 %v1045, 7
      %v1047 = vsub.s32 6, %v1046
      %v1048 = vrot.slane %v1019, %v1047
      %v1049 = vlaneseq
      %v1050 = vshrl.u32 %v1049, 7
      %v1051 = vsub.s32 7, %v1050
      %v1052 = vrot.slane %v1019, %v1051
      %v1061 = vsub.f32 %v927, %v1024
      %v1062 = vsub.f32 %v928, %v1028
      %v1063 = vsub.f32 %v929, %v1032
      %v1064 = vsub.f32 %v930, %v1036
      %v1065 = vsub.f32 %v931, %v1040
      %v1066 = vsub.f32 %v932, %v1044
      %v1067 = vsub.f32 %v933, %v1048
      %v1068 = vsub.f32 %v934, %v1052
      %v1069 = vmul.f32 %v1061, 1.442695
      %v1070 = vpow.pop %v1069
      %v1071 = vmul.f32 %v1062, 1.442695
      %v1072 = vpow.pop %v1071
      %v1073 = vmul.f32 %v1063, 1.442695
      %v1074 = vpow.pop %v1073
      %v1075 = vmul.f32 %v1064, 1.442695
      %v1076 = vpow.pop %v1075
      %v1077 = vmul.f32 %v1065, 1.442695
      %v1078 = vpow.pop %v1077
      %v1079 = vmul.f32 %v1066, 1.442695
      %v1080 = vpow.pop %v1079
      %v1081 = vmul.f32 %v1067, 1.442695
      %v1082 = vpow.pop %v1081
      %v1083 = vmul.f32 %v1068, 1.442695
      %v1084 = vpow.pop %v1083
      %1093 = vset.pattern.permute.xlu0 0
      %1094 = vperm.xlu0 %1093, %v1070
      %v1095 = vpop.permute.xlu0 %1094
      %1096 = vset.pattern.permute.xlu0 0
      %1097 = vperm.xlu0 %1096, %v1072
      %v1098 = vpop.permute.xlu0 %1097
      %1099 = vset.pattern.permute.xlu0 0
      %1100 = vperm.xlu0 %1099, %v1074
      %v1101 = vpop.permute.xlu0 %1100
      %1102 = vset.pattern.permute.xlu0 0
      %1103 = vperm.xlu0 %1102, %v1076
      %v1104 = vpop.permute.xlu0 %1103
      %1105 = vset.pattern.permute.xlu0 0
      %1106 = vperm.xlu0 %1105, %v1078
      %v1107 = vpop.permute.xlu0 %1106
      %1108 = vset.pattern.permute.xlu0 0
      %1109 = vperm.xlu0 %1108, %v1080
      %v1110 = vpop.permute.xlu0 %1109
      %1111 = vset.pattern.permute.xlu0 0
      %1112 = vperm.xlu0 %1111, %v1082
      %v1113 = vpop.permute.xlu0 %1112
      %1114 = vset.pattern.permute.xlu0 0
      %1115 = vperm.xlu0 %1114, %v1084
      %v1116 = vpop.permute.xlu0 %1115
      %v1117 = vlaneseq
      %v1118 = vshrl.u32 %v1117, 7
      %v1119 = vsub.s32 %v968, %v1118
      %v1120 = vrot.slane %v1095, %v1119
      %v1121 = vlaneseq
      %v1122 = vshrl.u32 %v1121, 7
      %v1123 = vsub.s32 %v968, %v1122
      %v1124 = vrot.slane %v1098, %v1123
      %v1125 = vlaneseq
      %v1126 = vshrl.u32 %v1125, 7
      %v1127 = vsub.s32 %v968, %v1126
      %v1128 = vrot.slane %v1101, %v1127
      %v1129 = vlaneseq
      %v1130 = vshrl.u32 %v1129, 7
      %v1131 = vsub.s32 %v968, %v1130
      %v1132 = vrot.slane %v1104, %v1131
      %v1133 = vlaneseq
      %v1134 = vshrl.u32 %v1133, 7
      %v1135 = vsub.s32 %v968, %v1134
      %v1136 = vrot.slane %v1107, %v1135
      %v1137 = vlaneseq
      %v1138 = vshrl.u32 %v1137, 7
      %v1139 = vsub.s32 %v968, %v1138
      %v1140 = vrot.slane %v1110, %v1139
      %v1141 = vlaneseq
      %v1142 = vshrl.u32 %v1141, 7
      %v1143 = vsub.s32 %v968, %v1142
      %v1144 = vrot.slane %v1113, %v1143
      %v1145 = vlaneseq
      %v1146 = vshrl.u32 %v1145, 7
      %v1147 = vsub.s32 %v968, %v1146
      %v1148 = vrot.slane %v1116, %v1147
      %v1149 = vsel %vm1001, %v1124, %v1120
      %v1150 = vsel %vm1003, %v1128, %v1149
      %v1151 = vsel %vm1005, %v1132, %v1150
      %v1152 = vsel %vm1007, %v1136, %v1151
      %v1153 = vsel %vm1009, %v1140, %v1152
      %v1154 = vsel %vm1011, %v1144, %v1153
      %v1155 = vsel %vm1013, %v1148, %v1154
      %v1157 = vsel %vm1016, %v1155, 0.0
      %1158 = vadd.xlane.f32.xlu0 %v1157
      %v1159 = vpop.xlane.xlu0 %1158
      %v1160 = vrcp.pop %v1159
      %v1162 = vlaneseq
      %v1163 = vshrl.u32 %v1162, 7
      %v1164 = vsub.s32 0, %v1163
      %v1165 = vrot.slane %v1160, %v1164
      %v1166 = vlaneseq
      %v1167 = vshrl.u32 %v1166, 7
      %v1168 = vsub.s32 1, %v1167
      %v1169 = vrot.slane %v1160, %v1168
      %v1170 = vlaneseq
      %v1171 = vshrl.u32 %v1170, 7
      %v1172 = vsub.s32 2, %v1171
      %v1173 = vrot.slane %v1160, %v1172
      %v1174 = vlaneseq
      %v1175 = vshrl.u32 %v1174, 7
      %v1176 = vsub.s32 3, %v1175
      %v1177 = vrot.slane %v1160, %v1176
      %v1178 = vlaneseq
      %v1179 = vshrl.u32 %v1178, 7
      %v1180 = vsub.s32 4, %v1179
      %v1181 = vrot.slane %v1160, %v1180
      %v1182 = vlaneseq
      %v1183 = vshrl.u32 %v1182, 7
      %v1184 = vsub.s32 5, %v1183
      %v1185 = vrot.slane %v1160, %v1184
      %v1186 = vlaneseq
      %v1187 = vshrl.u32 %v1186, 7
      %v1188 = vsub.s32 6, %v1187
      %v1189 = vrot.slane %v1160, %v1188
      %v1190 = vlaneseq
      %v1191 = vshrl.u32 %v1190, 7
      %v1192 = vsub.s32 7, %v1191
      %v1193 = vrot.slane %v1160, %v1192
      %v1202 = vmul.f32 %v1070, %v1165
      %v1203 = vmul.f32 %v1072, %v1169
      %v1204 = vmul.f32 %v1074, %v1173
      %v1205 = vmul.f32 %v1076, %v1177
      %v1206 = vmul.f32 %v1078, %v1181
      %v1207 = vmul.f32 %v1080, %v1185
      %v1208 = vmul.f32 %v1082, %v1189
      %v1209 = vmul.f32 %v1084, %v1193
      %1211 = vset.pattern.permute.xlu0 0
      %1212 = vperm.xlu0 %1211, %v1202
      %v1213 = vpop.permute.xlu0 %1212
      %1216 = vset.pattern.permute.xlu0 0
      %1217 = vperm.xlu0 %1216, %v1203
      %v1218 = vpop.permute.xlu0 %1217
      %1221 = vset.pattern.permute.xlu0 0
      %1222 = vperm.xlu0 %1221, %v1204
      %v1223 = vpop.permute.xlu0 %1222
      %1226 = vset.pattern.permute.xlu0 0
      %1227 = vperm.xlu0 %1226, %v1205
      %v1228 = vpop.permute.xlu0 %1227
      %1231 = vset.pattern.permute.xlu0 0
      %1232 = vperm.xlu0 %1231, %v1206
      %v1233 = vpop.permute.xlu0 %1232
      %1236 = vset.pattern.permute.xlu0 0
      %1237 = vperm.xlu0 %1236, %v1207
      %v1238 = vpop.permute.xlu0 %1237
      %1241 = vset.pattern.permute.xlu0 0
      %1242 = vperm.xlu0 %1241, %v1208
      %v1243 = vpop.permute.xlu0 %1242
      %1246 = vset.pattern.permute.xlu0 0
      %1247 = vperm.xlu0 %1246, %v1209
      %v1248 = vpop.permute.xlu0 %1247
      %v1250 = vmul.f32 %v1213, %v806
      %v1251 = vmul.f32 %v1218, %v807
      %v1252 = vmul.f32 %v1223, %v808
      %v1253 = vmul.f32 %v1228, %v809
      %v1254 = vmul.f32 %v1233, %v810
      %v1255 = vmul.f32 %v1238, %v811
      %v1256 = vmul.f32 %v1243, %v812
      %v1257 = vmul.f32 %v1248, %v813
      %v1258 = vsel %vm304, %v1250, 0.0
      %v1259 = vrot.slane %v1258, 4
      %v1260 = vadd.f32 %v1258, %v1259
      %v1261 = vrot.slane %v1260, 2
      %v1262 = vadd.f32 %v1260, %v1261
      %v1263 = vrot.slane %v1262, 1
      %v1264 = vadd.f32 %v1262, %v1263
      %v1265 = vsel %vm304, %v1251, 0.0
      %v1266 = vrot.slane %v1265, 4
      %v1267 = vadd.f32 %v1265, %v1266
      %v1268 = vrot.slane %v1267, 2
      %v1269 = vadd.f32 %v1267, %v1268
      %v1270 = vrot.slane %v1269, 1
      %v1271 = vadd.f32 %v1269, %v1270
      %v1272 = vsel %vm304, %v1252, 0.0
      %v1273 = vrot.slane %v1272, 4
      %v1274 = vadd.f32 %v1272, %v1273
      %v1275 = vrot.slane %v1274, 2
      %v1276 = vadd.f32 %v1274, %v1275
      %v1277 = vrot.slane %v1276, 1
      %v1278 = vadd.f32 %v1276, %v1277
      %v1279 = vsel %vm304, %v1253, 0.0
      %v1280 = vrot.slane %v1279, 4
      %v1281 = vadd.f32 %v1279, %v1280
      %v1282 = vrot.slane %v1281, 2
      %v1283 = vadd.f32 %v1281, %v1282
      %v1284 = vrot.slane %v1283, 1
      %v1285 = vadd.f32 %v1283, %v1284
      %v1286 = vsel %vm304, %v1254, 0.0
      %v1287 = vrot.slane %v1286, 4
      %v1288 = vadd.f32 %v1286, %v1287
      %v1289 = vrot.slane %v1288, 2
      %v1290 = vadd.f32 %v1288, %v1289
      %v1291 = vrot.slane %v1290, 1
      %v1292 = vadd.f32 %v1290, %v1291
      %v1293 = vsel %vm304, %v1255, 0.0
      %v1294 = vrot.slane %v1293, 4
      %v1295 = vadd.f32 %v1293, %v1294
      %v1296 = vrot.slane %v1295, 2
      %v1297 = vadd.f32 %v1295, %v1296
      %v1298 = vrot.slane %v1297, 1
      %v1299 = vadd.f32 %v1297, %v1298
      %v1300 = vsel %vm304, %v1256, 0.0
      %v1301 = vrot.slane %v1300, 4
      %v1302 = vadd.f32 %v1300, %v1301
      %v1303 = vrot.slane %v1302, 2
      %v1304 = vadd.f32 %v1302, %v1303
      %v1305 = vrot.slane %v1304, 1
      %v1306 = vadd.f32 %v1304, %v1305
      %v1307 = vsel %vm304, %v1257, 0.0
      %v1308 = vrot.slane %v1307, 4
      %v1309 = vadd.f32 %v1307, %v1308
      %v1310 = vrot.slane %v1309, 2
      %v1311 = vadd.f32 %v1309, %v1310
      %v1312 = vrot.slane %v1311, 1
      %v1313 = vadd.f32 %v1311, %v1312
      %v1314 = vld [vmem:[#allocation20] sm:$0xf]
      %v1315 = vld [vmem:[#allocation20 + $0x4] sm:$0xf]
      %v1316 = vld [vmem:[#allocation20 + $0x8] sm:$0xf]
      %v1317 = vld [vmem:[#allocation20 + $0xc] sm:$0xf]
      %v1318 = vpack.c.bf16 %v1264, %v1264
      %v1319 = vpack.c.bf16 %v1271, %v1271
      %v1320 = vpack.c.bf16 %v1278, %v1278
      %v1321 = vpack.c.bf16 %v1285, %v1285
      %v1322 = vpack.c.bf16 %v1292, %v1292
      %v1323 = vpack.c.bf16 %v1299, %v1299
      %v1324 = vpack.c.bf16 %v1306, %v1306
      %v1325 = vpack.c.bf16 %v1313, %v1313
      %v1326 = vld [vmem:[%s17] sm:$0xf]
      %v1327 = vld [vmem:[%s17 + $0x4] sm:$0xf]
      %v1328 = vld [vmem:[%s17 + $0x8] sm:$0xf]
      %v1329 = vld [vmem:[%s17 + $0xc] sm:$0xf]
      %v1338 = vunpack.c.l.b16 %v1318
      %v1339 = vunpack.c.l.b16 %v1319
      %v1340 = vunpack.c.l.b16 %v1320
      %v1341 = vunpack.c.l.b16 %v1321
      %v1342 = vunpack.c.l.b16 %v1322
      %v1343 = vunpack.c.l.b16 %v1323
      %v1344 = vunpack.c.l.b16 %v1324
      %v1345 = vunpack.c.l.b16 %v1325
      %v1346 = vsel %vm1001, %v1339, %v1338
      %v1347 = vsel %vm1003, %v1340, %v1346
      %v1348 = vsel %vm1005, %v1341, %v1347
      %v1349 = vsel %vm1007, %v1342, %v1348
      %v1350 = vsel %vm1009, %v1343, %v1349
      %v1351 = vsel %vm1011, %v1344, %v1350
      %v1352 = vsel %vm1013, %v1345, %v1351
      %v1353 = vpack.c.b16 %v1352, %v1352
      %v1358 = vunpack.c.l.b16 %v1326
      %v1359 = vunpack.c.l.b16 %v1327
      %v1360 = vunpack.c.l.b16 %v1328
      %v1361 = vunpack.c.l.b16 %v1329
      %v1362 = vpack.c.b16 %v1359, %v1358
      %v1363 = vpack.c.b16 %v1361, %v1360
      %v1367 = vsel %vm304, %v1353, 0
      %1369 = vmatprep.subr.bf16.mxu0 0
      %1370 = vmatpush1.bf16.msra.mxu0 %v1362
      %1371 = vmatprep.subr.bf16.mxu0 0
      %1372 = vmatpush1.bf16.msra.mxu0 %v1363
      %1373 = vmatprep.subr.bf16.mxu0 0
      %1374 = vmatpush1.bf16.msra.mxu0 0
      %1375 = vmatprep.subr.bf16.mxu0 0
      %1376 = vmatpush1.bf16.msra.mxu0 0
      %1377 = vmatprep.subr.bf16.mxu0 0
      %1378 = vmatpush1.bf16.msra.mxu0 0
      %1379 = vmatprep.subr.bf16.mxu0 0
      %1380 = vmatpush1.bf16.msra.mxu0 0
      %1381 = vmatprep.subr.bf16.mxu0 0
      %1382 = vmatpush1.bf16.msra.mxu0 0
      %1383 = vmatprep.subr.bf16.mxu0 0
      %1384 = vmatpush1.bf16.msra.mxu0 0
      %1385 = vmatprep.subr.bf16.mxu0 0
      %1386 = vmatpush1.bf16.msra.mxu0 0
      %1387 = vmatprep.subr.bf16.mxu0 0
      %1388 = vmatpush1.bf16.msra.mxu0 0
      %1389 = vmatprep.subr.bf16.mxu0 0
      %1390 = vmatpush1.bf16.msra.mxu0 0
      %1391 = vmatprep.subr.bf16.mxu0 0
      %1392 = vmatpush1.bf16.msra.mxu0 0
      %1393 = vmatprep.subr.bf16.mxu0 0
      %1394 = vmatpush1.bf16.msra.mxu0 0
      %1395 = vmatprep.subr.bf16.mxu0 0
      %1396 = vmatpush1.bf16.msra.mxu0 0
      %1397 = vmatprep.subr.bf16.mxu0 0
      %1398 = vmatpush1.bf16.msra.mxu0 0
      %1399 = vmatprep.subr.bf16.mxu0 0
      %1400 = vmatpush1.bf16.msra.mxu0 0
      %1401 = vmatprep.mubr.bf16.mxu0 0
      %1402 = vmatmul.mubr.bf16.gmra.mrb[0].mxu0 %v1367
      %v1403 = vpop.f32.mrb[0].mxu0
      %v1404 = vadd.f32 0.0, %v1403
      %v1405 = vpop.f32.mrb[0].mxu0
      %v1406 = vpop.f32.mrb[0].mxu0
      %v1407 = vpop.f32.mrb[0].mxu0
      %1408 = vdwg.mxu0
      %v1413 = vunpack.c.l.b16 %v1314
      %v1414 = vunpack.c.l.b16 %v1315
      %v1415 = vunpack.c.l.b16 %v1316
      %v1416 = vunpack.c.l.b16 %v1317
      %v1417 = vpack.c.b16 %v1414, %v1413
      %v1418 = vpack.c.b16 %v1416, %v1415
      %1421 = vmatprep.subr.bf16.mxu0 0
      %1422 = vmatpush1.bf16.msra.mxu0 %v1417
      %1423 = vmatprep.subr.bf16.mxu0 0
      %1424 = vmatpush1.bf16.msra.mxu0 %v1418
      %1425 = vmatprep.subr.bf16.mxu0 0
      %1426 = vmatpush1.bf16.msra.mxu0 0
      %1427 = vmatprep.subr.bf16.mxu0 0
      %1428 = vmatpush1.bf16.msra.mxu0 0
      %1429 = vmatprep.subr.bf16.mxu0 0
      %1430 = vmatpush1.bf16.msra.mxu0 0
      %1431 = vmatprep.subr.bf16.mxu0 0
      %1432 = vmatpush1.bf16.msra.mxu0 0
      %1433 = vmatprep.subr.bf16.mxu0 0
      %1434 = vmatpush1.bf16.msra.mxu0 0
      %1435 = vmatprep.subr.bf16.mxu0 0
      %1436 = vmatpush1.bf16.msra.mxu0 0
      %1437 = vmatprep.subr.bf16.mxu0 0
      %1438 = vmatpush1.bf16.msra.mxu0 0
      %1439 = vmatprep.subr.bf16.mxu0 0
      %1440 = vmatpush1.bf16.msra.mxu0 0
      %1441 = vmatprep.subr.bf16.mxu0 0
      %1442 = vmatpush1.bf16.msra.mxu0 0
      %1443 = vmatprep.subr.bf16.mxu0 0
      %1444 = vmatpush1.bf16.msra.mxu0 0
      %1445 = vmatprep.subr.bf16.mxu0 0
      %1446 = vmatpush1.bf16.msra.mxu0 0
      %1447 = vmatprep.subr.bf16.mxu0 0
      %1448 = vmatpush1.bf16.msra.mxu0 0
      %1449 = vmatprep.subr.bf16.mxu0 0
      %1450 = vmatpush1.bf16.msra.mxu0 0
      %1451 = vmatprep.subr.bf16.mxu0 0
      %1452 = vmatpush1.bf16.msra.mxu0 0
      %1453 = vmatprep.mubr.bf16.mxu0 0
      %1454 = vmatmul.mubr.bf16.gmra.mrb[0].mxu0 %v703
      %v1455 = vpop.f32.mrb[0].mxu0
      %v1456 = vadd.f32 %v1404, %v1455
      %v1457 = vpop.f32.mrb[0].mxu0
      %v1458 = vpop.f32.mrb[0].mxu0
      %v1459 = vpop.f32.mrb[0].mxu0
      %1460 = vdwg.mxu0
      %v1461 = vld [vmem:[%s18] sm:$0x1]
      %v1463 = vlaneseq
      %v1464 = vshrl.u32 %v1463, 7
      %v1465 = vsub.s32 0, %v1464
      %v1466 = vrot.slane %v1461, %v1465
      %v1468 = vadd.f32 %v1456, %v1466
      %v1469 = vtanh.pop %v1468
      %v1470 = vpack.c.bf16 %v1469, %v1469
      %vm1471 = vcmask 257024
      %1472 = vst.msk [vmem:[#allocation4] sm:$0xf] %vm1471, %v1470
      %vm1473 = vcmask 7168
      %1474 = vst.msk [vmem:[#allocation5] sm:$0xff] %vm1473, -inf
      %1475 = vst.msk [vmem:[#allocation6] sm:$0xff] %vm1473, 0.0
    $region113: #{tpu_custom_call.1} parent=1 // pred_fallthru
      _
    %v1476 = vld [vmem:[#allocation4] sm:$0xf]
    %v1477 = vld [vmem:[#allocation21] sm:$0xf]
    %v1478 = vld [vmem:[#allocation21 + $0x4] sm:$0xf]
    %v1479 = vld [vmem:[#allocation21 + $0x8] sm:$0xf]
    %v1480 = vld [vmem:[#allocation21 + $0xc] sm:$0xf]
    %v1481 = vld [vmem:[%s20] sm:$0x1]
    %v1483 = vlaneseq
    %v1484 = vshrl.u32 %v1483, 7
    %v1485 = vsub.s32 0, %v1484
    %v1486 = vrot.slane %v1481, %v1485
    %v1492 = vunpack.c.l.b16 %v1477
    %v1493 = vunpack.c.l.b16 %v1478
    %v1494 = vunpack.c.l.b16 %v1479
    %v1495 = vunpack.c.l.b16 %v1480
    %v1496 = vpack.c.b16 %v1493, %v1492
    %v1497 = vpack.c.b16 %v1495, %v1494
    %vm1500 = vcmask 261120
    %v1502 = vsel %vm1500, %v1476, 0
    %1504 = vmatprep.subr.bf16.mxu0 0
    %1505 = vmatpush1.bf16.msra.mxu0 %v1496
    %1506 = vmatprep.subr.bf16.mxu0 0
    %1507 = vmatpush1.bf16.msra.mxu0 %v1497
    %1508 = vmatprep.subr.bf16.mxu0 0
    %1509 = vmatpush1.bf16.msra.mxu0 0
    %1510 = vmatprep.subr.bf16.mxu0 0
    %1511 = vmatpush1.bf16.msra.mxu0 0
    %1512 = vmatprep.subr.bf16.mxu0 0
    %1513 = vmatpush1.bf16.msra.mxu0 0
    %1514 = vmatprep.subr.bf16.mxu0 0
    %1515 = vmatpush1.bf16.msra.mxu0 0
    %1516 = vmatprep.subr.bf16.mxu0 0
    %1517 = vmatpush1.bf16.msra.mxu0 0
    %1518 = vmatprep.subr.bf16.mxu0 0
    %1519 = vmatpush1.bf16.msra.mxu0 0
    %1520 = vmatprep.subr.bf16.mxu0 0
    %1521 = vmatpush1.bf16.msra.mxu0 0
    %1522 = vmatprep.subr.bf16.mxu0 0
    %1523 = vmatpush1.bf16.msra.mxu0 0
    %1524 = vmatprep.subr.bf16.mxu0 0
    %1525 = vmatpush1.bf16.msra.mxu0 0
    %1526 = vmatprep.subr.bf16.mxu0 0
    %1527 = vmatpush1.bf16.msra.mxu0 0
    %1528 = vmatprep.subr.bf16.mxu0 0
    %1529 = vmatpush1.bf16.msra.mxu0 0
    %1530 = vmatprep.subr.bf16.mxu0 0
    %1531 = vmatpush1.bf16.msra.mxu0 0
    %1532 = vmatprep.subr.bf16.mxu0 0
    %1533 = vmatpush1.bf16.msra.mxu0 0
    %1534 = vmatprep.subr.bf16.mxu0 0
    %1535 = vmatpush1.bf16.msra.mxu0 0
    %1536 = vmatprep.mubr.bf16.mxu0 0
    %1537 = vmatmul.mubr.bf16.gmra.mrb[0].mxu0 %v1502
    %v1538 = vpop.f32.mrb[0].mxu0
    %v1539 = vadd.f32 %v1486, %v1538
    %v1540 = vpop.f32.mrb[0].mxu0
    %v1541 = vpop.f32.mrb[0].mxu0
    %v1542 = vpop.f32.mrb[0].mxu0
    %1543 = vdwg.mxu0
    %1544 = vst [vmem:[#allocation23] sm:$0xff] %v1539
    %v1545 = vld [vmem:[#allocation5] sm:$0xff]
    %1546 = vmax.xlane.f32.xlu0 %v1539
    %v1547 = vpop.xlane.xlu0 %1546
    %v1548 = vmax.f32 %v1545, %v1547
    %v1549 = vld [vmem:[#allocation6] sm:$0xff]
    %v1550 = vsub.f32 %v1545, %v1548
    %v1551 = vmul.f32 %v1550, 1.442695
    %v1552 = vpow.pop %v1551
    %v1553 = vmul.f32 %v1549, %v1552
    %1555 = vset.pattern.permute.xlu0 0
    %1556 = vperm.xlu0 %1555, %v1548
    %v1557 = vpop.permute.xlu0 %1556
    %v1559 = vsub.f32 %v1539, %v1557
    %v1560 = vmul.f32 %v1559, 1.442695
    %v1561 = vpow.pop %v1560
    %1562 = vadd.xlane.f32.xlu0 %v1561
    %v1563 = vpop.xlane.xlu0 %1562
    %v1564 = vadd.f32 %v1553, %v1563
    %vm1565 = vcmask 7168
    %1566 = vst.msk [vmem:[#allocation6] sm:$0xff] %vm1565, %v1564
    %1567 = vst.msk [vmem:[#allocation5] sm:$0xff] %vm1565, %v1548
    // Predicated region
    $region174: #{tpu_custom_call.1} parent=1 // pred_check
      %p1568 = pneg %p173
    $region175: #{tpu_custom_call.1} parent=1 // pred_check_branch
      %1570 = sbr.rel (%p1568) target = $region177
    $region176: #{tpu_custom_call.1} parent=1 // pred_region
      %v1571 = vld [vmem:[#allocation5] sm:$0xff]
      %1573 = vset.pattern.permute.xlu0 0
      %1574 = vperm.xlu0 %1573, %v1571
      %v1575 = vpop.permute.xlu0 %1574
      %1577 = vst [vmem:[#allocation24] sm:$0xff] %v1575
      %v1578 = vld [vmem:[#allocation6] sm:$0xff]
      %1580 = vset.pattern.permute.xlu0 0
      %1581 = vperm.xlu0 %1580, %v1578
      %v1582 = vpop.permute.xlu0 %1581
      %1584 = vst [vmem:[#allocation26] sm:$0xff] %v1582
    $region177: #{tpu_custom_call.1} parent=1 // pred_fallthru
      _
    // Predicated region
    $region178: #{tpu_custom_call.1} parent=1 // pred_check
      _
    $region179: #{tpu_custom_call.1} parent=1 // pred_check_branch
      %1586 = sbr.rel (0) target = $region181
    $region180: #{tpu_custom_call.1} parent=1 // pred_region
      %s1588 = ssub.s32 128, 128
      %1589 = vsyncadd [#allocation11], %s1588
      %s1591 = sshll.u32 [#allocation23], 4
      %s1592 = int_to_ptr.vmem [resolvable:$true] %s1591
      %1594 = dma.vmem_to_hbm [thread:$0]  %s1592, 128, %s21, [#allocation11]
    $region181: #{tpu_custom_call.1} parent=1 // pred_fallthru
      _
    // Predicated region
    $region182: #{tpu_custom_call.1} parent=1 // pred_check
      _
    $region183: #{tpu_custom_call.1} parent=1 // pred_check_branch
      %1596 = sbr.rel (0) target = $region185
    $region184: #{tpu_custom_call.1} parent=1 // pred_region
      %s1598 = ssub.s32 128, 128
      %1599 = vsyncadd [#allocation25], %s1598
      %s1601 = sshll.u32 [#allocation24], 4
      %s1602 = int_to_ptr.vmem [resolvable:$true] %s1601
      %1604 = dma.vmem_to_hbm [thread:$0]  %s1602, 128, %s22, [#allocation25]
    $region185: #{tpu_custom_call.1} parent=1 // pred_fallthru
      _
    // Predicated region
    $region186: #{tpu_custom_call.1} parent=1 // pred_check
      _
    $region187: #{tpu_custom_call.1} parent=1 // pred_check_branch
      %1606 = sbr.rel (0) target = $region189
    $region188: #{tpu_custom_call.1} parent=1 // pred_region
      %s1608 = ssub.s32 128, 128
      %1609 = vsyncadd [#allocation25], %s1608
      %s1611 = sshll.u32 [#allocation26], 4
      %s1612 = int_to_ptr.vmem [resolvable:$true] %s1611
      %1614 = dma.vmem_to_hbm [thread:$0]  %s1612, 128, %s23, [#allocation25]
    $region189: #{tpu_custom_call.1} parent=1 // pred_fallthru
      _
    // Predicated region
    $region190: #{tpu_custom_call.1} parent=1 // pred_check
      _
    $region191: #{tpu_custom_call.1} parent=1 // pred_check_branch
      %1616 = sbr.rel (0) target = $region193
    $region192: #{tpu_custom_call.1} parent=1 // pred_region
      %s1618 = ssub.s32 128, 128
      %1619 = vsyncadd [#allocation28], %s1618
      %s1621 = sshll.u32 [#allocation27], 4
      %s1622 = int_to_ptr.vmem [resolvable:$true] %s1621
      %1624 = dma.vmem_to_hbm [thread:$0]  %s1622, 128, %s24, [#allocation28]
    $region193: #{tpu_custom_call.1} parent=1 // pred_fallthru
      _
    // Predicated region
    $region194: #{tpu_custom_call.1} parent=1 // pred_check
      _
    $region195: #{tpu_custom_call.1} parent=1 // pred_check_branch
      %1626 = sbr.rel (0) target = $region197
    $region196: #{tpu_custom_call.1} parent=1 // pred_region
      %1627 = dma.done [#allocation11], 128
    $region197: #{tpu_custom_call.1} parent=1 // pred_fallthru
      _
    // Predicated region
    $region198: #{tpu_custom_call.1} parent=1 // pred_check
      _
    $region199: #{tpu_custom_call.1} parent=1 // pred_check_branch
      %1629 = sbr.rel (0) target = $region201
    $region200: #{tpu_custom_call.1} parent=1 // pred_region
      %1630 = dma.done [#allocation25], 128
    $region201: #{tpu_custom_call.1} parent=1 // pred_fallthru
      _
    // Predicated region
    $region202: #{tpu_custom_call.1} parent=1 // pred_check
      _
    $region203: #{tpu_custom_call.1} parent=1 // pred_check_branch
      %1632 = sbr.rel (0) target = $region205
    $region204: #{tpu_custom_call.1} parent=1 // pred_region
      %1633 = dma.done [#allocation25], 128
    $region205: #{tpu_custom_call.1} parent=1 // pred_fallthru
      _
    // Predicated region
    $region206: #{tpu_custom_call.1} parent=1 // pred_check
      _
    $region207: #{tpu_custom_call.1} parent=1 // pred_check_branch
      %1635 = sbr.rel (0) target = $region209
    $region208: #{tpu_custom_call.1} parent=1 // pred_region
      %1636 = dma.done [#allocation28], 128
    $region209: #{tpu_custom_call.1} parent=1 // pred_fallthru
      _
    %1637 = vsyncpa [#allocation10], 1
    %1638 = vsyncpa [#allocation13], 1
    %1639 = vsyncpa [#allocation16], 1
    %1640 = vsyncpa [#allocation19], 1
    %1641 = vsyncpa [#allocation22], 1
    %1642 = vsyncpa [#allocation11], 1
    %1643 = vsyncpa [#allocation25], 1
    %1644 = vsyncpa [#allocation28], 1
  %1645 = vsyncmov [#allocation3]
  %s1646 = vpop.sfrf %1645
  %p1647 = scmp.eq.s32.totalorder %s1646, 0
  %p1648 = pneg %p1647
  %1650 = shalt.err (%p1648)
  %s1651 = scalar_lea.sflag [#allocation3], 1
  %1652 = vsyncmov %s1651
  %s1653 = vpop.sfrf %1652
  %p1654 = scmp.eq.s32.totalorder %s1653, 0
  %p1655 = pneg %p1654
  %1657 = shalt.err (%p1655)

</llo_original>
